<compile_context>
chip_gen: v5e
topology: v5e:2x2
jax: 0.10.0
libtpu: 0.0.40
codegen_flags: <defaults>
</compile_context>

<pallas_src>
import functools

import jax
import jax.numpy as jnp
from jax.experimental import pallas as pl
from jax.experimental.pallas import tpu as pltpu

_TCO = 128           # Cout tile width (one full lane group / MXU N tile)
_TARGET_ROWS = 4096  # target flattened output rows (TM * Wo) per grid step


def _round_up(x, m):
    return ((x + m - 1) // m) * m


def _conv_bn_relu_kernel(x_ref, w_ref, b_ref, o_ref, slab_ref, *,
                         kh, kw, sh, sw, cin, k_real, tm, wo_t):
    """One (image, row-tile, Cout-tile) block: im2col slab + single MXU dot + BN bias + ReLU.

    x_ref   : (sh*sw, Hq, Wq, Cin)   bf16  stride-phase-deinterleaved padded image
    w_ref   : (K_pad, 128)           bf16  BN-scale-folded weights (K = KH*KW*Cin, zero-padded)
    b_ref   : (1, 128)               f32   folded BN bias tile
    o_ref   : (TM, Wo_t, 128)        bf16  output block (lane-dense)
    slab_ref: (TM, Wo_t, K_pad)      bf16  im2col scratch (persists across steps)
    """
    row0 = pl.program_id(1) * tm              # output-row offset (phased Hq coords)
    k_pad = slab_ref.shape[-1]

    # Zero the K padding lanes every step (scratch may hold garbage / other core's data;
    # garbage * 0-weight would still be NaN-unsafe).  Cheap: (TM*Wo_t*(K_pad-K)) bf16.
    if k_pad > k_real:
        slab_ref[:, :, pl.ds(k_real, k_pad - k_real)] = jnp.zeros(
            (tm, wo_t, k_pad - k_real), dtype=slab_ref.dtype)

    # Gather the KH*KW taps into the im2col slab.  Strides are folded into the phase
    # dim by the wrapper, so every load below is unit-stride.
    for i in range(kh):
        qi, pi = i // sh, i % sh
        for j in range(kw):
            qj, pj = j // sw, j % sw
            p = pi * sw + pj                  # static phase index
            t = i * kw + j                    # tap index -> slab column block
            slab_ref[:, :, pl.ds(t * cin, cin)] = x_ref[
                p, pl.ds(row0 + qi, tm), pl.ds(qj, wo_t), :]

    # One large-K MXU matmul over all taps (f32 accumulate), then BN bias + ReLU,
    # cast to bf16 only at the store.
    acc = jnp.dot(slab_ref[...].reshape(tm * wo_t, k_pad), w_ref[...],
                  preferred_element_type=jnp.float32)
    y = jnp.maximum(acc + b_ref[...], 0.0)
    o_ref[...] = y.reshape(tm, wo_t, o_ref.shape[-1]).astype(o_ref.dtype)


@functools.partial(jax.jit, static_argnames=("stride", "padding", "eps"))
def basic_conv2d(x_nchw, weight_oihw, gamma, beta, running_mean, running_var,
                 *, stride=(1, 1), padding=(0, 0), eps=1e-3):
    """Forward pass of BasicConv2d (eval-mode BN), fused conv+BN+ReLU Pallas kernel."""
    n, cin, h, w = x_nchw.shape
    cout, cin_w, kh, kw = weight_oihw.shape
    assert cin == cin_w
    sh, sw = (stride, stride) if isinstance(stride, int) else stride
    ph, pw = (padding, padding) if isinstance(padding, int) else padding
    ho = (h + 2 * ph - kh) // sh + 1
    wo = (w + 2 * pw - kw) // sw + 1

    # ---- tiling choices ----
    wo_t = _round_up(wo, 8)                        # sublane-friendly output width
    tm = max(1, min(ho, _TARGET_ROWS // wo_t))     # output rows per grid step
    n_rt = -(-ho // tm)
    ho_p = n_rt * tm

    k_real = kh * kw * cin
    k_pad = _round_up(k_real, 128)                 # full MXU K depth / lane-dense slab
    cout_p = _round_up(cout, _TCO)
    n_co = cout_p // _TCO

    # ---- input prep (cheap XLA glue): NHWC, zero pad, stride-phase deinterleave ----
    hq = ho_p + (kh - 1) // sh                     # phased rows the kernel may read
    wq = wo_t + (kw - 1) // sw
    hp_t = _round_up(max(hq * sh, h + ph), sh)
    wp_t = _round_up(max(wq * sw, w + pw), sw)
    hq_f, wq_f = hp_t // sh, wp_t // sw

    x_nhwc = jnp.transpose(x_nchw, (0, 2, 3, 1)).astype(jnp.bfloat16)
    x_pad = jnp.pad(x_nhwc, ((0, 0), (ph, hp_t - h - ph), (pw, wp_t - w - pw), (0, 0)))
    # x_ph[n, pi*sw+pj, hq, wq, c] == x_pad[n, hq*sh+pi, wq*sw+pj, c]
    x_ph = x_pad.reshape(n, hq_f, sh, wq_f, sw, cin)
    x_ph = jnp.transpose(x_ph, (0, 2, 4, 1, 3, 5)).reshape(n, sh * sw, hq_f, wq_f, cin)

    # ---- BN folding + weight im2col layout (tiny, XLA) ----
    scale = gamma / jnp.sqrt(running_var + eps)                  # (Cout,)
    bias = beta - running_mean * scale                           # (Cout,)
    w_k = jnp.transpose(weight_oihw, (2, 3, 1, 0)).reshape(k_real, cout) * scale
    w_k = jnp.pad(w_k, ((0, k_pad - k_real), (0, cout_p - cout))).astype(jnp.bfloat16)
    bias_p = jnp.pad(bias, (0, cout_p - cout)).reshape(1, cout_p).astype(jnp.float32)

    kernel = functools.partial(_conv_bn_relu_kernel, kh=kh, kw=kw, sh=sh, sw=sw,
                               cin=cin, k_real=k_real, tm=tm, wo_t=wo_t)

    flops = 2 * n * ho_p * wo_t * k_pad * cout_p
    bytes_accessed = (x_ph.size * 2 + w_k.size * 2 + bias_p.size * 4
                      + n * ho_p * wo_t * cout_p * 2)

    out = pl.pallas_call(
        kernel,
        out_shape=jax.ShapeDtypeStruct((n, ho_p, wo_t, cout_p), jnp.bfloat16),
        grid_spec=pltpu.PrefetchScalarGridSpec(
            num_scalar_prefetch=0,
            grid=(n, n_rt, n_co),                  # Cout innermost: image block stays put
            in_specs=[
                # whole phased image per batch element (block index independent of r, c
                # -> no re-DMA across the row / Cout axes)
                pl.BlockSpec((None, sh * sw, hq_f, wq_f, cin),
                             lambda b, r, c: (b, 0, 0, 0, 0)),
                # one 128-wide Cout tile of the folded, K-padded weights
                pl.BlockSpec((k_pad, _TCO), lambda b, r, c: (0, c)),
                # matching BN bias tile
                pl.BlockSpec((1, _TCO), lambda b, r, c: (0, c)),
            ],
            out_specs=pl.BlockSpec((None, tm, wo_t, _TCO),
                                   lambda b, r, c: (b, r, 0, c)),
            scratch_shapes=[pltpu.VMEM((tm, wo_t, k_pad), jnp.bfloat16)],
        ),
        compiler_params=pltpu.CompilerParams(
            dimension_semantics=("parallel", "parallel", "parallel"),
            vmem_limit_bytes=40 * 1024 * 1024,
        ),
        cost_estimate=pl.CostEstimate(flops=flops, transcendentals=0,
                                      bytes_accessed=bytes_accessed),
    )(x_ph, w_k, bias_p)

    # (N, Ho_p, Wo_t, Cout_p) bf16 -> PyTorch NCHW f32 contract.
    # TODO(synk): NHWC consumers should use out[:, :ho, :wo, :cout] directly (no transpose).
    out_nhwc = out[:, :ho, :wo, :cout]
    return jnp.transpose(out_nhwc, (0, 3, 1, 2)).astype(jnp.float32)


def _reference(x_nchw, weight_oihw, gamma, beta, mean, var, *, stride, padding, eps=1e-3):
    y = jax.lax.conv_general_dilated(
        x_nchw, weight_oihw, window_strides=stride,
        padding=[(padding[0], padding[0]), (padding[1], padding[1])],
        dimension_numbers=("NCHW", "OIHW", "NCHW"))
    s = (gamma / jnp.sqrt(var + eps)).reshape(1, -1, 1, 1)
    b = (beta - mean * (gamma / jnp.sqrt(var + eps))).reshape(1, -1, 1, 1)
    return jnp.maximum(y * s + b, 0.0)


if __name__ == "__main__":
    root = jax.random.PRNGKey(0)

    def make_case(key, n, cin, h, w, cout, kh, kw):
        ks = jax.random.split(key, 6)
        x = jax.random.normal(ks[0], (n, cin, h, w), dtype=jnp.float32)
        wgt = 0.1 * jax.random.normal(ks[1], (cout, cin, kh, kw), dtype=jnp.float32)
        gamma = 1.0 + 0.1 * jax.random.normal(ks[2], (cout,), dtype=jnp.float32)
        beta = 0.1 * jax.random.normal(ks[3], (cout,), dtype=jnp.float32)
        mean = 0.1 * jax.random.normal(ks[4], (cout,), dtype=jnp.float32)
        var = 0.5 + jnp.abs(jax.random.normal(ks[5], (cout,), dtype=jnp.float32))
        return x, wgt, gamma, beta, mean, var

    cases = [
        # BasicConv2d(4, 8, kernel_size=3, padding=1)
        ((2, 4, 16, 16, 8, 3, 3), (1, 1), (1, 1)),
        # BasicConv2d(3, 8, kernel_size=3, stride=2)  (Inception-stem style)
        ((1, 3, 15, 15, 8, 3, 3), (2, 2), (0, 0)),
        # BasicConv2d(4, 16, kernel_size=1)
        ((1, 4, 8, 8, 16, 1, 1), (1, 1), (0, 0)),
    ]
    keys = jax.random.split(root, len(cases))
    for case_key, (shape, stride, padding) in zip(keys, cases):
        n, cin, h, w, cout, kh, kw = shape
        x, wgt, gamma, beta, mean, var = make_case(case_key, n, cin, h, w, cout, kh, kw)
        out = basic_conv2d(x, wgt, gamma, beta, mean, var,
                           stride=stride, padding=padding)
        out = jax.block_until_ready(out)
        ref = _reference(x, wgt, gamma, beta, mean, var,
                         stride=stride, padding=padding)
        assert out.shape == ref.shape, (out.shape, ref.shape)
        max_err = float(jnp.max(jnp.abs(out - ref)))
        # bf16 MXU inputs/weights + bf16 output vs pure-f32 reference -> loose tolerance.
        assert jnp.allclose(out, ref, atol=6e-2, rtol=6e-2), (shape, stride, padding, max_err)

    print("KERNEL_OK")
</pallas_src>

<mosaic_0001>
module attributes {stable_mosaic.version = 11 : i64} {
  func.func @_conv_bn_relu_kernel(%arg0: i32, %arg1: i32, %arg2: i32, %arg3: memref<1x1x18x18x4xbf16, #tpu.memory_space<vmem>>, %arg4: memref<128x128xbf16, #tpu.memory_space<vmem>>, %arg5: memref<1x128xf32, #tpu.memory_space<vmem>>, %arg6: memref<1x16x16x128xbf16, #tpu.memory_space<vmem>>, %arg7: memref<16x16x128xbf16, #tpu.memory_space<vmem>>) attributes {dimension_semantics = [#tpu.dimension_semantics<parallel>, #tpu.dimension_semantics<parallel>, #tpu.dimension_semantics<parallel>], iteration_bounds = array<i64: 2, 1, 1>, scalar_prefetch = 0 : i64, scratch_operands = 1 : i64, tpu.core_type = #tpu.core_type<tc>, window_params = [{transform_indices = @transform_0, window_bounds = array<i64: 1, 1, 18, 18, 4>}, {transform_indices = @transform_1, window_bounds = array<i64: 128, 128>}, {transform_indices = @transform_2, window_bounds = array<i64: 1, 128>}, {transform_indices = @transform_3, window_bounds = array<i64: 1, 16, 16, 128>}]} {
    %c16_i32 = arith.constant 16 : i32
    %0 = arith.muli %arg1, %c16_i32 : i32
    %cst = arith.constant 0.000000e+00 : bf16
    %1 = vector.broadcast %cst : bf16 to vector<16x16x92xbf16>
    %c0 = arith.constant 0 : index
    %c0_0 = arith.constant 0 : index
    %c36 = arith.constant 36 : index
    %2 = vector.load %arg7[%c0, %c0_0, %c36] : memref<16x16x128xbf16, #tpu.memory_space<vmem>>, vector<16x16x92xbf16>
    tpu.vector_store %arg7[%c0, %c0_0, %c36], %1 {strides = array<i32>} : memref<16x16x128xbf16, #tpu.memory_space<vmem>>, vector<16x16x92xbf16>,
    %c0_i32 = arith.constant 0 : i32
    %3 = arith.addi %0, %c0_i32 : i32
    %c0_1 = arith.constant 0 : index
    %c0_2 = arith.constant 0 : index
    %4 = arith.index_cast %3 : i32 to index
    %c0_3 = arith.constant 0 : index
    %c0_4 = arith.constant 0 : index
    %5 = vector.load %arg3[%c0_1, %c0_2, %4, %c0_3, %c0_4] : memref<1x1x18x18x4xbf16, #tpu.memory_space<vmem>>, vector<1x1x16x16x4xbf16>
    %6 = vector.shape_cast %5 : vector<1x1x16x16x4xbf16> to vector<16x16x4xbf16>
    %c0_5 = arith.constant 0 : index
    %c0_6 = arith.constant 0 : index
    %c0_7 = arith.constant 0 : index
    %7 = vector.load %arg7[%c0_5, %c0_6, %c0_7] : memref<16x16x128xbf16, #tpu.memory_space<vmem>>, vector<16x16x4xbf16>
    tpu.vector_store %arg7[%c0_5, %c0_6, %c0_7], %6 {strides = array<i32>} : memref<16x16x128xbf16, #tpu.memory_space<vmem>>, vector<16x16x4xbf16>,
    %c0_i32_8 = arith.constant 0 : i32
    %8 = arith.addi %0, %c0_i32_8 : i32
    %c0_9 = arith.constant 0 : index
    %c0_10 = arith.constant 0 : index
    %9 = arith.index_cast %8 : i32 to index
    %c1 = arith.constant 1 : index
    %c0_11 = arith.constant 0 : index
    %10 = vector.load %arg3[%c0_9, %c0_10, %9, %c1, %c0_11] : memref<1x1x18x18x4xbf16, #tpu.memory_space<vmem>>, vector<1x1x16x16x4xbf16>
    %11 = vector.shape_cast %10 : vector<1x1x16x16x4xbf16> to vector<16x16x4xbf16>
    %c0_12 = arith.constant 0 : index
    %c0_13 = arith.constant 0 : index
    %c4 = arith.constant 4 : index
    %12 = vector.load %arg7[%c0_12, %c0_13, %c4] : memref<16x16x128xbf16, #tpu.memory_space<vmem>>, vector<16x16x4xbf16>
    tpu.vector_store %arg7[%c0_12, %c0_13, %c4], %11 {strides = array<i32>} : memref<16x16x128xbf16, #tpu.memory_space<vmem>>, vector<16x16x4xbf16>,
    %c0_i32_14 = arith.constant 0 : i32
    %13 = arith.addi %0, %c0_i32_14 : i32
    %c0_15 = arith.constant 0 : index
    %c0_16 = arith.constant 0 : index
    %14 = arith.index_cast %13 : i32 to index
    %c2 = arith.constant 2 : index
    %c0_17 = arith.constant 0 : index
    %15 = vector.load %arg3[%c0_15, %c0_16, %14, %c2, %c0_17] : memref<1x1x18x18x4xbf16, #tpu.memory_space<vmem>>, vector<1x1x16x16x4xbf16>
    %16 = vector.shape_cast %15 : vector<1x1x16x16x4xbf16> to vector<16x16x4xbf16>
    %c0_18 = arith.constant 0 : index
    %c0_19 = arith.constant 0 : index
    %c8 = arith.constant 8 : index
    %17 = vector.load %arg7[%c0_18, %c0_19, %c8] : memref<16x16x128xbf16, #tpu.memory_space<vmem>>, vector<16x16x4xbf16>
    tpu.vector_store %arg7[%c0_18, %c0_19, %c8], %16 {strides = array<i32>} : memref<16x16x128xbf16, #tpu.memory_space<vmem>>, vector<16x16x4xbf16>,
    %c1_i32 = arith.constant 1 : i32
    %18 = arith.addi %0, %c1_i32 : i32
    %c0_20 = arith.constant 0 : index
    %c0_21 = arith.constant 0 : index
    %19 = arith.index_cast %18 : i32 to index
    %c0_22 = arith.constant 0 : index
    %c0_23 = arith.constant 0 : index
    %20 = vector.load %arg3[%c0_20, %c0_21, %19, %c0_22, %c0_23] : memref<1x1x18x18x4xbf16, #tpu.memory_space<vmem>>, vector<1x1x16x16x4xbf16>
    %21 = vector.shape_cast %20 : vector<1x1x16x16x4xbf16> to vector<16x16x4xbf16>
    %c0_24 = arith.constant 0 : index
    %c0_25 = arith.constant 0 : index
    %c12 = arith.constant 12 : index
    %22 = vector.load %arg7[%c0_24, %c0_25, %c12] : memref<16x16x128xbf16, #tpu.memory_space<vmem>>, vector<16x16x4xbf16>
    tpu.vector_store %arg7[%c0_24, %c0_25, %c12], %21 {strides = array<i32>} : memref<16x16x128xbf16, #tpu.memory_space<vmem>>, vector<16x16x4xbf16>,
    %c1_i32_26 = arith.constant 1 : i32
    %23 = arith.addi %0, %c1_i32_26 : i32
    %c0_27 = arith.constant 0 : index
    %c0_28 = arith.constant 0 : index
    %24 = arith.index_cast %23 : i32 to index
    %c1_29 = arith.constant 1 : index
    %c0_30 = arith.constant 0 : index
    %25 = vector.load %arg3[%c0_27, %c0_28, %24, %c1_29, %c0_30] : memref<1x1x18x18x4xbf16, #tpu.memory_space<vmem>>, vector<1x1x16x16x4xbf16>
    %26 = vector.shape_cast %25 : vector<1x1x16x16x4xbf16> to vector<16x16x4xbf16>
    %c0_31 = arith.constant 0 : index
    %c0_32 = arith.constant 0 : index
    %c16 = arith.constant 16 : index
    %27 = vector.load %arg7[%c0_31, %c0_32, %c16] : memref<16x16x128xbf16, #tpu.memory_space<vmem>>, vector<16x16x4xbf16>
    tpu.vector_store %arg7[%c0_31, %c0_32, %c16], %26 {strides = array<i32>} : memref<16x16x128xbf16, #tpu.memory_space<vmem>>, vector<16x16x4xbf16>,
    %c1_i32_33 = arith.constant 1 : i32
    %28 = arith.addi %0, %c1_i32_33 : i32
    %c0_34 = arith.constant 0 : index
    %c0_35 = arith.constant 0 : index
    %29 = arith.index_cast %28 : i32 to index
    %c2_36 = arith.constant 2 : index
    %c0_37 = arith.constant 0 : index
    %30 = vector.load %arg3[%c0_34, %c0_35, %29, %c2_36, %c0_37] : memref<1x1x18x18x4xbf16, #tpu.memory_space<vmem>>, vector<1x1x16x16x4xbf16>
    %31 = vector.shape_cast %30 : vector<1x1x16x16x4xbf16> to vector<16x16x4xbf16>
    %c0_38 = arith.constant 0 : index
    %c0_39 = arith.constant 0 : index
    %c20 = arith.constant 20 : index
    %32 = vector.load %arg7[%c0_38, %c0_39, %c20] : memref<16x16x128xbf16, #tpu.memory_space<vmem>>, vector<16x16x4xbf16>
    tpu.vector_store %arg7[%c0_38, %c0_39, %c20], %31 {strides = array<i32>} : memref<16x16x128xbf16, #tpu.memory_space<vmem>>, vector<16x16x4xbf16>,
    %c2_i32 = arith.constant 2 : i32
    %33 = arith.addi %0, %c2_i32 : i32
    %c0_40 = arith.constant 0 : index
    %c0_41 = arith.constant 0 : index
    %34 = arith.index_cast %33 : i32 to index
    %c0_42 = arith.constant 0 : index
    %c0_43 = arith.constant 0 : index
    %35 = vector.load %arg3[%c0_40, %c0_41, %34, %c0_42, %c0_43] : memref<1x1x18x18x4xbf16, #tpu.memory_space<vmem>>, vector<1x1x16x16x4xbf16>
    %36 = vector.shape_cast %35 : vector<1x1x16x16x4xbf16> to vector<16x16x4xbf16>
    %c0_44 = arith.constant 0 : index
    %c0_45 = arith.constant 0 : index
    %c24 = arith.constant 24 : index
    %37 = vector.load %arg7[%c0_44, %c0_45, %c24] : memref<16x16x128xbf16, #tpu.memory_space<vmem>>, vector<16x16x4xbf16>
    tpu.vector_store %arg7[%c0_44, %c0_45, %c24], %36 {strides = array<i32>} : memref<16x16x128xbf16, #tpu.memory_space<vmem>>, vector<16x16x4xbf16>,
    %c2_i32_46 = arith.constant 2 : i32
    %38 = arith.addi %0, %c2_i32_46 : i32
    %c0_47 = arith.constant 0 : index
    %c0_48 = arith.constant 0 : index
    %39 = arith.index_cast %38 : i32 to index
    %c1_49 = arith.constant 1 : index
    %c0_50 = arith.constant 0 : index
    %40 = vector.load %arg3[%c0_47, %c0_48, %39, %c1_49, %c0_50] : memref<1x1x18x18x4xbf16, #tpu.memory_space<vmem>>, vector<1x1x16x16x4xbf16>
    %41 = vector.shape_cast %40 : vector<1x1x16x16x4xbf16> to vector<16x16x4xbf16>
    %c0_51 = arith.constant 0 : index
    %c0_52 = arith.constant 0 : index
    %c28 = arith.constant 28 : index
    %42 = vector.load %arg7[%c0_51, %c0_52, %c28] : memref<16x16x128xbf16, #tpu.memory_space<vmem>>, vector<16x16x4xbf16>
    tpu.vector_store %arg7[%c0_51, %c0_52, %c28], %41 {strides = array<i32>} : memref<16x16x128xbf16, #tpu.memory_space<vmem>>, vector<16x16x4xbf16>,
    %c2_i32_53 = arith.constant 2 : i32
    %43 = arith.addi %0, %c2_i32_53 : i32
    %c0_54 = arith.constant 0 : index
    %c0_55 = arith.constant 0 : index
    %44 = arith.index_cast %43 : i32 to index
    %c2_56 = arith.constant 2 : index
    %c0_57 = arith.constant 0 : index
    %45 = vector.load %arg3[%c0_54, %c0_55, %44, %c2_56, %c0_57] : memref<1x1x18x18x4xbf16, #tpu.memory_space<vmem>>, vector<1x1x16x16x4xbf16>
    %46 = vector.shape_cast %45 : vector<1x1x16x16x4xbf16> to vector<16x16x4xbf16>
    %c0_58 = arith.constant 0 : index
    %c0_59 = arith.constant 0 : index
    %c32 = arith.constant 32 : index
    %47 = vector.load %arg7[%c0_58, %c0_59, %c32] : memref<16x16x128xbf16, #tpu.memory_space<vmem>>, vector<16x16x4xbf16>
    tpu.vector_store %arg7[%c0_58, %c0_59, %c32], %46 {strides = array<i32>} : memref<16x16x128xbf16, #tpu.memory_space<vmem>>, vector<16x16x4xbf16>,
    %c0_60 = arith.constant 0 : index
    %c0_61 = arith.constant 0 : index
    %c0_62 = arith.constant 0 : index
    %48 = vector.load %arg7[%c0_60, %c0_61, %c0_62] : memref<16x16x128xbf16, #tpu.memory_space<vmem>>, vector<16x16x128xbf16>
    %49 = vector.shape_cast %48 : vector<16x16x128xbf16> to vector<256x128xbf16>
    %c0_63 = arith.constant 0 : index
    %c0_64 = arith.constant 0 : index
    %50 = vector.load %arg4[%c0_63, %c0_64] : memref<128x128xbf16, #tpu.memory_space<vmem>>, vector<128x128xbf16>
    %cst_65 = arith.constant dense<0.000000e+00> : vector<256x128xf32>
    %51 = tpu.matmul %49, %50, %cst_65 {dimension_numbers = #tpu.dot_dimension_numbers<[1], [0], [0], [1], [0, 0, 1, 1], [], []>} : vector<256x128xbf16>, vector<128x128xbf16>, vector<256x128xf32> -> vector<256x128xf32>
    %c0_66 = arith.constant 0 : index
    %c0_67 = arith.constant 0 : index
    %52 = vector.load %arg5[%c0_66, %c0_67] : memref<1x128xf32, #tpu.memory_space<vmem>>, vector<1x128xf32>
    %53 = vector.broadcast %52 : vector<1x128xf32> to vector<256x128xf32>
    %54 = arith.addf %51, %53 : vector<256x128xf32>
    %cst_68 = arith.constant 0.000000e+00 : f32
    %55 = vector.broadcast %cst_68 : f32 to vector<256x128xf32>
    %56 = arith.maximumf %54, %55 : vector<256x128xf32>
    %57 = vector.shape_cast %56 : vector<256x128xf32> to vector<16x16x128xf32>
    %58 = arith.truncf %57 : vector<16x16x128xf32> to vector<16x16x128xbf16>
    %c0_69 = arith.constant 0 : index
    %c0_70 = arith.constant 0 : index
    %c0_71 = arith.constant 0 : index
    %c0_72 = arith.constant 0 : index
    %59 = vector.load %arg6[%c0_69, %c0_70, %c0_71, %c0_72] : memref<1x16x16x128xbf16, #tpu.memory_space<vmem>>, vector<1x16x16x128xbf16>
    %60 = vector.shape_cast %59 : vector<1x16x16x128xbf16> to vector<16x16x128xbf16>
    %61 = vector.shape_cast %58 : vector<16x16x128xbf16> to vector<1x16x16x128xbf16>
    tpu.vector_store %arg6[%c0_69, %c0_70, %c0_71, %c0_72], %61 {strides = array<i32>} : memref<1x16x16x128xbf16, #tpu.memory_space<vmem>>, vector<1x16x16x128xbf16>,
    return
  }
  func.func @transform_0(%arg0: i32, %arg1: i32, %arg2: i32) -> (i32, i32, i32, i32, i32) {
    %c0_i32 = arith.constant 0 : i32
    %c0_i32_0 = arith.constant 0 : i32
    %c0_i32_1 = arith.constant 0 : i32
    %c0_i32_2 = arith.constant 0 : i32
    %c0_i32_3 = arith.constant 0 : i32
    return %arg0, %c0_i32, %c0_i32_0, %c0_i32_1, %c0_i32_2 : i32, i32, i32, i32, i32
  }
  func.func @transform_1(%arg0: i32, %arg1: i32, %arg2: i32) -> (i32, i32) {
    %c0_i32 = arith.constant 0 : i32
    %c0_i32_0 = arith.constant 0 : i32
    return %c0_i32, %arg2 : i32, i32
  }
  func.func @transform_2(%arg0: i32, %arg1: i32, %arg2: i32) -> (i32, i32) {
    %c0_i32 = arith.constant 0 : i32
    %c0_i32_0 = arith.constant 0 : i32
    return %c0_i32, %arg2 : i32, i32
  }
  func.func @transform_3(%arg0: i32, %arg1: i32, %arg2: i32) -> (i32, i32, i32, i32) {
    %c0_i32 = arith.constant 0 : i32
    %c0_i32_0 = arith.constant 0 : i32
    return %arg0, %arg1, %c0_i32, %arg2 : i32, i32, i32, i32
  }
}

</mosaic_0001>

<llo_original>
// kernel: basic_conv2d.1
$region0: #{basic_conv2d.1}
  #allocation0 [shape = 'u32[]', space=smem, size = 0x4, offset = 0x4, fixed_abs, tag = 'smem constant byte address 0x4 - core index']
  #allocation1 [shape = 'u32[72,128]{1,0:T(1,128)}', space=vmem, size = 0x9000, scoped, tag = 'internal scratch']
  #allocation2 [shape = 'bf16[16,16,128]{2,1,0:T(8,128)(2,1)}', space=vmem, size = 0x10000, scoped, tag = 'scratch operand']
  %s0 = inlined_call_operand.vmem [shape: bf16[2,1,18,18,4], index: 0, kind: input, shape index: {}]
  %s1 = inlined_call_operand.vmem [shape: bf16[128,128], index: 1, kind: input, shape index: {}]
  %s2 = inlined_call_operand.vmem [shape: f32[1,128], index: 2, kind: input, shape index: {}]
  %s3 = inlined_call_operand.vmem [shape: bf16[2,16,16,128], index: 3, kind: output, shape index: {}]
  %s4 = sld [smem:[#allocation0]]
  $region45: #{basic_conv2d.1} parent=0
    _
  %s6 = ssub.s32 1, %s4
  %s7 = scalar_select 0, %s6, %s4
  loop: start=0, step=1, limit=4
  $region2: #{basic_conv2d.1} parent=0 // loop_pre_header
    _
  $region3: #{basic_conv2d.1} parent=0 // loop_header
    %s9 = sphi 0, %s13
    %p10 = scmp.ge.s32.totalorder %s9, 4
    %s16 = sphi 0, %s35
    %s17 = sphi 0, %s31
    %s18 = sphi 0, %s27
    %s19 = sphi 0, %s16
    %s20 = sphi 0, %s17
    %s21 = sphi 0, %s18
    %s22 = sphi 0, %s19
    %s23 = sphi 0, %s20
    %s24 = sphi 0, %s21
    %s38 = sphi 0, %s40
    %s41 = sphi 0, %s38
    %s42 = sphi 0, %s41
    %s58 = sphi 0, %s42
    %s64 = sphi 0, %s66
    %s67 = sphi 0, %s64
    %s68 = sphi 0, %s67
    %s84 = sphi 0, %s68
    %s90 = sphi 0, %s92
    %s93 = sphi 0, %s90
    %s94 = sphi 0, %s93
    %s110 = sphi 0, %s94
    %s120 = sphi 0, %s122
    %s123 = sphi 0, %s120
    %s124 = sphi 0, %s123
    %s140 = sphi 0, %s124
  $region4: #{basic_conv2d.1} parent=0 // loop_header_branch
    %12 = sbr.rel (%p10) target = $region8
  $region5: #{basic_conv2d.1} parent=0 // loop_body
    %s14 = ssub.s32 %s9, 1
    %s15 = ssub.s32 %s9, 2
    %s25 = sadd.s32 1, %s18
    %p26 = scmp.ge.s32.totalorder %s25, 1
    %s27 = scalar_select %p26, 0, %s25
    %s28 = sadd.s32 1, %s17
    %s29 = scalar_select %p26, %s28, %s17
    %p30 = scmp.ge.s32.totalorder %s29, 1
    %s31 = scalar_select %p30, 0, %s29
    %s32 = sadd.s32 1, %s16
    %s33 = scalar_select %p30, %s32, %s16
    %p34 = scmp.ge.s32.totalorder %s33, 2
    %s35 = scalar_select %p34, 0, %s33
    %s36 = ssub.s32 %s16, %s35
    %p37 = scmp.eq.s32.totalorder %s36, 0
    %s39 = sadd.s32 %s38, 1
    %s40 = scalar_select %p37, %s38, %s39
    %p43 = pneg %p37
    %p44 = scmp.eq.s32.totalorder %s9, 1
    %p45 = por %p43, %p44
    %p46 = scmp.ne.s32.totalorder %s38, %s41
    %p47 = scmp.eq.s32.totalorder %s9, 0
    %p48 = por %p46, %p47
    %p49 = scmp.ne.s32.totalorder %s38, %s41
    %p50 = scmp.eq.s32.totalorder %s14, 1
    %p51 = por %p49, %p50
    %p52 = scmp.ne.s32.totalorder %s41, %s42
    %p53 = scmp.eq.s32.totalorder %s14, 0
    %p54 = por %p52, %p53
    %p55 = scmp.ne.s32.totalorder %s41, %s42
    %p56 = scmp.eq.s32.totalorder %s15, 1
    %p57 = por %p55, %p56
    %p59 = scmp.ne.s32.totalorder %s42, %s58
    %p60 = scmp.eq.s32.totalorder %s15, 0
    %p61 = por %p59, %p60
    %s62 = ssub.s32 %s18, %s27
    %p63 = scmp.eq.s32.totalorder %s62, 0
    %s65 = sadd.s32 %s64, 1
    %s66 = scalar_select %p63, %s64, %s65
    %p69 = pneg %p63
    %p70 = scmp.eq.s32.totalorder %s9, 1
    %p71 = por %p69, %p70
    %p72 = scmp.ne.s32.totalorder %s64, %s67
    %p73 = scmp.eq.s32.totalorder %s9, 0
    %p74 = por %p72, %p73
    %p75 = scmp.ne.s32.totalorder %s64, %s67
    %p76 = scmp.eq.s32.totalorder %s14, 1
    %p77 = por %p75, %p76
    %p78 = scmp.ne.s32.totalorder %s67, %s68
    %p79 = scmp.eq.s32.totalorder %s14, 0
    %p80 = por %p78, %p79
    %p81 = scmp.ne.s32.totalorder %s67, %s68
    %p82 = scmp.eq.s32.totalorder %s15, 1
    %p83 = por %p81, %p82
    %p85 = scmp.ne.s32.totalorder %s68, %s84
    %p86 = scmp.eq.s32.totalorder %s15, 0
    %p87 = por %p85, %p86
    %s88 = ssub.s32 %s18, %s27
    %p89 = scmp.eq.s32.totalorder %s88, 0
    %s91 = sadd.s32 %s90, 1
    %s92 = scalar_select %p89, %s90, %s91
    %p95 = pneg %p89
    %p96 = scmp.eq.s32.totalorder %s9, 1
    %p97 = por %p95, %p96
    %p98 = scmp.ne.s32.totalorder %s90, %s93
    %p99 = scmp.eq.s32.totalorder %s9, 0
    %p100 = por %p98, %p99
    %p101 = scmp.ne.s32.totalorder %s90, %s93
    %p102 = scmp.eq.s32.totalorder %s14, 1
    %p103 = por %p101, %p102
    %p104 = scmp.ne.s32.totalorder %s93, %s94
    %p105 = scmp.eq.s32.totalorder %s14, 0
    %p106 = por %p104, %p105
    %p107 = scmp.ne.s32.totalorder %s93, %s94
    %p108 = scmp.eq.s32.totalorder %s15, 1
    %p109 = por %p107, %p108
    %p111 = scmp.ne.s32.totalorder %s94, %s110
    %p112 = scmp.eq.s32.totalorder %s15, 0
    %p113 = por %p111, %p112
    %s114 = ssub.s32 %s16, %s35
    %s115 = ssub.s32 %s17, %s31
    %s116 = sor.u32 %s114, %s115
    %s117 = ssub.s32 %s18, %s27
    %s118 = sor.u32 %s116, %s117
    %p119 = scmp.eq.s32.totalorder %s118, 0
    %s121 = sadd.s32 %s120, 1
    %s122 = scalar_select %p119, %s120, %s121
    %p125 = pneg %p119
    %p126 = scmp.eq.s32.totalorder %s9, 1
    %p127 = por %p125, %p126
    %p128 = scmp.ne.s32.totalorder %s120, %s123
    %p129 = scmp.eq.s32.totalorder %s9, 0
    %p130 = por %p128, %p129
    %p131 = scmp.ne.s32.totalorder %s120, %s123
    %p132 = scmp.eq.s32.totalorder %s14, 1
    %p133 = por %p131, %p132
    %p134 = scmp.ne.s32.totalorder %s123, %s124
    %p135 = scmp.eq.s32.totalorder %s14, 0
    %p136 = por %p134, %p135
    %p137 = scmp.ne.s32.totalorder %s123, %s124
    %p138 = scmp.eq.s32.totalorder %s15, 1
    %p139 = por %p137, %p138
    %p141 = scmp.ne.s32.totalorder %s124, %s140
    %p142 = scmp.eq.s32.totalorder %s15, 0
    %p143 = por %p141, %p142
    %p144 = scmp.le.s32.totalorder 1, %s9
    %p145 = scmp.lt.s32.totalorder %s9, 3
    %p146 = pnand %p144, %p145
    %p147 = pneg %p146
    // Predicated region
    $region9: #{basic_conv2d.1} parent=5 // pred_check
      _
    $region10: #{basic_conv2d.1} parent=5 // pred_check_branch
      %149 = sbr.rel (%p146) target = $region12
    $region11: #{basic_conv2d.1} parent=5 // pred_region
      %s150 = ssub.s32 %s9, 1
      // Predicated region
      $region13: #{basic_conv2d.1} parent=11 // pred_check
        %p151 = pneg %p80
      $region14: #{basic_conv2d.1} parent=11 // pred_check_branch
        %153 = sbr.rel (%p151) target = $region16
      $region15: #{basic_conv2d.1} parent=11 // pred_region
        %p154 = scmp.lt.s32.totalorder %s21, 0
        %s155 = scalar_select %p154, %s21, 0
        %s156 = smul.addr %s155, 4
        %s157 = scalar_lea.vmem %s1, %s156
      $region16: #{basic_conv2d.1} parent=11 // pred_fallthru
        _
      // Predicated region
      $region17: #{basic_conv2d.1} parent=11 // pred_check
        %p158 = pneg %p106
      $region18: #{basic_conv2d.1} parent=11 // pred_check_branch
        %160 = sbr.rel (%p158) target = $region20
      $region19: #{basic_conv2d.1} parent=11 // pred_region
        %p161 = scmp.lt.s32.totalorder %s21, 0
        %s162 = scalar_select %p161, %s21, 0
        %s163 = scalar_lea.vmem %s2, %s162
      $region20: #{basic_conv2d.1} parent=11 // pred_fallthru
        _
    $region12: #{basic_conv2d.1} parent=5 // pred_fallthru
      _
    %p164 = scmp.lt.s32.totalorder %s9, 2
    // Predicated region
    $region21: #{basic_conv2d.1} parent=5 // pred_check
      %p165 = pneg %p164
    $region22: #{basic_conv2d.1} parent=5 // pred_check_branch
      %167 = sbr.rel (%p165) target = $region24
    $region23: #{basic_conv2d.1} parent=5 // pred_region
      // Predicated region
      $region25: #{basic_conv2d.1} parent=23 // pred_check
        %p168 = pneg %p48
      $region26: #{basic_conv2d.1} parent=23 // pred_check_branch
        %170 = sbr.rel (%p168) target = $region28
      $region27: #{basic_conv2d.1} parent=23 // pred_region
        %p171 = scmp.lt.s32.totalorder %s16, 1
        %s172 = scalar_select %p171, %s16, 1
        %s173 = smul.addr %s172, 54
        %s174 = smul.addr %s173, 4
        %s175 = scalar_lea.vmem %s0, %s174
      $region28: #{basic_conv2d.1} parent=23 // pred_fallthru
        _
    $region24: #{basic_conv2d.1} parent=5 // pred_fallthru
      _
    %p176 = scmp.le.s32.totalorder 1, %s9
    %p177 = scmp.lt.s32.totalorder %s9, 3
    %p178 = pnand %p176, %p177
    %p179 = pneg %p178
    // Predicated region
    $region29: #{basic_conv2d.1} parent=5 // pred_check
      _
    $region30: #{basic_conv2d.1} parent=5 // pred_check_branch
      %181 = sbr.rel (%p178) target = $region32
    $region31: #{basic_conv2d.1} parent=5 // pred_region
      %s182 = ssub.s32 %s9, 1
      %p183 = scmp.lt.s32.totalorder %s19, 1
      %s184 = scalar_select %p183, %s19, 1
      %s185 = smul.addr %s184, 54
      %s186 = smul.addr %s185, 4
      %s187 = scalar_lea.vmem %s0, %s186
      %p188 = pneg %p54
      %p189 = pneg %p51
      %p190 = scmp.lt.s32.totalorder %s21, 0
      %s191 = scalar_select %p190, %s21, 0
      %s192 = smul.addr %s191, 4
      %s193 = scalar_lea.vmem %s1, %s192
      %p194 = pneg %p80
      %p195 = pneg %p77
      %p196 = scmp.lt.s32.totalorder %s21, 0
      %s197 = scalar_select %p196, %s21, 0
      %s198 = scalar_lea.vmem %s2, %s197
      %p199 = pneg %p106
      %p200 = pneg %p103
      %p201 = pneg %p136
      %p202 = pneg %p133
      %s203 = smul.u32 16, %s20
      %p204 = scmp.lt.s32.totalorder %s19, 1
      %s205 = scalar_select %p204, %s19, 1
      %p206 = scmp.lt.s32.totalorder %s203, 15
      %s207 = scalar_select %p206, %s203, 15
      %p208 = scmp.lt.s32.totalorder %s21, 0
      %s209 = scalar_select %p208, %s21, 0
      %s210 = smul.addr %s207, 2
      %s211 = sadd.s32 %s209, %s210
      %s212 = smul.addr %s205, 32
      %s213 = sadd.s32 %s211, %s212
      %s214 = smul.addr %s213, 4
      %s215 = scalar_lea.vmem %s3, %s214
      %p216 = scmp.lt.s32.totalorder %s19, 1
      %s217 = scalar_select %p216, %s19, 1
      %s218 = smul.addr %s217, 54
      %s219 = smul.addr %s218, 4
      %s220 = scalar_lea.vmem %s0, %s219
      %p221 = scmp.lt.s32.totalorder %s21, 0
      %s222 = scalar_select %p221, %s21, 0
      %s223 = smul.addr %s222, 4
      %s224 = scalar_lea.vmem %s1, %s223
      %p225 = scmp.lt.s32.totalorder %s21, 0
      %s226 = scalar_select %p225, %s21, 0
      %s227 = scalar_lea.vmem %s2, %s226
      %s228 = smul.u32 16, %s20
      %p229 = scmp.lt.s32.totalorder %s19, 1
      %s230 = scalar_select %p229, %s19, 1
      %p231 = scmp.lt.s32.totalorder %s228, 15
      %s232 = scalar_select %p231, %s228, 15
      %p233 = scmp.lt.s32.totalorder %s21, 0
      %s234 = scalar_select %p233, %s21, 0
      %s235 = smul.addr %s232, 2
      %s236 = sadd.s32 %s234, %s235
      %s237 = smul.addr %s230, 32
      %s238 = sadd.s32 %s236, %s237
      %s239 = smul.addr %s238, 4
      %s240 = scalar_lea.vmem %s3, %s239
      %s241 = smul.u32 16, %s20
      %s243 = smul.u32 %s20, 16
      %vm244 = vcmask 1043744
      %245 = vst.msk [vmem:[#allocation2] sm:$0xf] %vm244, 0
      %246 = vst.msk [vmem:[#allocation2 + $0x4] sm:$0xf] %vm244, 0
      %247 = vst.msk [vmem:[#allocation2 + $0x8] sm:$0xf] %vm244, 0
      %248 = vst.msk [vmem:[#allocation2 + $0xc] sm:$0xf] %vm244, 0
      %249 = vst.msk [vmem:[#allocation2 + $0x10] sm:$0xf] %vm244, 0
      %250 = vst.msk [vmem:[#allocation2 + $0x14] sm:$0xf] %vm244, 0
      %251 = vst.msk [vmem:[#allocation2 + $0x18] sm:$0xf] %vm244, 0
      %252 = vst.msk [vmem:[#allocation2 + $0x1c] sm:$0xf] %vm244, 0
      %253 = vst.msk [vmem:[#allocation2 + $0x20] sm:$0xf] %vm244, 0
      %254 = vst.msk [vmem:[#allocation2 + $0x24] sm:$0xf] %vm244, 0
      %255 = vst.msk [vmem:[#allocation2 + $0x28] sm:$0xf] %vm244, 0
      %256 = vst.msk [vmem:[#allocation2 + $0x2c] sm:$0xf] %vm244, 0
      %257 = vst.msk [vmem:[#allocation2 + $0x30] sm:$0xf] %vm244, 0
      %258 = vst.msk [vmem:[#allocation2 + $0x34] sm:$0xf] %vm244, 0
      %259 = vst.msk [vmem:[#allocation2 + $0x38] sm:$0xf] %vm244, 0
      %260 = vst.msk [vmem:[#allocation2 + $0x3c] sm:$0xf] %vm244, 0
      %261 = vst.msk [vmem:[#allocation2 + $0x40] sm:$0xf] %vm244, 0
      %262 = vst.msk [vmem:[#allocation2 + $0x44] sm:$0xf] %vm244, 0
      %263 = vst.msk [vmem:[#allocation2 + $0x48] sm:$0xf] %vm244, 0
      %264 = vst.msk [vmem:[#allocation2 + $0x4c] sm:$0xf] %vm244, 0
      %265 = vst.msk [vmem:[#allocation2 + $0x50] sm:$0xf] %vm244, 0
      %266 = vst.msk [vmem:[#allocation2 + $0x54] sm:$0xf] %vm244, 0
      %267 = vst.msk [vmem:[#allocation2 + $0x58] sm:$0xf] %vm244, 0
      %268 = vst.msk [vmem:[#allocation2 + $0x5c] sm:$0xf] %vm244, 0
      %269 = vst.msk [vmem:[#allocation2 + $0x60] sm:$0xf] %vm244, 0
      %270 = vst.msk [vmem:[#allocation2 + $0x64] sm:$0xf] %vm244, 0
      %271 = vst.msk [vmem:[#allocation2 + $0x68] sm:$0xf] %vm244, 0
      %272 = vst.msk [vmem:[#allocation2 + $0x6c] sm:$0xf] %vm244, 0
      %273 = vst.msk [vmem:[#allocation2 + $0x70] sm:$0xf] %vm244, 0
      %274 = vst.msk [vmem:[#allocation2 + $0x74] sm:$0xf] %vm244, 0
      %275 = vst.msk [vmem:[#allocation2 + $0x78] sm:$0xf] %vm244, 0
      %276 = vst.msk [vmem:[#allocation2 + $0x7c] sm:$0xf] %vm244, 0
      %s277 = smul.u32 %s243, 3
      %s278 = smul.addr %s277, 4
      %s279 = scalar_lea.vmem %s220, %s278
      %v280 = vld [vmem:[%s279] sm:$0xf]
      %v281 = vld [vmem:[%s279 + $0x4] sm:$0xf]
      %v282 = vld [vmem:[%s279 + $0xc] sm:$0xf]
      %v283 = vld [vmem:[%s279 + $0x10] sm:$0xf]
      %v284 = vld [vmem:[%s279 + $0x18] sm:$0xf]
      %v285 = vld [vmem:[%s279 + $0x1c] sm:$0xf]
      %v286 = vld [vmem:[%s279 + $0x24] sm:$0xf]
      %v287 = vld [vmem:[%s279 + $0x28] sm:$0xf]
      %v288 = vld [vmem:[%s279 + $0x30] sm:$0xf]
      %v289 = vld [vmem:[%s279 + $0x34] sm:$0xf]
      %v290 = vld [vmem:[%s279 + $0x3c] sm:$0xf]
      %v291 = vld [vmem:[%s279 + $0x40] sm:$0xf]
      %v292 = vld [vmem:[%s279 + $0x48] sm:$0xf]
      %v293 = vld [vmem:[%s279 + $0x4c] sm:$0xf]
      %v294 = vld [vmem:[%s279 + $0x54] sm:$0xf]
      %v295 = vld [vmem:[%s279 + $0x58] sm:$0xf]
      %v296 = vld [vmem:[%s279 + $0x60] sm:$0xf]
      %v297 = vld [vmem:[%s279 + $0x64] sm:$0xf]
      %v298 = vld [vmem:[%s279 + $0x6c] sm:$0xf]
      %v299 = vld [vmem:[%s279 + $0x70] sm:$0xf]
      %v300 = vld [vmem:[%s279 + $0x78] sm:$0xf]
      %v301 = vld [vmem:[%s279 + $0x7c] sm:$0xf]
      %v302 = vld [vmem:[%s279 + $0x84] sm:$0xf]
      %v303 = vld [vmem:[%s279 + $0x88] sm:$0xf]
      %v304 = vld [vmem:[%s279 + $0x90] sm:$0xf]
      %v305 = vld [vmem:[%s279 + $0x94] sm:$0xf]
      %v306 = vld [vmem:[%s279 + $0x9c] sm:$0xf]
      %v307 = vld [vmem:[%s279 + $0xa0] sm:$0xf]
      %v308 = vld [vmem:[%s279 + $0xa8] sm:$0xf]
      %v309 = vld [vmem:[%s279 + $0xac] sm:$0xf]
      %v310 = vld [vmem:[%s279 + $0xb4] sm:$0xf]
      %v311 = vld [vmem:[%s279 + $0xb8] sm:$0xf]
      %vm312 = vcmask 27648
      %313 = vst.msk [vmem:[#allocation2] sm:$0xf] %vm312, %v280
      %314 = vst.msk [vmem:[#allocation2 + $0x4] sm:$0xf] %vm312, %v281
      %315 = vst.msk [vmem:[#allocation2 + $0x8] sm:$0xf] %vm312, %v282
      %316 = vst.msk [vmem:[#allocation2 + $0xc] sm:$0xf] %vm312, %v283
      %317 = vst.msk [vmem:[#allocation2 + $0x10] sm:$0xf] %vm312, %v284
      %318 = vst.msk [vmem:[#allocation2 + $0x14] sm:$0xf] %vm312, %v285
      %319 = vst.msk [vmem:[#allocation2 + $0x18] sm:$0xf] %vm312, %v286
      %320 = vst.msk [vmem:[#allocation2 + $0x1c] sm:$0xf] %vm312, %v287
      %321 = vst.msk [vmem:[#allocation2 + $0x20] sm:$0xf] %vm312, %v288
      %322 = vst.msk [vmem:[#allocation2 + $0x24] sm:$0xf] %vm312, %v289
      %323 = vst.msk [vmem:[#allocation2 + $0x28] sm:$0xf] %vm312, %v290
      %324 = vst.msk [vmem:[#allocation2 + $0x2c] sm:$0xf] %vm312, %v291
      %325 = vst.msk [vmem:[#allocation2 + $0x30] sm:$0xf] %vm312, %v292
      %326 = vst.msk [vmem:[#allocation2 + $0x34] sm:$0xf] %vm312, %v293
      %327 = vst.msk [vmem:[#allocation2 + $0x38] sm:$0xf] %vm312, %v294
      %328 = vst.msk [vmem:[#allocation2 + $0x3c] sm:$0xf] %vm312, %v295
      %329 = vst.msk [vmem:[#allocation2 + $0x40] sm:$0xf] %vm312, %v296
      %330 = vst.msk [vmem:[#allocation2 + $0x44] sm:$0xf] %vm312, %v297
      %331 = vst.msk [vmem:[#allocation2 + $0x48] sm:$0xf] %vm312, %v298
      %332 = vst.msk [vmem:[#allocation2 + $0x4c] sm:$0xf] %vm312, %v299
      %333 = vst.msk [vmem:[#allocation2 + $0x50] sm:$0xf] %vm312, %v300
      %334 = vst.msk [vmem:[#allocation2 + $0x54] sm:$0xf] %vm312, %v301
      %335 = vst.msk [vmem:[#allocation2 + $0x58] sm:$0xf] %vm312, %v302
      %336 = vst.msk [vmem:[#allocation2 + $0x5c] sm:$0xf] %vm312, %v303
      %337 = vst.msk [vmem:[#allocation2 + $0x60] sm:$0xf] %vm312, %v304
      %338 = vst.msk [vmem:[#allocation2 + $0x64] sm:$0xf] %vm312, %v305
      %339 = vst.msk [vmem:[#allocation2 + $0x68] sm:$0xf] %vm312, %v306
      %340 = vst.msk [vmem:[#allocation2 + $0x6c] sm:$0xf] %vm312, %v307
      %341 = vst.msk [vmem:[#allocation2 + $0x70] sm:$0xf] %vm312, %v308
      %342 = vst.msk [vmem:[#allocation2 + $0x74] sm:$0xf] %vm312, %v309
      %343 = vst.msk [vmem:[#allocation2 + $0x78] sm:$0xf] %vm312, %v310
      %344 = vst.msk [vmem:[#allocation2 + $0x7c] sm:$0xf] %vm312, %v311
      %v345 = vld [vmem:[%s279] sm:$0xf]
      %v346 = vld [vmem:[%s279 + $0x4] sm:$0xf]
      %v347 = vld [vmem:[%s279 + $0x8] sm:$0x1]
      %v348 = vld [vmem:[%s279 + $0xc] sm:$0xf]
      %v349 = vld [vmem:[%s279 + $0x10] sm:$0xf]
      %v350 = vld [vmem:[%s279 + $0x14] sm:$0x1]
      %v351 = vld [vmem:[%s279 + $0x18] sm:$0xf]
      %v352 = vld [vmem:[%s279 + $0x1c] sm:$0xf]
      %v353 = vld [vmem:[%s279 + $0x20] sm:$0x1]
      %v354 = vld [vmem:[%s279 + $0x24] sm:$0xf]
      %v355 = vld [vmem:[%s279 + $0x28] sm:$0xf]
      %v356 = vld [vmem:[%s279 + $0x2c] sm:$0x1]
      %v357 = vld [vmem:[%s279 + $0x30] sm:$0xf]
      %v358 = vld [vmem:[%s279 + $0x34] sm:$0xf]
      %v359 = vld [vmem:[%s279 + $0x38] sm:$0x1]
      %v360 = vld [vmem:[%s279 + $0x3c] sm:$0xf]
      %v361 = vld [vmem:[%s279 + $0x40] sm:$0xf]
      %v362 = vld [vmem:[%s279 + $0x44] sm:$0x1]
      %v363 = vld [vmem:[%s279 + $0x48] sm:$0xf]
      %v364 = vld [vmem:[%s279 + $0x4c] sm:$0xf]
      %v365 = vld [vmem:[%s279 + $0x50] sm:$0x1]
      %v366 = vld [vmem:[%s279 + $0x54] sm:$0xf]
      %v367 = vld [vmem:[%s279 + $0x58] sm:$0xf]
      %v368 = vld [vmem:[%s279 + $0x5c] sm:$0x1]
      %v369 = vld [vmem:[%s279 + $0x60] sm:$0xf]
      %v370 = vld [vmem:[%s279 + $0x64] sm:$0xf]
      %v371 = vld [vmem:[%s279 + $0x68] sm:$0x1]
      %v372 = vld [vmem:[%s279 + $0x6c] sm:$0xf]
      %v373 = vld [vmem:[%s279 + $0x70] sm:$0xf]
      %v374 = vld [vmem:[%s279 + $0x74] sm:$0x1]
      %v375 = vld [vmem:[%s279 + $0x78] sm:$0xf]
      %v376 = vld [vmem:[%s279 + $0x7c] sm:$0xf]
      %v377 = vld [vmem:[%s279 + $0x80] sm:$0x1]
      %v378 = vld [vmem:[%s279 + $0x84] sm:$0xf]
      %v379 = vld [vmem:[%s279 + $0x88] sm:$0xf]
      %v380 = vld [vmem:[%s279 + $0x8c] sm:$0x1]
      %v381 = vld [vmem:[%s279 + $0x90] sm:$0xf]
      %v382 = vld [vmem:[%s279 + $0x94] sm:$0xf]
      %v383 = vld [vmem:[%s279 + $0x98] sm:$0x1]
      %v384 = vld [vmem:[%s279 + $0x9c] sm:$0xf]
      %v385 = vld [vmem:[%s279 + $0xa0] sm:$0xf]
      %v386 = vld [vmem:[%s279 + $0xa4] sm:$0x1]
      %v387 = vld [vmem:[%s279 + $0xa8] sm:$0xf]
      %v388 = vld [vmem:[%s279 + $0xac] sm:$0xf]
      %v389 = vld [vmem:[%s279 + $0xb0] sm:$0x1]
      %v390 = vld [vmem:[%s279 + $0xb4] sm:$0xf]
      %v391 = vld [vmem:[%s279 + $0xb8] sm:$0xf]
      %v392 = vld [vmem:[%s279 + $0xbc] sm:$0x1]
      %vm393 = vsmask.f32 3328
      %vm394 = vsmask.f32 7440
      %vm395 = vmor %vm393, %vm394
      %v397 = vshrl.u32 %v345, 16
      %v399 = vrot.slane %v397, 4
      %v400 = vshll.u32 %v345, 16
      %v402 = vrot.slane %v400, 5
      %v403 = vor.u32 %v399, %v402
      %v404 = vrot.slane %v403, 4
      %v406 = vshll.u32 %v346, 16
      %v408 = vrot.slane %v406, 5
      %v409 = vsel %vm395, %v404, %v408
      %v410 = vshrl.u32 %v346, 16
      %v412 = vrot.slane %v410, 4
      %v413 = vor.u32 %v412, %v408
      %v414 = vrot.slane %v413, 4
      %v416 = vshll.u32 %v347, 16
      %v418 = vrot.slane %v416, 5
      %v419 = vsel %vm395, %v414, %v418
      %v421 = vshrl.u32 %v348, 16
      %v423 = vrot.slane %v421, 4
      %v424 = vshll.u32 %v348, 16
      %v426 = vrot.slane %v424, 5
      %v427 = vor.u32 %v423, %v426
      %v428 = vrot.slane %v427, 4
      %v430 = vshll.u32 %v349, 16
      %v432 = vrot.slane %v430, 5
      %v433 = vsel %vm395, %v428, %v432
      %v434 = vshrl.u32 %v349, 16
      %v436 = vrot.slane %v434, 4
      %v437 = vor.u32 %v436, %v432
      %v438 = vrot.slane %v437, 4
      %v440 = vshll.u32 %v350, 16
      %v442 = vrot.slane %v440, 5
      %v443 = vsel %vm395, %v438, %v442
      %v445 = vshrl.u32 %v351, 16
      %v447 = vrot.slane %v445, 4
      %v448 = vshll.u32 %v351, 16
      %v450 = vrot.slane %v448, 5
      %v451 = vor.u32 %v447, %v450
      %v452 = vrot.slane %v451, 4
      %v454 = vshll.u32 %v352, 16
      %v456 = vrot.slane %v454, 5
      %v457 = vsel %vm395, %v452, %v456
      %v458 = vshrl.u32 %v352, 16
      %v460 = vrot.slane %v458, 4
      %v461 = vor.u32 %v460, %v456
      %v462 = vrot.slane %v461, 4
      %v464 = vshll.u32 %v353, 16
      %v466 = vrot.slane %v464, 5
      %v467 = vsel %vm395, %v462, %v466
      %v469 = vshrl.u32 %v354, 16
      %v471 = vrot.slane %v469, 4
      %v472 = vshll.u32 %v354, 16
      %v474 = vrot.slane %v472, 5
      %v475 = vor.u32 %v471, %v474
      %v476 = vrot.slane %v475, 4
      %v478 = vshll.u32 %v355, 16
      %v480 = vrot.slane %v478, 5
      %v481 = vsel %vm395, %v476, %v480
      %v482 = vshrl.u32 %v355, 16
      %v484 = vrot.slane %v482, 4
      %v485 = vor.u32 %v484, %v480
      %v486 = vrot.slane %v485, 4
      %v488 = vshll.u32 %v356, 16
      %v490 = vrot.slane %v488, 5
      %v491 = vsel %vm395, %v486, %v490
      %v493 = vshrl.u32 %v357, 16
      %v495 = vrot.slane %v493, 4
      %v496 = vshll.u32 %v357, 16
      %v498 = vrot.slane %v496, 5
      %v499 = vor.u32 %v495, %v498
      %v500 = vrot.slane %v499, 4
      %v502 = vshll.u32 %v358, 16
      %v504 = vrot.slane %v502, 5
      %v505 = vsel %vm395, %v500, %v504
      %v506 = vshrl.u32 %v358, 16
      %v508 = vrot.slane %v506, 4
      %v509 = vor.u32 %v508, %v504
      %v510 = vrot.slane %v509, 4
      %v512 = vshll.u32 %v359, 16
      %v514 = vrot.slane %v512, 5
      %v515 = vsel %vm395, %v510, %v514
      %v517 = vshrl.u32 %v360, 16
      %v519 = vrot.slane %v517, 4
      %v520 = vshll.u32 %v360, 16
      %v522 = vrot.slane %v520, 5
      %v523 = vor.u32 %v519, %v522
      %v524 = vrot.slane %v523, 4
      %v526 = vshll.u32 %v361, 16
      %v528 = vrot.slane %v526, 5
      %v529 = vsel %vm395, %v524, %v528
      %v530 = vshrl.u32 %v361, 16
      %v532 = vrot.slane %v530, 4
      %v533 = vor.u32 %v532, %v528
      %v534 = vrot.slane %v533, 4
      %v536 = vshll.u32 %v362, 16
      %v538 = vrot.slane %v536, 5
      %v539 = vsel %vm395, %v534, %v538
      %v541 = vshrl.u32 %v363, 16
      %v543 = vrot.slane %v541, 4
      %v544 = vshll.u32 %v363, 16
      %v546 = vrot.slane %v544, 5
      %v547 = vor.u32 %v543, %v546
      %v548 = vrot.slane %v547, 4
      %v550 = vshll.u32 %v364, 16
      %v552 = vrot.slane %v550, 5
      %v553 = vsel %vm395, %v548, %v552
      %v554 = vshrl.u32 %v364, 16
      %v556 = vrot.slane %v554, 4
      %v557 = vor.u32 %v556, %v552
      %v558 = vrot.slane %v557, 4
      %v560 = vshll.u32 %v365, 16
      %v562 = vrot.slane %v560, 5
      %v563 = vsel %vm395, %v558, %v562
      %v565 = vshrl.u32 %v366, 16
      %v567 = vrot.slane %v565, 4
      %v568 = vshll.u32 %v366, 16
      %v570 = vrot.slane %v568, 5
      %v571 = vor.u32 %v567, %v570
      %v572 = vrot.slane %v571, 4
      %v574 = vshll.u32 %v367, 16
      %v576 = vrot.slane %v574, 5
      %v577 = vsel %vm395, %v572, %v576
      %v578 = vshrl.u32 %v367, 16
      %v580 = vrot.slane %v578, 4
      %v581 = vor.u32 %v580, %v576
      %v582 = vrot.slane %v581, 4
      %v584 = vshll.u32 %v368, 16
      %v586 = vrot.slane %v584, 5
      %v587 = vsel %vm395, %v582, %v586
      %v589 = vshrl.u32 %v369, 16
      %v591 = vrot.slane %v589, 4
      %v592 = vshll.u32 %v369, 16
      %v594 = vrot.slane %v592, 5
      %v595 = vor.u32 %v591, %v594
      %v596 = vrot.slane %v595, 4
      %v598 = vshll.u32 %v370, 16
      %v600 = vrot.slane %v598, 5
      %v601 = vsel %vm395, %v596, %v600
      %v602 = vshrl.u32 %v370, 16
      %v604 = vrot.slane %v602, 4
      %v605 = vor.u32 %v604, %v600
      %v606 = vrot.slane %v605, 4
      %v608 = vshll.u32 %v371, 16
      %v610 = vrot.slane %v608, 5
      %v611 = vsel %vm395, %v606, %v610
      %v613 = vshrl.u32 %v372, 16
      %v615 = vrot.slane %v613, 4
      %v616 = vshll.u32 %v372, 16
      %v618 = vrot.slane %v616, 5
      %v619 = vor.u32 %v615, %v618
      %v620 = vrot.slane %v619, 4
      %v622 = vshll.u32 %v373, 16
      %v624 = vrot.slane %v622, 5
      %v625 = vsel %vm395, %v620, %v624
      %v626 = vshrl.u32 %v373, 16
      %v628 = vrot.slane %v626, 4
      %v629 = vor.u32 %v628, %v624
      %v630 = vrot.slane %v629, 4
      %v632 = vshll.u32 %v374, 16
      %v634 = vrot.slane %v632, 5
      %v635 = vsel %vm395, %v630, %v634
      %v637 = vshrl.u32 %v375, 16
      %v639 = vrot.slane %v637, 4
      %v640 = vshll.u32 %v375, 16
      %v642 = vrot.slane %v640, 5
      %v643 = vor.u32 %v639, %v642
      %v644 = vrot.slane %v643, 4
      %v646 = vshll.u32 %v376, 16
      %v648 = vrot.slane %v646, 5
      %v649 = vsel %vm395, %v644, %v648
      %v650 = vshrl.u32 %v376, 16
      %v652 = vrot.slane %v650, 4
      %v653 = vor.u32 %v652, %v648
      %v654 = vrot.slane %v653, 4
      %v656 = vshll.u32 %v377, 16
      %v658 = vrot.slane %v656, 5
      %v659 = vsel %vm395, %v654, %v658
      %v661 = vshrl.u32 %v378, 16
      %v663 = vrot.slane %v661, 4
      %v664 = vshll.u32 %v378, 16
      %v666 = vrot.slane %v664, 5
      %v667 = vor.u32 %v663, %v666
      %v668 = vrot.slane %v667, 4
      %v670 = vshll.u32 %v379, 16
      %v672 = vrot.slane %v670, 5
      %v673 = vsel %vm395, %v668, %v672
      %v674 = vshrl.u32 %v379, 16
      %v676 = vrot.slane %v674, 4
      %v677 = vor.u32 %v676, %v672
      %v678 = vrot.slane %v677, 4
      %v680 = vshll.u32 %v380, 16
      %v682 = vrot.slane %v680, 5
      %v683 = vsel %vm395, %v678, %v682
      %v685 = vshrl.u32 %v381, 16
      %v687 = vrot.slane %v685, 4
      %v688 = vshll.u32 %v381, 16
      %v690 = vrot.slane %v688, 5
      %v691 = vor.u32 %v687, %v690
      %v692 = vrot.slane %v691, 4
      %v694 = vshll.u32 %v382, 16
      %v696 = vrot.slane %v694, 5
      %v697 = vsel %vm395, %v692, %v696
      %v698 = vshrl.u32 %v382, 16
      %v700 = vrot.slane %v698, 4
      %v701 = vor.u32 %v700, %v696
      %v702 = vrot.slane %v701, 4
      %v704 = vshll.u32 %v383, 16
      %v706 = vrot.slane %v704, 5
      %v707 = vsel %vm395, %v702, %v706
      %v709 = vshrl.u32 %v384, 16
      %v711 = vrot.slane %v709, 4
      %v712 = vshll.u32 %v384, 16
      %v714 = vrot.slane %v712, 5
      %v715 = vor.u32 %v711, %v714
      %v716 = vrot.slane %v715, 4
      %v718 = vshll.u32 %v385, 16
      %v720 = vrot.slane %v718, 5
      %v721 = vsel %vm395, %v716, %v720
      %v722 = vshrl.u32 %v385, 16
      %v724 = vrot.slane %v722, 4
      %v725 = vor.u32 %v724, %v720
      %v726 = vrot.slane %v725, 4
      %v728 = vshll.u32 %v386, 16
      %v730 = vrot.slane %v728, 5
      %v731 = vsel %vm395, %v726, %v730
      %v733 = vshrl.u32 %v387, 16
      %v735 = vrot.slane %v733, 4
      %v736 = vshll.u32 %v387, 16
      %v738 = vrot.slane %v736, 5
      %v739 = vor.u32 %v735, %v738
      %v740 = vrot.slane %v739, 4
      %v742 = vshll.u32 %v388, 16
      %v744 = vrot.slane %v742, 5
      %v745 = vsel %vm395, %v740, %v744
      %v746 = vshrl.u32 %v388, 16
      %v748 = vrot.slane %v746, 4
      %v749 = vor.u32 %v748, %v744
      %v750 = vrot.slane %v749, 4
      %v752 = vshll.u32 %v389, 16
      %v754 = vrot.slane %v752, 5
      %v755 = vsel %vm395, %v750, %v754
      %v757 = vshrl.u32 %v390, 16
      %v759 = vrot.slane %v757, 4
      %v760 = vshll.u32 %v390, 16
      %v762 = vrot.slane %v760, 5
      %v763 = vor.u32 %v759, %v762
      %v764 = vrot.slane %v763, 4
      %v766 = vshll.u32 %v391, 16
      %v768 = vrot.slane %v766, 5
      %v769 = vsel %vm395, %v764, %v768
      %v770 = vshrl.u32 %v391, 16
      %v772 = vrot.slane %v770, 4
      %v773 = vor.u32 %v772, %v768
      %v774 = vrot.slane %v773, 4
      %v776 = vshll.u32 %v392, 16
      %v778 = vrot.slane %v776, 5
      %v779 = vsel %vm395, %v774, %v778
      %780 = vrot.lane.b32.xlu0 %v409, 4
      %v781 = vpop.permute.xlu0 %780
      %782 = vrot.lane.b32.xlu0 %v419, 4
      %v783 = vpop.permute.xlu0 %782
      %784 = vrot.lane.b32.xlu0 %v433, 4
      %v785 = vpop.permute.xlu0 %784
      %786 = vrot.lane.b32.xlu0 %v443, 4
      %v787 = vpop.permute.xlu0 %786
      %788 = vrot.lane.b32.xlu0 %v457, 4
      %v789 = vpop.permute.xlu0 %788
      %790 = vrot.lane.b32.xlu0 %v467, 4
      %v791 = vpop.permute.xlu0 %790
      %792 = vrot.lane.b32.xlu0 %v481, 4
      %v793 = vpop.permute.xlu0 %792
      %794 = vrot.lane.b32.xlu0 %v491, 4
      %v795 = vpop.permute.xlu0 %794
      %796 = vrot.lane.b32.xlu0 %v505, 4
      %v797 = vpop.permute.xlu0 %796
      %798 = vrot.lane.b32.xlu0 %v515, 4
      %v799 = vpop.permute.xlu0 %798
      %800 = vrot.lane.b32.xlu0 %v529, 4
      %v801 = vpop.permute.xlu0 %800
      %802 = vrot.lane.b32.xlu0 %v539, 4
      %v803 = vpop.permute.xlu0 %802
      %804 = vrot.lane.b32.xlu0 %v553, 4
      %v805 = vpop.permute.xlu0 %804
      %806 = vrot.lane.b32.xlu0 %v563, 4
      %v807 = vpop.permute.xlu0 %806
      %808 = vrot.lane.b32.xlu0 %v577, 4
      %v809 = vpop.permute.xlu0 %808
      %810 = vrot.lane.b32.xlu0 %v587, 4
      %v811 = vpop.permute.xlu0 %810
      %812 = vrot.lane.b32.xlu0 %v601, 4
      %v813 = vpop.permute.xlu0 %812
      %814 = vrot.lane.b32.xlu0 %v611, 4
      %v815 = vpop.permute.xlu0 %814
      %816 = vrot.lane.b32.xlu0 %v625, 4
      %v817 = vpop.permute.xlu0 %816
      %818 = vrot.lane.b32.xlu0 %v635, 4
      %v819 = vpop.permute.xlu0 %818
      %820 = vrot.lane.b32.xlu0 %v649, 4
      %v821 = vpop.permute.xlu0 %820
      %822 = vrot.lane.b32.xlu0 %v659, 4
      %v823 = vpop.permute.xlu0 %822
      %824 = vrot.lane.b32.xlu0 %v673, 4
      %v825 = vpop.permute.xlu0 %824
      %826 = vrot.lane.b32.xlu0 %v683, 4
      %v827 = vpop.permute.xlu0 %826
      %828 = vrot.lane.b32.xlu0 %v697, 4
      %v829 = vpop.permute.xlu0 %828
      %830 = vrot.lane.b32.xlu0 %v707, 4
      %v831 = vpop.permute.xlu0 %830
      %832 = vrot.lane.b32.xlu0 %v721, 4
      %v833 = vpop.permute.xlu0 %832
      %834 = vrot.lane.b32.xlu0 %v731, 4
      %v835 = vpop.permute.xlu0 %834
      %836 = vrot.lane.b32.xlu0 %v745, 4
      %v837 = vpop.permute.xlu0 %836
      %838 = vrot.lane.b32.xlu0 %v755, 4
      %v839 = vpop.permute.xlu0 %838
      %840 = vrot.lane.b32.xlu0 %v769, 4
      %v841 = vpop.permute.xlu0 %840
      %842 = vrot.lane.b32.xlu0 %v779, 4
      %v843 = vpop.permute.xlu0 %842
      %vm876 = vcmask 60448
      %877 = vst.msk [vmem:[#allocation2] sm:$0xf] %vm876, %v781
      %878 = vst.msk [vmem:[#allocation2 + $0x4] sm:$0xf] %vm876, %v783
      %879 = vst.msk [vmem:[#allocation2 + $0x8] sm:$0xf] %vm876, %v785
      %880 = vst.msk [vmem:[#allocation2 + $0xc] sm:$0xf] %vm876, %v787
      %881 = vst.msk [vmem:[#allocation2 + $0x10] sm:$0xf] %vm876, %v789
      %882 = vst.msk [vmem:[#allocation2 + $0x14] sm:$0xf] %vm876, %v791
      %883 = vst.msk [vmem:[#allocation2 + $0x18] sm:$0xf] %vm876, %v793
      %884 = vst.msk [vmem:[#allocation2 + $0x1c] sm:$0xf] %vm876, %v795
      %885 = vst.msk [vmem:[#allocation2 + $0x20] sm:$0xf] %vm876, %v797
      %886 = vst.msk [vmem:[#allocation2 + $0x24] sm:$0xf] %vm876, %v799
      %887 = vst.msk [vmem:[#allocation2 + $0x28] sm:$0xf] %vm876, %v801
      %888 = vst.msk [vmem:[#allocation2 + $0x2c] sm:$0xf] %vm876, %v803
      %889 = vst.msk [vmem:[#allocation2 + $0x30] sm:$0xf] %vm876, %v805
      %890 = vst.msk [vmem:[#allocation2 + $0x34] sm:$0xf] %vm876, %v807
      %891 = vst.msk [vmem:[#allocation2 + $0x38] sm:$0xf] %vm876, %v809
      %892 = vst.msk [vmem:[#allocation2 + $0x3c] sm:$0xf] %vm876, %v811
      %893 = vst.msk [vmem:[#allocation2 + $0x40] sm:$0xf] %vm876, %v813
      %894 = vst.msk [vmem:[#allocation2 + $0x44] sm:$0xf] %vm876, %v815
      %895 = vst.msk [vmem:[#allocation2 + $0x48] sm:$0xf] %vm876, %v817
      %896 = vst.msk [vmem:[#allocation2 + $0x4c] sm:$0xf] %vm876, %v819
      %897 = vst.msk [vmem:[#allocation2 + $0x50] sm:$0xf] %vm876, %v821
      %898 = vst.msk [vmem:[#allocation2 + $0x54] sm:$0xf] %vm876, %v823
      %899 = vst.msk [vmem:[#allocation2 + $0x58] sm:$0xf] %vm876, %v825
      %900 = vst.msk [vmem:[#allocation2 + $0x5c] sm:$0xf] %vm876, %v827
      %901 = vst.msk [vmem:[#allocation2 + $0x60] sm:$0xf] %vm876, %v829
      %902 = vst.msk [vmem:[#allocation2 + $0x64] sm:$0xf] %vm876, %v831
      %903 = vst.msk [vmem:[#allocation2 + $0x68] sm:$0xf] %vm876, %v833
      %904 = vst.msk [vmem:[#allocation2 + $0x6c] sm:$0xf] %vm876, %v835
      %905 = vst.msk [vmem:[#allocation2 + $0x70] sm:$0xf] %vm876, %v837
      %906 = vst.msk [vmem:[#allocation2 + $0x74] sm:$0xf] %vm876, %v839
      %907 = vst.msk [vmem:[#allocation2 + $0x78] sm:$0xf] %vm876, %v841
      %908 = vst.msk [vmem:[#allocation2 + $0x7c] sm:$0xf] %vm876, %v843
      %v909 = vld [vmem:[%s279] sm:$0xe]
      %v910 = vld [vmem:[%s279 + $0x4] sm:$0xf]
      %v911 = vld [vmem:[%s279 + $0x8] sm:$0x1]
      %v912 = vld [vmem:[%s279 + $0xc] sm:$0xe]
      %v913 = vld [vmem:[%s279 + $0x10] sm:$0xf]
      %v914 = vld [vmem:[%s279 + $0x14] sm:$0x1]
      %v915 = vld [vmem:[%s279 + $0x18] sm:$0xe]
      %v916 = vld [vmem:[%s279 + $0x1c] sm:$0xf]
      %v917 = vld [vmem:[%s279 + $0x20] sm:$0x1]
      %v918 = vld [vmem:[%s279 + $0x24] sm:$0xe]
      %v919 = vld [vmem:[%s279 + $0x28] sm:$0xf]
      %v920 = vld [vmem:[%s279 + $0x2c] sm:$0x1]
      %v921 = vld [vmem:[%s279 + $0x30] sm:$0xe]
      %v922 = vld [vmem:[%s279 + $0x34] sm:$0xf]
      %v923 = vld [vmem:[%s279 + $0x38] sm:$0x1]
      %v924 = vld [vmem:[%s279 + $0x3c] sm:$0xe]
      %v925 = vld [vmem:[%s279 + $0x40] sm:$0xf]
      %v926 = vld [vmem:[%s279 + $0x44] sm:$0x1]
      %v927 = vld [vmem:[%s279 + $0x48] sm:$0xe]
      %v928 = vld [vmem:[%s279 + $0x4c] sm:$0xf]
      %v929 = vld [vmem:[%s279 + $0x50] sm:$0x1]
      %v930 = vld [vmem:[%s279 + $0x54] sm:$0xe]
      %v931 = vld [vmem:[%s279 + $0x58] sm:$0xf]
      %v932 = vld [vmem:[%s279 + $0x5c] sm:$0x1]
      %v933 = vld [vmem:[%s279 + $0x60] sm:$0xe]
      %v934 = vld [vmem:[%s279 + $0x64] sm:$0xf]
      %v935 = vld [vmem:[%s279 + $0x68] sm:$0x1]
      %v936 = vld [vmem:[%s279 + $0x6c] sm:$0xe]
      %v937 = vld [vmem:[%s279 + $0x70] sm:$0xf]
      %v938 = vld [vmem:[%s279 + $0x74] sm:$0x1]
      %v939 = vld [vmem:[%s279 + $0x78] sm:$0xe]
      %v940 = vld [vmem:[%s279 + $0x7c] sm:$0xf]
      %v941 = vld [vmem:[%s279 + $0x80] sm:$0x1]
      %v942 = vld [vmem:[%s279 + $0x84] sm:$0xe]
      %v943 = vld [vmem:[%s279 + $0x88] sm:$0xf]
      %v944 = vld [vmem:[%s279 + $0x8c] sm:$0x1]
      %v945 = vld [vmem:[%s279 + $0x90] sm:$0xe]
      %v946 = vld [vmem:[%s279 + $0x94] sm:$0xf]
      %v947 = vld [vmem:[%s279 + $0x98] sm:$0x1]
      %v948 = vld [vmem:[%s279 + $0x9c] sm:$0xe]
      %v949 = vld [vmem:[%s279 + $0xa0] sm:$0xf]
      %v950 = vld [vmem:[%s279 + $0xa4] sm:$0x1]
      %v951 = vld [vmem:[%s279 + $0xa8] sm:$0xe]
      %v952 = vld [vmem:[%s279 + $0xac] sm:$0xf]
      %v953 = vld [vmem:[%s279 + $0xb0] sm:$0x1]
      %v954 = vld [vmem:[%s279 + $0xb4] sm:$0xe]
      %v955 = vld [vmem:[%s279 + $0xb8] sm:$0xf]
      %v956 = vld [vmem:[%s279 + $0xbc] sm:$0x1]
      %vm1005 = vcmask 1042432
      %vm1006 = vcmask 1046532
      %vm1007 = vmor %vm1005, %vm1006
      %v1008 = vrot.slane %v909, 5
      %v1009 = vrot.slane %v1008, 4
      %v1010 = vrot.slane %v910, 5
      %v1011 = vsel %vm1007, %v1009, %v1010
      %v1012 = vrot.slane %v1010, 4
      %v1013 = vrot.slane %v911, 5
      %v1014 = vsel %vm1007, %v1012, %v1013
      %v1015 = vrot.slane %v912, 5
      %v1016 = vrot.slane %v1015, 4
      %v1017 = vrot.slane %v913, 5
      %v1018 = vsel %vm1007, %v1016, %v1017
      %v1019 = vrot.slane %v1017, 4
      %v1020 = vrot.slane %v914, 5
      %v1021 = vsel %vm1007, %v1019, %v1020
      %v1022 = vrot.slane %v915, 5
      %v1023 = vrot.slane %v1022, 4
      %v1024 = vrot.slane %v916, 5
      %v1025 = vsel %vm1007, %v1023, %v1024
      %v1026 = vrot.slane %v1024, 4
      %v1027 = vrot.slane %v917, 5
      %v1028 = vsel %vm1007, %v1026, %v1027
      %v1029 = vrot.slane %v918, 5
      %v1030 = vrot.slane %v1029, 4
      %v1031 = vrot.slane %v919, 5
      %v1032 = vsel %vm1007, %v1030, %v1031
      %v1033 = vrot.slane %v1031, 4
      %v1034 = vrot.slane %v920, 5
      %v1035 = vsel %vm1007, %v1033, %v1034
      %v1036 = vrot.slane %v921, 5
      %v1037 = vrot.slane %v1036, 4
      %v1038 = vrot.slane %v922, 5
      %v1039 = vsel %vm1007, %v1037, %v1038
      %v1040 = vrot.slane %v1038, 4
      %v1041 = vrot.slane %v923, 5
      %v1042 = vsel %vm1007, %v1040, %v1041
      %v1043 = vrot.slane %v924, 5
      %v1044 = vrot.slane %v1043, 4
      %v1045 = vrot.slane %v925, 5
      %v1046 = vsel %vm1007, %v1044, %v1045
      %v1047 = vrot.slane %v1045, 4
      %v1048 = vrot.slane %v926, 5
      %v1049 = vsel %vm1007, %v1047, %v1048
      %v1050 = vrot.slane %v927, 5
      %v1051 = vrot.slane %v1050, 4
      %v1052 = vrot.slane %v928, 5
      %v1053 = vsel %vm1007, %v1051, %v1052
      %v1054 = vrot.slane %v1052, 4
      %v1055 = vrot.slane %v929, 5
      %v1056 = vsel %vm1007, %v1054, %v1055
      %v1057 = vrot.slane %v930, 5
      %v1058 = vrot.slane %v1057, 4
      %v1059 = vrot.slane %v931, 5
      %v1060 = vsel %vm1007, %v1058, %v1059
      %v1061 = vrot.slane %v1059, 4
      %v1062 = vrot.slane %v932, 5
      %v1063 = vsel %vm1007, %v1061, %v1062
      %v1064 = vrot.slane %v933, 5
      %v1065 = vrot.slane %v1064, 4
      %v1066 = vrot.slane %v934, 5
      %v1067 = vsel %vm1007, %v1065, %v1066
      %v1068 = vrot.slane %v1066, 4
      %v1069 = vrot.slane %v935, 5
      %v1070 = vsel %vm1007, %v1068, %v1069
      %v1071 = vrot.slane %v936, 5
      %v1072 = vrot.slane %v1071, 4
      %v1073 = vrot.slane %v937, 5
      %v1074 = vsel %vm1007, %v1072, %v1073
      %v1075 = vrot.slane %v1073, 4
      %v1076 = vrot.slane %v938, 5
      %v1077 = vsel %vm1007, %v1075, %v1076
      %v1078 = vrot.slane %v939, 5
      %v1079 = vrot.slane %v1078, 4
      %v1080 = vrot.slane %v940, 5
      %v1081 = vsel %vm1007, %v1079, %v1080
      %v1082 = vrot.slane %v1080, 4
      %v1083 = vrot.slane %v941, 5
      %v1084 = vsel %vm1007, %v1082, %v1083
      %v1085 = vrot.slane %v942, 5
      %v1086 = vrot.slane %v1085, 4
      %v1087 = vrot.slane %v943, 5
      %v1088 = vsel %vm1007, %v1086, %v1087
      %v1089 = vrot.slane %v1087, 4
      %v1090 = vrot.slane %v944, 5
      %v1091 = vsel %vm1007, %v1089, %v1090
      %v1092 = vrot.slane %v945, 5
      %v1093 = vrot.slane %v1092, 4
      %v1094 = vrot.slane %v946, 5
      %v1095 = vsel %vm1007, %v1093, %v1094
      %v1096 = vrot.slane %v1094, 4
      %v1097 = vrot.slane %v947, 5
      %v1098 = vsel %vm1007, %v1096, %v1097
      %v1099 = vrot.slane %v948, 5
      %v1100 = vrot.slane %v1099, 4
      %v1101 = vrot.slane %v949, 5
      %v1102 = vsel %vm1007, %v1100, %v1101
      %v1103 = vrot.slane %v1101, 4
      %v1104 = vrot.slane %v950, 5
      %v1105 = vsel %vm1007, %v1103, %v1104
      %v1106 = vrot.slane %v951, 5
      %v1107 = vrot.slane %v1106, 4
      %v1108 = vrot.slane %v952, 5
      %v1109 = vsel %vm1007, %v1107, %v1108
      %v1110 = vrot.slane %v1108, 4
      %v1111 = vrot.slane %v953, 5
      %v1112 = vsel %vm1007, %v1110, %v1111
      %v1113 = vrot.slane %v954, 5
      %v1114 = vrot.slane %v1113, 4
      %v1115 = vrot.slane %v955, 5
      %v1116 = vsel %vm1007, %v1114, %v1115
      %v1117 = vrot.slane %v1115, 4
      %v1118 = vrot.slane %v956, 5
      %v1119 = vsel %vm1007, %v1117, %v1118
      %1120 = vrot.lane.b32.xlu0 %v1011, 8
      %v1121 = vpop.permute.xlu0 %1120
      %1122 = vrot.lane.b32.xlu0 %v1014, 8
      %v1123 = vpop.permute.xlu0 %1122
      %1124 = vrot.lane.b32.xlu0 %v1018, 8
      %v1125 = vpop.permute.xlu0 %1124
      %1126 = vrot.lane.b32.xlu0 %v1021, 8
      %v1127 = vpop.permute.xlu0 %1126
      %1128 = vrot.lane.b32.xlu0 %v1025, 8
      %v1129 = vpop.permute.xlu0 %1128
      %1130 = vrot.lane.b32.xlu0 %v1028, 8
      %v1131 = vpop.permute.xlu0 %1130
      %1132 = vrot.lane.b32.xlu0 %v1032, 8
      %v1133 = vpop.permute.xlu0 %1132
      %1134 = vrot.lane.b32.xlu0 %v1035, 8
      %v1135 = vpop.permute.xlu0 %1134
      %1136 = vrot.lane.b32.xlu0 %v1039, 8
      %v1137 = vpop.permute.xlu0 %1136
      %1138 = vrot.lane.b32.xlu0 %v1042, 8
      %v1139 = vpop.permute.xlu0 %1138
      %1140 = vrot.lane.b32.xlu0 %v1046, 8
      %v1141 = vpop.permute.xlu0 %1140
      %1142 = vrot.lane.b32.xlu0 %v1049, 8
      %v1143 = vpop.permute.xlu0 %1142
      %1144 = vrot.lane.b32.xlu0 %v1053, 8
      %v1145 = vpop.permute.xlu0 %1144
      %1146 = vrot.lane.b32.xlu0 %v1056, 8
      %v1147 = vpop.permute.xlu0 %1146
      %1148 = vrot.lane.b32.xlu0 %v1060, 8
      %v1149 = vpop.permute.xlu0 %1148
      %1150 = vrot.lane.b32.xlu0 %v1063, 8
      %v1151 = vpop.permute.xlu0 %1150
      %1152 = vrot.lane.b32.xlu0 %v1067, 8
      %v1153 = vpop.permute.xlu0 %1152
      %1154 = vrot.lane.b32.xlu0 %v1070, 8
      %v1155 = vpop.permute.xlu0 %1154
      %1156 = vrot.lane.b32.xlu0 %v1074, 8
      %v1157 = vpop.permute.xlu0 %1156
      %1158 = vrot.lane.b32.xlu0 %v1077, 8
      %v1159 = vpop.permute.xlu0 %1158
      %1160 = vrot.lane.b32.xlu0 %v1081, 8
      %v1161 = vpop.permute.xlu0 %1160
      %1162 = vrot.lane.b32.xlu0 %v1084, 8
      %v1163 = vpop.permute.xlu0 %1162
      %1164 = vrot.lane.b32.xlu0 %v1088, 8
      %v1165 = vpop.permute.xlu0 %1164
      %1166 = vrot.lane.b32.xlu0 %v1091, 8
      %v1167 = vpop.permute.xlu0 %1166
      %1168 = vrot.lane.b32.xlu0 %v1095, 8
      %v1169 = vpop.permute.xlu0 %1168
      %1170 = vrot.lane.b32.xlu0 %v1098, 8
      %v1171 = vpop.permute.xlu0 %1170
      %1172 = vrot.lane.b32.xlu0 %v1102, 8
      %v1173 = vpop.permute.xlu0 %1172
      %1174 = vrot.lane.b32.xlu0 %v1105, 8
      %v1175 = vpop.permute.xlu0 %1174
      %1176 = vrot.lane.b32.xlu0 %v1109, 8
      %v1177 = vpop.permute.xlu0 %1176
      %1178 = vrot.lane.b32.xlu0 %v1112, 8
      %v1179 = vpop.permute.xlu0 %1178
      %1180 = vrot.lane.b32.xlu0 %v1116, 8
      %v1181 = vpop.permute.xlu0 %1180
      %1182 = vrot.lane.b32.xlu0 %v1119, 8
      %v1183 = vpop.permute.xlu0 %1182
      %vm1216 = vcmask 93248
      %1217 = vst.msk [vmem:[#allocation2] sm:$0xf] %vm1216, %v1121
      %1218 = vst.msk [vmem:[#allocation2 + $0x4] sm:$0xf] %vm1216, %v1123
      %1219 = vst.msk [vmem:[#allocation2 + $0x8] sm:$0xf] %vm1216, %v1125
      %1220 = vst.msk [vmem:[#allocation2 + $0xc] sm:$0xf] %vm1216, %v1127
      %1221 = vst.msk [vmem:[#allocation2 + $0x10] sm:$0xf] %vm1216, %v1129
      %1222 = vst.msk [vmem:[#allocation2 + $0x14] sm:$0xf] %vm1216, %v1131
      %1223 = vst.msk [vmem:[#allocation2 + $0x18] sm:$0xf] %vm1216, %v1133
      %1224 = vst.msk [vmem:[#allocation2 + $0x1c] sm:$0xf] %vm1216, %v1135
      %1225 = vst.msk [vmem:[#allocation2 + $0x20] sm:$0xf] %vm1216, %v1137
      %1226 = vst.msk [vmem:[#allocation2 + $0x24] sm:$0xf] %vm1216, %v1139
      %1227 = vst.msk [vmem:[#allocation2 + $0x28] sm:$0xf] %vm1216, %v1141
      %1228 = vst.msk [vmem:[#allocation2 + $0x2c] sm:$0xf] %vm1216, %v1143
      %1229 = vst.msk [vmem:[#allocation2 + $0x30] sm:$0xf] %vm1216, %v1145
      %1230 = vst.msk [vmem:[#allocation2 + $0x34] sm:$0xf] %vm1216, %v1147
      %1231 = vst.msk [vmem:[#allocation2 + $0x38] sm:$0xf] %vm1216, %v1149
      %1232 = vst.msk [vmem:[#allocation2 + $0x3c] sm:$0xf] %vm1216, %v1151
      %1233 = vst.msk [vmem:[#allocation2 + $0x40] sm:$0xf] %vm1216, %v1153
      %1234 = vst.msk [vmem:[#allocation2 + $0x44] sm:$0xf] %vm1216, %v1155
      %1235 = vst.msk [vmem:[#allocation2 + $0x48] sm:$0xf] %vm1216, %v1157
      %1236 = vst.msk [vmem:[#allocation2 + $0x4c] sm:$0xf] %vm1216, %v1159
      %1237 = vst.msk [vmem:[#allocation2 + $0x50] sm:$0xf] %vm1216, %v1161
      %1238 = vst.msk [vmem:[#allocation2 + $0x54] sm:$0xf] %vm1216, %v1163
      %1239 = vst.msk [vmem:[#allocation2 + $0x58] sm:$0xf] %vm1216, %v1165
      %1240 = vst.msk [vmem:[#allocation2 + $0x5c] sm:$0xf] %vm1216, %v1167
      %1241 = vst.msk [vmem:[#allocation2 + $0x60] sm:$0xf] %vm1216, %v1169
      %1242 = vst.msk [vmem:[#allocation2 + $0x64] sm:$0xf] %vm1216, %v1171
      %1243 = vst.msk [vmem:[#allocation2 + $0x68] sm:$0xf] %vm1216, %v1173
      %1244 = vst.msk [vmem:[#allocation2 + $0x6c] sm:$0xf] %vm1216, %v1175
      %1245 = vst.msk [vmem:[#allocation2 + $0x70] sm:$0xf] %vm1216, %v1177
      %1246 = vst.msk [vmem:[#allocation2 + $0x74] sm:$0xf] %vm1216, %v1179
      %1247 = vst.msk [vmem:[#allocation2 + $0x78] sm:$0xf] %vm1216, %v1181
      %1248 = vst.msk [vmem:[#allocation2 + $0x7c] sm:$0xf] %vm1216, %v1183
      %s1249 = sadd.s32 %s243, 1
      %s1250 = smul.u32 %s1249, 3
      %s1251 = smul.addr %s1250, 4
      %s1252 = scalar_lea.vmem %s220, %s1251
      %v1253 = vld [vmem:[%s1252] sm:$0xf]
      %v1254 = vld [vmem:[%s1252 + $0x4] sm:$0xf]
      %v1255 = vld [vmem:[%s1252 + $0xc] sm:$0xf]
      %v1256 = vld [vmem:[%s1252 + $0x10] sm:$0xf]
      %v1257 = vld [vmem:[%s1252 + $0x18] sm:$0xf]
      %v1258 = vld [vmem:[%s1252 + $0x1c] sm:$0xf]
      %v1259 = vld [vmem:[%s1252 + $0x24] sm:$0xf]
      %v1260 = vld [vmem:[%s1252 + $0x28] sm:$0xf]
      %v1261 = vld [vmem:[%s1252 + $0x30] sm:$0xf]
      %v1262 = vld [vmem:[%s1252 + $0x34] sm:$0xf]
      %v1263 = vld [vmem:[%s1252 + $0x3c] sm:$0xf]
      %v1264 = vld [vmem:[%s1252 + $0x40] sm:$0xf]
      %v1265 = vld [vmem:[%s1252 + $0x48] sm:$0xf]
      %v1266 = vld [vmem:[%s1252 + $0x4c] sm:$0xf]
      %v1267 = vld [vmem:[%s1252 + $0x54] sm:$0xf]
      %v1268 = vld [vmem:[%s1252 + $0x58] sm:$0xf]
      %v1269 = vld [vmem:[%s1252 + $0x60] sm:$0xf]
      %v1270 = vld [vmem:[%s1252 + $0x64] sm:$0xf]
      %v1271 = vld [vmem:[%s1252 + $0x6c] sm:$0xf]
      %v1272 = vld [vmem:[%s1252 + $0x70] sm:$0xf]
      %v1273 = vld [vmem:[%s1252 + $0x78] sm:$0xf]
      %v1274 = vld [vmem:[%s1252 + $0x7c] sm:$0xf]
      %v1275 = vld [vmem:[%s1252 + $0x84] sm:$0xf]
      %v1276 = vld [vmem:[%s1252 + $0x88] sm:$0xf]
      %v1277 = vld [vmem:[%s1252 + $0x90] sm:$0xf]
      %v1278 = vld [vmem:[%s1252 + $0x94] sm:$0xf]
      %v1279 = vld [vmem:[%s1252 + $0x9c] sm:$0xf]
      %v1280 = vld [vmem:[%s1252 + $0xa0] sm:$0xf]
      %v1281 = vld [vmem:[%s1252 + $0xa8] sm:$0xf]
      %v1282 = vld [vmem:[%s1252 + $0xac] sm:$0xf]
      %v1283 = vld [vmem:[%s1252 + $0xb4] sm:$0xf]
      %v1284 = vld [vmem:[%s1252 + $0xb8] sm:$0xf]
      %1317 = vrot.lane.b32.xlu0 %v1253, 12
      %v1318 = vpop.permute.xlu0 %1317
      %1319 = vrot.lane.b32.xlu0 %v1254, 12
      %v1320 = vpop.permute.xlu0 %1319
      %1321 = vrot.lane.b32.xlu0 %v1255, 12
      %v1322 = vpop.permute.xlu0 %1321
      %1323 = vrot.lane.b32.xlu0 %v1256, 12
      %v1324 = vpop.permute.xlu0 %1323
      %1325 = vrot.lane.b32.xlu0 %v1257, 12
      %v1326 = vpop.permute.xlu0 %1325
      %1327 = vrot.lane.b32.xlu0 %v1258, 12
      %v1328 = vpop.permute.xlu0 %1327
      %1329 = vrot.lane.b32.xlu0 %v1259, 12
      %v1330 = vpop.permute.xlu0 %1329
      %1331 = vrot.lane.b32.xlu0 %v1260, 12
      %v1332 = vpop.permute.xlu0 %1331
      %1333 = vrot.lane.b32.xlu0 %v1261, 12
      %v1334 = vpop.permute.xlu0 %1333
      %1335 = vrot.lane.b32.xlu0 %v1262, 12
      %v1336 = vpop.permute.xlu0 %1335
      %1337 = vrot.lane.b32.xlu0 %v1263, 12
      %v1338 = vpop.permute.xlu0 %1337
      %1339 = vrot.lane.b32.xlu0 %v1264, 12
      %v1340 = vpop.permute.xlu0 %1339
      %1341 = vrot.lane.b32.xlu0 %v1265, 12
      %v1342 = vpop.permute.xlu0 %1341
      %1343 = vrot.lane.b32.xlu0 %v1266, 12
      %v1344 = vpop.permute.xlu0 %1343
      %1345 = vrot.lane.b32.xlu0 %v1267, 12
      %v1346 = vpop.permute.xlu0 %1345
      %1347 = vrot.lane.b32.xlu0 %v1268, 12
      %v1348 = vpop.permute.xlu0 %1347
      %1349 = vrot.lane.b32.xlu0 %v1269, 12
      %v1350 = vpop.permute.xlu0 %1349
      %1351 = vrot.lane.b32.xlu0 %v1270, 12
      %v1352 = vpop.permute.xlu0 %1351
      %1353 = vrot.lane.b32.xlu0 %v1271, 12
      %v1354 = vpop.permute.xlu0 %1353
      %1355 = vrot.lane.b32.xlu0 %v1272, 12
      %v1356 = vpop.permute.xlu0 %1355
      %1357 = vrot.lane.b32.xlu0 %v1273, 12
      %v1358 = vpop.permute.xlu0 %1357
      %1359 = vrot.lane.b32.xlu0 %v1274, 12
      %v1360 = vpop.permute.xlu0 %1359
      %1361 = vrot.lane.b32.xlu0 %v1275, 12
      %v1362 = vpop.permute.xlu0 %1361
      %1363 = vrot.lane.b32.xlu0 %v1276, 12
      %v1364 = vpop.permute.xlu0 %1363
      %1365 = vrot.lane.b32.xlu0 %v1277, 12
      %v1366 = vpop.permute.xlu0 %1365
      %1367 = vrot.lane.b32.xlu0 %v1278, 12
      %v1368 = vpop.permute.xlu0 %1367
      %1369 = vrot.lane.b32.xlu0 %v1279, 12
      %v1370 = vpop.permute.xlu0 %1369
      %1371 = vrot.lane.b32.xlu0 %v1280, 12
      %v1372 = vpop.permute.xlu0 %1371
      %1373 = vrot.lane.b32.xlu0 %v1281, 12
      %v1374 = vpop.permute.xlu0 %1373
      %1375 = vrot.lane.b32.xlu0 %v1282, 12
      %v1376 = vpop.permute.xlu0 %1375
      %1377 = vrot.lane.b32.xlu0 %v1283, 12
      %v1378 = vpop.permute.xlu0 %1377
      %1379 = vrot.lane.b32.xlu0 %v1284, 12
      %v1380 = vpop.permute.xlu0 %1379
      %vm1413 = vcmask 126048
      %1414 = vst.msk [vmem:[#allocation2] sm:$0xf] %vm1413, %v1318
      %1415 = vst.msk [vmem:[#allocation2 + $0x4] sm:$0xf] %vm1413, %v1320
      %1416 = vst.msk [vmem:[#allocation2 + $0x8] sm:$0xf] %vm1413, %v1322
      %1417 = vst.msk [vmem:[#allocation2 + $0xc] sm:$0xf] %vm1413, %v1324
      %1418 = vst.msk [vmem:[#allocation2 + $0x10] sm:$0xf] %vm1413, %v1326
      %1419 = vst.msk [vmem:[#allocation2 + $0x14] sm:$0xf] %vm1413, %v1328
      %1420 = vst.msk [vmem:[#allocation2 + $0x18] sm:$0xf] %vm1413, %v1330
      %1421 = vst.msk [vmem:[#allocation2 + $0x1c] sm:$0xf] %vm1413, %v1332
      %1422 = vst.msk [vmem:[#allocation2 + $0x20] sm:$0xf] %vm1413, %v1334
      %1423 = vst.msk [vmem:[#allocation2 + $0x24] sm:$0xf] %vm1413, %v1336
      %1424 = vst.msk [vmem:[#allocation2 + $0x28] sm:$0xf] %vm1413, %v1338
      %1425 = vst.msk [vmem:[#allocation2 + $0x2c] sm:$0xf] %vm1413, %v1340
      %1426 = vst.msk [vmem:[#allocation2 + $0x30] sm:$0xf] %vm1413, %v1342
      %1427 = vst.msk [vmem:[#allocation2 + $0x34] sm:$0xf] %vm1413, %v1344
      %1428 = vst.msk [vmem:[#allocation2 + $0x38] sm:$0xf] %vm1413, %v1346
      %1429 = vst.msk [vmem:[#allocation2 + $0x3c] sm:$0xf] %vm1413, %v1348
      %1430 = vst.msk [vmem:[#allocation2 + $0x40] sm:$0xf] %vm1413, %v1350
      %1431 = vst.msk [vmem:[#allocation2 + $0x44] sm:$0xf] %vm1413, %v1352
      %1432 = vst.msk [vmem:[#allocation2 + $0x48] sm:$0xf] %vm1413, %v1354
      %1433 = vst.msk [vmem:[#allocation2 + $0x4c] sm:$0xf] %vm1413, %v1356
      %1434 = vst.msk [vmem:[#allocation2 + $0x50] sm:$0xf] %vm1413, %v1358
      %1435 = vst.msk [vmem:[#allocation2 + $0x54] sm:$0xf] %vm1413, %v1360
      %1436 = vst.msk [vmem:[#allocation2 + $0x58] sm:$0xf] %vm1413, %v1362
      %1437 = vst.msk [vmem:[#allocation2 + $0x5c] sm:$0xf] %vm1413, %v1364
      %1438 = vst.msk [vmem:[#allocation2 + $0x60] sm:$0xf] %vm1413, %v1366
      %1439 = vst.msk [vmem:[#allocation2 + $0x64] sm:$0xf] %vm1413, %v1368
      %1440 = vst.msk [vmem:[#allocation2 + $0x68] sm:$0xf] %vm1413, %v1370
      %1441 = vst.msk [vmem:[#allocation2 + $0x6c] sm:$0xf] %vm1413, %v1372
      %1442 = vst.msk [vmem:[#allocation2 + $0x70] sm:$0xf] %vm1413, %v1374
      %1443 = vst.msk [vmem:[#allocation2 + $0x74] sm:$0xf] %vm1413, %v1376
      %1444 = vst.msk [vmem:[#allocation2 + $0x78] sm:$0xf] %vm1413, %v1378
      %1445 = vst.msk [vmem:[#allocation2 + $0x7c] sm:$0xf] %vm1413, %v1380
      %v1446 = vld [vmem:[%s1252] sm:$0xf]
      %v1447 = vld [vmem:[%s1252 + $0x4] sm:$0xf]
      %v1448 = vld [vmem:[%s1252 + $0x8] sm:$0x1]
      %v1449 = vld [vmem:[%s1252 + $0xc] sm:$0xf]
      %v1450 = vld [vmem:[%s1252 + $0x10] sm:$0xf]
      %v1451 = vld [vmem:[%s1252 + $0x14] sm:$0x1]
      %v1452 = vld [vmem:[%s1252 + $0x18] sm:$0xf]
      %v1453 = vld [vmem:[%s1252 + $0x1c] sm:$0xf]
      %v1454 = vld [vmem:[%s1252 + $0x20] sm:$0x1]
      %v1455 = vld [vmem:[%s1252 + $0x24] sm:$0xf]
      %v1456 = vld [vmem:[%s1252 + $0x28] sm:$0xf]
      %v1457 = vld [vmem:[%s1252 + $0x2c] sm:$0x1]
      %v1458 = vld [vmem:[%s1252 + $0x30] sm:$0xf]
      %v1459 = vld [vmem:[%s1252 + $0x34] sm:$0xf]
      %v1460 = vld [vmem:[%s1252 + $0x38] sm:$0x1]
      %v1461 = vld [vmem:[%s1252 + $0x3c] sm:$0xf]
      %v1462 = vld [vmem:[%s1252 + $0x40] sm:$0xf]
      %v1463 = vld [vmem:[%s1252 + $0x44] sm:$0x1]
      %v1464 = vld [vmem:[%s1252 + $0x48] sm:$0xf]
      %v1465 = vld [vmem:[%s1252 + $0x4c] sm:$0xf]
      %v1466 = vld [vmem:[%s1252 + $0x50] sm:$0x1]
      %v1467 = vld [vmem:[%s1252 + $0x54] sm:$0xf]
      %v1468 = vld [vmem:[%s1252 + $0x58] sm:$0xf]
      %v1469 = vld [vmem:[%s1252 + $0x5c] sm:$0x1]
      %v1470 = vld [vmem:[%s1252 + $0x60] sm:$0xf]
      %v1471 = vld [vmem:[%s1252 + $0x64] sm:$0xf]
      %v1472 = vld [vmem:[%s1252 + $0x68] sm:$0x1]
      %v1473 = vld [vmem:[%s1252 + $0x6c] sm:$0xf]
      %v1474 = vld [vmem:[%s1252 + $0x70] sm:$0xf]
      %v1475 = vld [vmem:[%s1252 + $0x74] sm:$0x1]
      %v1476 = vld [vmem:[%s1252 + $0x78] sm:$0xf]
      %v1477 = vld [vmem:[%s1252 + $0x7c] sm:$0xf]
      %v1478 = vld [vmem:[%s1252 + $0x80] sm:$0x1]
      %v1479 = vld [vmem:[%s1252 + $0x84] sm:$0xf]
      %v1480 = vld [vmem:[%s1252 + $0x88] sm:$0xf]
      %v1481 = vld [vmem:[%s1252 + $0x8c] sm:$0x1]
      %v1482 = vld [vmem:[%s1252 + $0x90] sm:$0xf]
      %v1483 = vld [vmem:[%s1252 + $0x94] sm:$0xf]
      %v1484 = vld [vmem:[%s1252 + $0x98] sm:$0x1]
      %v1485 = vld [vmem:[%s1252 + $0x9c] sm:$0xf]
      %v1486 = vld [vmem:[%s1252 + $0xa0] sm:$0xf]
      %v1487 = vld [vmem:[%s1252 + $0xa4] sm:$0x1]
      %v1488 = vld [vmem:[%s1252 + $0xa8] sm:$0xf]
      %v1489 = vld [vmem:[%s1252 + $0xac] sm:$0xf]
      %v1490 = vld [vmem:[%s1252 + $0xb0] sm:$0x1]
      %v1491 = vld [vmem:[%s1252 + $0xb4] sm:$0xf]
      %v1492 = vld [vmem:[%s1252 + $0xb8] sm:$0xf]
      %v1493 = vld [vmem:[%s1252 + $0xbc] sm:$0x1]
      %v1495 = vshrl.u32 %v1446, 16
      %v1497 = vrot.slane %v1495, 4
      %v1498 = vshll.u32 %v1446, 16
      %v1500 = vrot.slane %v1498, 5
      %v1501 = vor.u32 %v1497, %v1500
      %v1502 = vrot.slane %v1501, 4
      %v1504 = vshll.u32 %v1447, 16
      %v1506 = vrot.slane %v1504, 5
      %v1507 = vsel %vm395, %v1502, %v1506
      %v1508 = vshrl.u32 %v1447, 16
      %v1510 = vrot.slane %v1508, 4
      %v1511 = vor.u32 %v1510, %v1506
      %v1512 = vrot.slane %v1511, 4
      %v1514 = vshll.u32 %v1448, 16
      %v1516 = vrot.slane %v1514, 5
      %v1517 = vsel %vm395, %v1512, %v1516
      %v1519 = vshrl.u32 %v1449, 16
      %v1521 = vrot.slane %v1519, 4
      %v1522 = vshll.u32 %v1449, 16
      %v1524 = vrot.slane %v1522, 5
      %v1525 = vor.u32 %v1521, %v1524
      %v1526 = vrot.slane %v1525, 4
      %v1528 = vshll.u32 %v1450, 16
      %v1530 = vrot.slane %v1528, 5
      %v1531 = vsel %vm395, %v1526, %v1530
      %v1532 = vshrl.u32 %v1450, 16
      %v1534 = vrot.slane %v1532, 4
      %v1535 = vor.u32 %v1534, %v1530
      %v1536 = vrot.slane %v1535, 4
      %v1538 = vshll.u32 %v1451, 16
      %v1540 = vrot.slane %v1538, 5
      %v1541 = vsel %vm395, %v1536, %v1540
      %v1543 = vshrl.u32 %v1452, 16
      %v1545 = vrot.slane %v1543, 4
      %v1546 = vshll.u32 %v1452, 16
      %v1548 = vrot.slane %v1546, 5
      %v1549 = vor.u32 %v1545, %v1548
      %v1550 = vrot.slane %v1549, 4
      %v1552 = vshll.u32 %v1453, 16
      %v1554 = vrot.slane %v1552, 5
      %v1555 = vsel %vm395, %v1550, %v1554
      %v1556 = vshrl.u32 %v1453, 16
      %v1558 = vrot.slane %v1556, 4
      %v1559 = vor.u32 %v1558, %v1554
      %v1560 = vrot.slane %v1559, 4
      %v1562 = vshll.u32 %v1454, 16
      %v1564 = vrot.slane %v1562, 5
      %v1565 = vsel %vm395, %v1560, %v1564
      %v1567 = vshrl.u32 %v1455, 16
      %v1569 = vrot.slane %v1567, 4
      %v1570 = vshll.u32 %v1455, 16
      %v1572 = vrot.slane %v1570, 5
      %v1573 = vor.u32 %v1569, %v1572
      %v1574 = vrot.slane %v1573, 4
      %v1576 = vshll.u32 %v1456, 16
      %v1578 = vrot.slane %v1576, 5
      %v1579 = vsel %vm395, %v1574, %v1578
      %v1580 = vshrl.u32 %v1456, 16
      %v1582 = vrot.slane %v1580, 4
      %v1583 = vor.u32 %v1582, %v1578
      %v1584 = vrot.slane %v1583, 4
      %v1586 = vshll.u32 %v1457, 16
      %v1588 = vrot.slane %v1586, 5
      %v1589 = vsel %vm395, %v1584, %v1588
      %v1591 = vshrl.u32 %v1458, 16
      %v1593 = vrot.slane %v1591, 4
      %v1594 = vshll.u32 %v1458, 16
      %v1596 = vrot.slane %v1594, 5
      %v1597 = vor.u32 %v1593, %v1596
      %v1598 = vrot.slane %v1597, 4
      %v1600 = vshll.u32 %v1459, 16
      %v1602 = vrot.slane %v1600, 5
      %v1603 = vsel %vm395, %v1598, %v1602
      %v1604 = vshrl.u32 %v1459, 16
      %v1606 = vrot.slane %v1604, 4
      %v1607 = vor.u32 %v1606, %v1602
      %v1608 = vrot.slane %v1607, 4
      %v1610 = vshll.u32 %v1460, 16
      %v1612 = vrot.slane %v1610, 5
      %v1613 = vsel %vm395, %v1608, %v1612
      %v1615 = vshrl.u32 %v1461, 16
      %v1617 = vrot.slane %v1615, 4
      %v1618 = vshll.u32 %v1461, 16
      %v1620 = vrot.slane %v1618, 5
      %v1621 = vor.u32 %v1617, %v1620
      %v1622 = vrot.slane %v1621, 4
      %v1624 = vshll.u32 %v1462, 16
      %v1626 = vrot.slane %v1624, 5
      %v1627 = vsel %vm395, %v1622, %v1626
      %v1628 = vshrl.u32 %v1462, 16
      %v1630 = vrot.slane %v1628, 4
      %v1631 = vor.u32 %v1630, %v1626
      %v1632 = vrot.slane %v1631, 4
      %v1634 = vshll.u32 %v1463, 16
      %v1636 = vrot.slane %v1634, 5
      %v1637 = vsel %vm395, %v1632, %v1636
      %v1639 = vshrl.u32 %v1464, 16
      %v1641 = vrot.slane %v1639, 4
      %v1642 = vshll.u32 %v1464, 16
      %v1644 = vrot.slane %v1642, 5
      %v1645 = vor.u32 %v1641, %v1644
      %v1646 = vrot.slane %v1645, 4
      %v1648 = vshll.u32 %v1465, 16
      %v1650 = vrot.slane %v1648, 5
      %v1651 = vsel %vm395, %v1646, %v1650
      %v1652 = vshrl.u32 %v1465, 16
      %v1654 = vrot.slane %v1652, 4
      %v1655 = vor.u32 %v1654, %v1650
      %v1656 = vrot.slane %v1655, 4
      %v1658 = vshll.u32 %v1466, 16
      %v1660 = vrot.slane %v1658, 5
      %v1661 = vsel %vm395, %v1656, %v1660
      %v1663 = vshrl.u32 %v1467, 16
      %v1665 = vrot.slane %v1663, 4
      %v1666 = vshll.u32 %v1467, 16
      %v1668 = vrot.slane %v1666, 5
      %v1669 = vor.u32 %v1665, %v1668
      %v1670 = vrot.slane %v1669, 4
      %v1672 = vshll.u32 %v1468, 16
      %v1674 = vrot.slane %v1672, 5
      %v1675 = vsel %vm395, %v1670, %v1674
      %v1676 = vshrl.u32 %v1468, 16
      %v1678 = vrot.slane %v1676, 4
      %v1679 = vor.u32 %v1678, %v1674
      %v1680 = vrot.slane %v1679, 4
      %v1682 = vshll.u32 %v1469, 16
      %v1684 = vrot.slane %v1682, 5
      %v1685 = vsel %vm395, %v1680, %v1684
      %v1687 = vshrl.u32 %v1470, 16
      %v1689 = vrot.slane %v1687, 4
      %v1690 = vshll.u32 %v1470, 16
      %v1692 = vrot.slane %v1690, 5
      %v1693 = vor.u32 %v1689, %v1692
      %v1694 = vrot.slane %v1693, 4
      %v1696 = vshll.u32 %v1471, 16
      %v1698 = vrot.slane %v1696, 5
      %v1699 = vsel %vm395, %v1694, %v1698
      %v1700 = vshrl.u32 %v1471, 16
      %v1702 = vrot.slane %v1700, 4
      %v1703 = vor.u32 %v1702, %v1698
      %v1704 = vrot.slane %v1703, 4
      %v1706 = vshll.u32 %v1472, 16
      %v1708 = vrot.slane %v1706, 5
      %v1709 = vsel %vm395, %v1704, %v1708
      %v1711 = vshrl.u32 %v1473, 16
      %v1713 = vrot.slane %v1711, 4
      %v1714 = vshll.u32 %v1473, 16
      %v1716 = vrot.slane %v1714, 5
      %v1717 = vor.u32 %v1713, %v1716
      %v1718 = vrot.slane %v1717, 4
      %v1720 = vshll.u32 %v1474, 16
      %v1722 = vrot.slane %v1720, 5
      %v1723 = vsel %vm395, %v1718, %v1722
      %v1724 = vshrl.u32 %v1474, 16
      %v1726 = vrot.slane %v1724, 4
      %v1727 = vor.u32 %v1726, %v1722
      %v1728 = vrot.slane %v1727, 4
      %v1730 = vshll.u32 %v1475, 16
      %v1732 = vrot.slane %v1730, 5
      %v1733 = vsel %vm395, %v1728, %v1732
      %v1735 = vshrl.u32 %v1476, 16
      %v1737 = vrot.slane %v1735, 4
      %v1738 = vshll.u32 %v1476, 16
      %v1740 = vrot.slane %v1738, 5
      %v1741 = vor.u32 %v1737, %v1740
      %v1742 = vrot.slane %v1741, 4
      %v1744 = vshll.u32 %v1477, 16
      %v1746 = vrot.slane %v1744, 5
      %v1747 = vsel %vm395, %v1742, %v1746
      %v1748 = vshrl.u32 %v1477, 16
      %v1750 = vrot.slane %v1748, 4
      %v1751 = vor.u32 %v1750, %v1746
      %v1752 = vrot.slane %v1751, 4
      %v1754 = vshll.u32 %v1478, 16
      %v1756 = vrot.slane %v1754, 5
      %v1757 = vsel %vm395, %v1752, %v1756
      %v1759 = vshrl.u32 %v1479, 16
      %v1761 = vrot.slane %v1759, 4
      %v1762 = vshll.u32 %v1479, 16
      %v1764 = vrot.slane %v1762, 5
      %v1765 = vor.u32 %v1761, %v1764
      %v1766 = vrot.slane %v1765, 4
      %v1768 = vshll.u32 %v1480, 16
      %v1770 = vrot.slane %v1768, 5
      %v1771 = vsel %vm395, %v1766, %v1770
      %v1772 = vshrl.u32 %v1480, 16
      %v1774 = vrot.slane %v1772, 4
      %v1775 = vor.u32 %v1774, %v1770
      %v1776 = vrot.slane %v1775, 4
      %v1778 = vshll.u32 %v1481, 16
      %v1780 = vrot.slane %v1778, 5
      %v1781 = vsel %vm395, %v1776, %v1780
      %v1783 = vshrl.u32 %v1482, 16
      %v1785 = vrot.slane %v1783, 4
      %v1786 = vshll.u32 %v1482, 16
      %v1788 = vrot.slane %v1786, 5
      %v1789 = vor.u32 %v1785, %v1788
      %v1790 = vrot.slane %v1789, 4
      %v1792 = vshll.u32 %v1483, 16
      %v1794 = vrot.slane %v1792, 5
      %v1795 = vsel %vm395, %v1790, %v1794
      %v1796 = vshrl.u32 %v1483, 16
      %v1798 = vrot.slane %v1796, 4
      %v1799 = vor.u32 %v1798, %v1794
      %v1800 = vrot.slane %v1799, 4
      %v1802 = vshll.u32 %v1484, 16
      %v1804 = vrot.slane %v1802, 5
      %v1805 = vsel %vm395, %v1800, %v1804
      %v1807 = vshrl.u32 %v1485, 16
      %v1809 = vrot.slane %v1807, 4
      %v1810 = vshll.u32 %v1485, 16
      %v1812 = vrot.slane %v1810, 5
      %v1813 = vor.u32 %v1809, %v1812
      %v1814 = vrot.slane %v1813, 4
      %v1816 = vshll.u32 %v1486, 16
      %v1818 = vrot.slane %v1816, 5
      %v1819 = vsel %vm395, %v1814, %v1818
      %v1820 = vshrl.u32 %v1486, 16
      %v1822 = vrot.slane %v1820, 4
      %v1823 = vor.u32 %v1822, %v1818
      %v1824 = vrot.slane %v1823, 4
      %v1826 = vshll.u32 %v1487, 16
      %v1828 = vrot.slane %v1826, 5
      %v1829 = vsel %vm395, %v1824, %v1828
      %v1831 = vshrl.u32 %v1488, 16
      %v1833 = vrot.slane %v1831, 4
      %v1834 = vshll.u32 %v1488, 16
      %v1836 = vrot.slane %v1834, 5
      %v1837 = vor.u32 %v1833, %v1836
      %v1838 = vrot.slane %v1837, 4
      %v1840 = vshll.u32 %v1489, 16
      %v1842 = vrot.slane %v1840, 5
      %v1843 = vsel %vm395, %v1838, %v1842
      %v1844 = vshrl.u32 %v1489, 16
      %v1846 = vrot.slane %v1844, 4
      %v1847 = vor.u32 %v1846, %v1842
      %v1848 = vrot.slane %v1847, 4
      %v1850 = vshll.u32 %v1490, 16
      %v1852 = vrot.slane %v1850, 5
      %v1853 = vsel %vm395, %v1848, %v1852
      %v1855 = vshrl.u32 %v1491, 16
      %v1857 = vrot.slane %v1855, 4
      %v1858 = vshll.u32 %v1491, 16
      %v1860 = vrot.slane %v1858, 5
      %v1861 = vor.u32 %v1857, %v1860
      %v1862 = vrot.slane %v1861, 4
      %v1864 = vshll.u32 %v1492, 16
      %v1866 = vrot.slane %v1864, 5
      %v1867 = vsel %vm395, %v1862, %v1866
      %v1868 = vshrl.u32 %v1492, 16
      %v1870 = vrot.slane %v1868, 4
      %v1871 = vor.u32 %v1870, %v1866
      %v1872 = vrot.slane %v1871, 4
      %v1874 = vshll.u32 %v1493, 16
      %v1876 = vrot.slane %v1874, 5
      %v1877 = vsel %vm395, %v1872, %v1876
      %1878 = vrot.lane.b32.xlu0 %v1507, 16
      %v1879 = vpop.permute.xlu0 %1878
      %1880 = vrot.lane.b32.xlu0 %v1517, 16
      %v1881 = vpop.permute.xlu0 %1880
      %1882 = vrot.lane.b32.xlu0 %v1531, 16
      %v1883 = vpop.permute.xlu0 %1882
      %1884 = vrot.lane.b32.xlu0 %v1541, 16
      %v1885 = vpop.permute.xlu0 %1884
      %1886 = vrot.lane.b32.xlu0 %v1555, 16
      %v1887 = vpop.permute.xlu0 %1886
      %1888 = vrot.lane.b32.xlu0 %v1565, 16
      %v1889 = vpop.permute.xlu0 %1888
      %1890 = vrot.lane.b32.xlu0 %v1579, 16
      %v1891 = vpop.permute.xlu0 %1890
      %1892 = vrot.lane.b32.xlu0 %v1589, 16
      %v1893 = vpop.permute.xlu0 %1892
      %1894 = vrot.lane.b32.xlu0 %v1603, 16
      %v1895 = vpop.permute.xlu0 %1894
      %1896 = vrot.lane.b32.xlu0 %v1613, 16
      %v1897 = vpop.permute.xlu0 %1896
      %1898 = vrot.lane.b32.xlu0 %v1627, 16
      %v1899 = vpop.permute.xlu0 %1898
      %1900 = vrot.lane.b32.xlu0 %v1637, 16
      %v1901 = vpop.permute.xlu0 %1900
      %1902 = vrot.lane.b32.xlu0 %v1651, 16
      %v1903 = vpop.permute.xlu0 %1902
      %1904 = vrot.lane.b32.xlu0 %v1661, 16
      %v1905 = vpop.permute.xlu0 %1904
      %1906 = vrot.lane.b32.xlu0 %v1675, 16
      %v1907 = vpop.permute.xlu0 %1906
      %1908 = vrot.lane.b32.xlu0 %v1685, 16
      %v1909 = vpop.permute.xlu0 %1908
      %1910 = vrot.lane.b32.xlu0 %v1699, 16
      %v1911 = vpop.permute.xlu0 %1910
      %1912 = vrot.lane.b32.xlu0 %v1709, 16
      %v1913 = vpop.permute.xlu0 %1912
      %1914 = vrot.lane.b32.xlu0 %v1723, 16
      %v1915 = vpop.permute.xlu0 %1914
      %1916 = vrot.lane.b32.xlu0 %v1733, 16
      %v1917 = vpop.permute.xlu0 %1916
      %1918 = vrot.lane.b32.xlu0 %v1747, 16
      %v1919 = vpop.permute.xlu0 %1918
      %1920 = vrot.lane.b32.xlu0 %v1757, 16
      %v1921 = vpop.permute.xlu0 %1920
      %1922 = vrot.lane.b32.xlu0 %v1771, 16
      %v1923 = vpop.permute.xlu0 %1922
      %1924 = vrot.lane.b32.xlu0 %v1781, 16
      %v1925 = vpop.permute.xlu0 %1924
      %1926 = vrot.lane.b32.xlu0 %v1795, 16
      %v1927 = vpop.permute.xlu0 %1926
      %1928 = vrot.lane.b32.xlu0 %v1805, 16
      %v1929 = vpop.permute.xlu0 %1928
      %1930 = vrot.lane.b32.xlu0 %v1819, 16
      %v1931 = vpop.permute.xlu0 %1930
      %1932 = vrot.lane.b32.xlu0 %v1829, 16
      %v1933 = vpop.permute.xlu0 %1932
      %1934 = vrot.lane.b32.xlu0 %v1843, 16
      %v1935 = vpop.permute.xlu0 %1934
      %1936 = vrot.lane.b32.xlu0 %v1853, 16
      %v1937 = vpop.permute.xlu0 %1936
      %1938 = vrot.lane.b32.xlu0 %v1867, 16
      %v1939 = vpop.permute.xlu0 %1938
      %1940 = vrot.lane.b32.xlu0 %v1877, 16
      %v1941 = vpop.permute.xlu0 %1940
      %vm1974 = vcmask 158848
      %1975 = vst.msk [vmem:[#allocation2] sm:$0xf] %vm1974, %v1879
      %1976 = vst.msk [vmem:[#allocation2 + $0x4] sm:$0xf] %vm1974, %v1881
      %1977 = vst.msk [vmem:[#allocation2 + $0x8] sm:$0xf] %vm1974, %v1883
      %1978 = vst.msk [vmem:[#allocation2 + $0xc] sm:$0xf] %vm1974, %v1885
      %1979 = vst.msk [vmem:[#allocation2 + $0x10] sm:$0xf] %vm1974, %v1887
      %1980 = vst.msk [vmem:[#allocation2 + $0x14] sm:$0xf] %vm1974, %v1889
      %1981 = vst.msk [vmem:[#allocation2 + $0x18] sm:$0xf] %vm1974, %v1891
      %1982 = vst.msk [vmem:[#allocation2 + $0x1c] sm:$0xf] %vm1974, %v1893
      %1983 = vst.msk [vmem:[#allocation2 + $0x20] sm:$0xf] %vm1974, %v1895
      %1984 = vst.msk [vmem:[#allocation2 + $0x24] sm:$0xf] %vm1974, %v1897
      %1985 = vst.msk [vmem:[#allocation2 + $0x28] sm:$0xf] %vm1974, %v1899
      %1986 = vst.msk [vmem:[#allocation2 + $0x2c] sm:$0xf] %vm1974, %v1901
      %1987 = vst.msk [vmem:[#allocation2 + $0x30] sm:$0xf] %vm1974, %v1903
      %1988 = vst.msk [vmem:[#allocation2 + $0x34] sm:$0xf] %vm1974, %v1905
      %1989 = vst.msk [vmem:[#allocation2 + $0x38] sm:$0xf] %vm1974, %v1907
      %1990 = vst.msk [vmem:[#allocation2 + $0x3c] sm:$0xf] %vm1974, %v1909
      %1991 = vst.msk [vmem:[#allocation2 + $0x40] sm:$0xf] %vm1974, %v1911
      %1992 = vst.msk [vmem:[#allocation2 + $0x44] sm:$0xf] %vm1974, %v1913
      %1993 = vst.msk [vmem:[#allocation2 + $0x48] sm:$0xf] %vm1974, %v1915
      %1994 = vst.msk [vmem:[#allocation2 + $0x4c] sm:$0xf] %vm1974, %v1917
      %1995 = vst.msk [vmem:[#allocation2 + $0x50] sm:$0xf] %vm1974, %v1919
      %1996 = vst.msk [vmem:[#allocation2 + $0x54] sm:$0xf] %vm1974, %v1921
      %1997 = vst.msk [vmem:[#allocation2 + $0x58] sm:$0xf] %vm1974, %v1923
      %1998 = vst.msk [vmem:[#allocation2 + $0x5c] sm:$0xf] %vm1974, %v1925
      %1999 = vst.msk [vmem:[#allocation2 + $0x60] sm:$0xf] %vm1974, %v1927
      %2000 = vst.msk [vmem:[#allocation2 + $0x64] sm:$0xf] %vm1974, %v1929
      %2001 = vst.msk [vmem:[#allocation2 + $0x68] sm:$0xf] %vm1974, %v1931
      %2002 = vst.msk [vmem:[#allocation2 + $0x6c] sm:$0xf] %vm1974, %v1933
      %2003 = vst.msk [vmem:[#allocation2 + $0x70] sm:$0xf] %vm1974, %v1935
      %2004 = vst.msk [vmem:[#allocation2 + $0x74] sm:$0xf] %vm1974, %v1937
      %2005 = vst.msk [vmem:[#allocation2 + $0x78] sm:$0xf] %vm1974, %v1939
      %2006 = vst.msk [vmem:[#allocation2 + $0x7c] sm:$0xf] %vm1974, %v1941
      %v2007 = vld [vmem:[%s1252] sm:$0xe]
      %v2008 = vld [vmem:[%s1252 + $0x4] sm:$0xf]
      %v2009 = vld [vmem:[%s1252 + $0x8] sm:$0x1]
      %v2010 = vld [vmem:[%s1252 + $0xc] sm:$0xe]
      %v2011 = vld [vmem:[%s1252 + $0x10] sm:$0xf]
      %v2012 = vld [vmem:[%s1252 + $0x14] sm:$0x1]
      %v2013 = vld [vmem:[%s1252 + $0x18] sm:$0xe]
      %v2014 = vld [vmem:[%s1252 + $0x1c] sm:$0xf]
      %v2015 = vld [vmem:[%s1252 + $0x20] sm:$0x1]
      %v2016 = vld [vmem:[%s1252 + $0x24] sm:$0xe]
      %v2017 = vld [vmem:[%s1252 + $0x28] sm:$0xf]
      %v2018 = vld [vmem:[%s1252 + $0x2c] sm:$0x1]
      %v2019 = vld [vmem:[%s1252 + $0x30] sm:$0xe]
      %v2020 = vld [vmem:[%s1252 + $0x34] sm:$0xf]
      %v2021 = vld [vmem:[%s1252 + $0x38] sm:$0x1]
      %v2022 = vld [vmem:[%s1252 + $0x3c] sm:$0xe]
      %v2023 = vld [vmem:[%s1252 + $0x40] sm:$0xf]
      %v2024 = vld [vmem:[%s1252 + $0x44] sm:$0x1]
      %v2025 = vld [vmem:[%s1252 + $0x48] sm:$0xe]
      %v2026 = vld [vmem:[%s1252 + $0x4c] sm:$0xf]
      %v2027 = vld [vmem:[%s1252 + $0x50] sm:$0x1]
      %v2028 = vld [vmem:[%s1252 + $0x54] sm:$0xe]
      %v2029 = vld [vmem:[%s1252 + $0x58] sm:$0xf]
      %v2030 = vld [vmem:[%s1252 + $0x5c] sm:$0x1]
      %v2031 = vld [vmem:[%s1252 + $0x60] sm:$0xe]
      %v2032 = vld [vmem:[%s1252 + $0x64] sm:$0xf]
      %v2033 = vld [vmem:[%s1252 + $0x68] sm:$0x1]
      %v2034 = vld [vmem:[%s1252 + $0x6c] sm:$0xe]
      %v2035 = vld [vmem:[%s1252 + $0x70] sm:$0xf]
      %v2036 = vld [vmem:[%s1252 + $0x74] sm:$0x1]
      %v2037 = vld [vmem:[%s1252 + $0x78] sm:$0xe]
      %v2038 = vld [vmem:[%s1252 + $0x7c] sm:$0xf]
      %v2039 = vld [vmem:[%s1252 + $0x80] sm:$0x1]
      %v2040 = vld [vmem:[%s1252 + $0x84] sm:$0xe]
      %v2041 = vld [vmem:[%s1252 + $0x88] sm:$0xf]
      %v2042 = vld [vmem:[%s1252 + $0x8c] sm:$0x1]
      %v2043 = vld [vmem:[%s1252 + $0x90] sm:$0xe]
      %v2044 = vld [vmem:[%s1252 + $0x94] sm:$0xf]
      %v2045 = vld [vmem:[%s1252 + $0x98] sm:$0x1]
      %v2046 = vld [vmem:[%s1252 + $0x9c] sm:$0xe]
      %v2047 = vld [vmem:[%s1252 + $0xa0] sm:$0xf]
      %v2048 = vld [vmem:[%s1252 + $0xa4] sm:$0x1]
      %v2049 = vld [vmem:[%s1252 + $0xa8] sm:$0xe]
      %v2050 = vld [vmem:[%s1252 + $0xac] sm:$0xf]
      %v2051 = vld [vmem:[%s1252 + $0xb0] sm:$0x1]
      %v2052 = vld [vmem:[%s1252 + $0xb4] sm:$0xe]
      %v2053 = vld [vmem:[%s1252 + $0xb8] sm:$0xf]
      %v2054 = vld [vmem:[%s1252 + $0xbc] sm:$0x1]
      %v2103 = vrot.slane %v2007, 5
      %v2104 = vrot.slane %v2103, 4
      %v2105 = vrot.slane %v2008, 5
      %v2106 = vsel %vm1007, %v2104, %v2105
      %v2107 = vrot.slane %v2105, 4
      %v2108 = vrot.slane %v2009, 5
      %v2109 = vsel %vm1007, %v2107, %v2108
      %v2110 = vrot.slane %v2010, 5
      %v2111 = vrot.slane %v2110, 4
      %v2112 = vrot.slane %v2011, 5
      %v2113 = vsel %vm1007, %v2111, %v2112
      %v2114 = vrot.slane %v2112, 4
      %v2115 = vrot.slane %v2012, 5
      %v2116 = vsel %vm1007, %v2114, %v2115
      %v2117 = vrot.slane %v2013, 5
      %v2118 = vrot.slane %v2117, 4
      %v2119 = vrot.slane %v2014, 5
      %v2120 = vsel %vm1007, %v2118, %v2119
      %v2121 = vrot.slane %v2119, 4
      %v2122 = vrot.slane %v2015, 5
      %v2123 = vsel %vm1007, %v2121, %v2122
      %v2124 = vrot.slane %v2016, 5
      %v2125 = vrot.slane %v2124, 4
      %v2126 = vrot.slane %v2017, 5
      %v2127 = vsel %vm1007, %v2125, %v2126
      %v2128 = vrot.slane %v2126, 4
      %v2129 = vrot.slane %v2018, 5
      %v2130 = vsel %vm1007, %v2128, %v2129
      %v2131 = vrot.slane %v2019, 5
      %v2132 = vrot.slane %v2131, 4
      %v2133 = vrot.slane %v2020, 5
      %v2134 = vsel %vm1007, %v2132, %v2133
      %v2135 = vrot.slane %v2133, 4
      %v2136 = vrot.slane %v2021, 5
      %v2137 = vsel %vm1007, %v2135, %v2136
      %v2138 = vrot.slane %v2022, 5
      %v2139 = vrot.slane %v2138, 4
      %v2140 = vrot.slane %v2023, 5
      %v2141 = vsel %vm1007, %v2139, %v2140
      %v2142 = vrot.slane %v2140, 4
      %v2143 = vrot.slane %v2024, 5
      %v2144 = vsel %vm1007, %v2142, %v2143
      %v2145 = vrot.slane %v2025, 5
      %v2146 = vrot.slane %v2145, 4
      %v2147 = vrot.slane %v2026, 5
      %v2148 = vsel %vm1007, %v2146, %v2147
      %v2149 = vrot.slane %v2147, 4
      %v2150 = vrot.slane %v2027, 5
      %v2151 = vsel %vm1007, %v2149, %v2150
      %v2152 = vrot.slane %v2028, 5
      %v2153 = vrot.slane %v2152, 4
      %v2154 = vrot.slane %v2029, 5
      %v2155 = vsel %vm1007, %v2153, %v2154
      %v2156 = vrot.slane %v2154, 4
      %v2157 = vrot.slane %v2030, 5
      %v2158 = vsel %vm1007, %v2156, %v2157
      %v2159 = vrot.slane %v2031, 5
      %v2160 = vrot.slane %v2159, 4
      %v2161 = vrot.slane %v2032, 5
      %v2162 = vsel %vm1007, %v2160, %v2161
      %v2163 = vrot.slane %v2161, 4
      %v2164 = vrot.slane %v2033, 5
      %v2165 = vsel %vm1007, %v2163, %v2164
      %v2166 = vrot.slane %v2034, 5
      %v2167 = vrot.slane %v2166, 4
      %v2168 = vrot.slane %v2035, 5
      %v2169 = vsel %vm1007, %v2167, %v2168
      %v2170 = vrot.slane %v2168, 4
      %v2171 = vrot.slane %v2036, 5
      %v2172 = vsel %vm1007, %v2170, %v2171
      %v2173 = vrot.slane %v2037, 5
      %v2174 = vrot.slane %v2173, 4
      %v2175 = vrot.slane %v2038, 5
      %v2176 = vsel %vm1007, %v2174, %v2175
      %v2177 = vrot.slane %v2175, 4
      %v2178 = vrot.slane %v2039, 5
      %v2179 = vsel %vm1007, %v2177, %v2178
      %v2180 = vrot.slane %v2040, 5
      %v2181 = vrot.slane %v2180, 4
      %v2182 = vrot.slane %v2041, 5
      %v2183 = vsel %vm1007, %v2181, %v2182
      %v2184 = vrot.slane %v2182, 4
      %v2185 = vrot.slane %v2042, 5
      %v2186 = vsel %vm1007, %v2184, %v2185
      %v2187 = vrot.slane %v2043, 5
      %v2188 = vrot.slane %v2187, 4
      %v2189 = vrot.slane %v2044, 5
      %v2190 = vsel %vm1007, %v2188, %v2189
      %v2191 = vrot.slane %v2189, 4
      %v2192 = vrot.slane %v2045, 5
      %v2193 = vsel %vm1007, %v2191, %v2192
      %v2194 = vrot.slane %v2046, 5
      %v2195 = vrot.slane %v2194, 4
      %v2196 = vrot.slane %v2047, 5
      %v2197 = vsel %vm1007, %v2195, %v2196
      %v2198 = vrot.slane %v2196, 4
      %v2199 = vrot.slane %v2048, 5
      %v2200 = vsel %vm1007, %v2198, %v2199
      %v2201 = vrot.slane %v2049, 5
      %v2202 = vrot.slane %v2201, 4
      %v2203 = vrot.slane %v2050, 5
      %v2204 = vsel %vm1007, %v2202, %v2203
      %v2205 = vrot.slane %v2203, 4
      %v2206 = vrot.slane %v2051, 5
      %v2207 = vsel %vm1007, %v2205, %v2206
      %v2208 = vrot.slane %v2052, 5
      %v2209 = vrot.slane %v2208, 4
      %v2210 = vrot.slane %v2053, 5
      %v2211 = vsel %vm1007, %v2209, %v2210
      %v2212 = vrot.slane %v2210, 4
      %v2213 = vrot.slane %v2054, 5
      %v2214 = vsel %vm1007, %v2212, %v2213
      %2215 = vrot.lane.b32.xlu0 %v2106, 20
      %v2216 = vpop.permute.xlu0 %2215
      %2217 = vrot.lane.b32.xlu0 %v2109, 20
      %v2218 = vpop.permute.xlu0 %2217
      %2219 = vrot.lane.b32.xlu0 %v2113, 20
      %v2220 = vpop.permute.xlu0 %2219
      %2221 = vrot.lane.b32.xlu0 %v2116, 20
      %v2222 = vpop.permute.xlu0 %2221
      %2223 = vrot.lane.b32.xlu0 %v2120, 20
      %v2224 = vpop.permute.xlu0 %2223
      %2225 = vrot.lane.b32.xlu0 %v2123, 20
      %v2226 = vpop.permute.xlu0 %2225
      %2227 = vrot.lane.b32.xlu0 %v2127, 20
      %v2228 = vpop.permute.xlu0 %2227
      %2229 = vrot.lane.b32.xlu0 %v2130, 20
      %v2230 = vpop.permute.xlu0 %2229
      %2231 = vrot.lane.b32.xlu0 %v2134, 20
      %v2232 = vpop.permute.xlu0 %2231
      %2233 = vrot.lane.b32.xlu0 %v2137, 20
      %v2234 = vpop.permute.xlu0 %2233
      %2235 = vrot.lane.b32.xlu0 %v2141, 20
      %v2236 = vpop.permute.xlu0 %2235
      %2237 = vrot.lane.b32.xlu0 %v2144, 20
      %v2238 = vpop.permute.xlu0 %2237
      %2239 = vrot.lane.b32.xlu0 %v2148, 20
      %v2240 = vpop.permute.xlu0 %2239
      %2241 = vrot.lane.b32.xlu0 %v2151, 20
      %v2242 = vpop.permute.xlu0 %2241
      %2243 = vrot.lane.b32.xlu0 %v2155, 20
      %v2244 = vpop.permute.xlu0 %2243
      %2245 = vrot.lane.b32.xlu0 %v2158, 20
      %v2246 = vpop.permute.xlu0 %2245
      %2247 = vrot.lane.b32.xlu0 %v2162, 20
      %v2248 = vpop.permute.xlu0 %2247
      %2249 = vrot.lane.b32.xlu0 %v2165, 20
      %v2250 = vpop.permute.xlu0 %2249
      %2251 = vrot.lane.b32.xlu0 %v2169, 20
      %v2252 = vpop.permute.xlu0 %2251
      %2253 = vrot.lane.b32.xlu0 %v2172, 20
      %v2254 = vpop.permute.xlu0 %2253
      %2255 = vrot.lane.b32.xlu0 %v2176, 20
      %v2256 = vpop.permute.xlu0 %2255
      %2257 = vrot.lane.b32.xlu0 %v2179, 20
      %v2258 = vpop.permute.xlu0 %2257
      %2259 = vrot.lane.b32.xlu0 %v2183, 20
      %v2260 = vpop.permute.xlu0 %2259
      %2261 = vrot.lane.b32.xlu0 %v2186, 20
      %v2262 = vpop.permute.xlu0 %2261
      %2263 = vrot.lane.b32.xlu0 %v2190, 20
      %v2264 = vpop.permute.xlu0 %2263
      %2265 = vrot.lane.b32.xlu0 %v2193, 20
      %v2266 = vpop.permute.xlu0 %2265
      %2267 = vrot.lane.b32.xlu0 %v2197, 20
      %v2268 = vpop.permute.xlu0 %2267
      %2269 = vrot.lane.b32.xlu0 %v2200, 20
      %v2270 = vpop.permute.xlu0 %2269
      %2271 = vrot.lane.b32.xlu0 %v2204, 20
      %v2272 = vpop.permute.xlu0 %2271
      %2273 = vrot.lane.b32.xlu0 %v2207, 20
      %v2274 = vpop.permute.xlu0 %2273
      %2275 = vrot.lane.b32.xlu0 %v2211, 20
      %v2276 = vpop.permute.xlu0 %2275
      %2277 = vrot.lane.b32.xlu0 %v2214, 20
      %v2278 = vpop.permute.xlu0 %2277
      %vm2311 = vcmask 191648
      %2312 = vst.msk [vmem:[#allocation2] sm:$0xf] %vm2311, %v2216
      %2313 = vst.msk [vmem:[#allocation2 + $0x4] sm:$0xf] %vm2311, %v2218
      %2314 = vst.msk [vmem:[#allocation2 + $0x8] sm:$0xf] %vm2311, %v2220
      %2315 = vst.msk [vmem:[#allocation2 + $0xc] sm:$0xf] %vm2311, %v2222
      %2316 = vst.msk [vmem:[#allocation2 + $0x10] sm:$0xf] %vm2311, %v2224
      %2317 = vst.msk [vmem:[#allocation2 + $0x14] sm:$0xf] %vm2311, %v2226
      %2318 = vst.msk [vmem:[#allocation2 + $0x18] sm:$0xf] %vm2311, %v2228
      %2319 = vst.msk [vmem:[#allocation2 + $0x1c] sm:$0xf] %vm2311, %v2230
      %2320 = vst.msk [vmem:[#allocation2 + $0x20] sm:$0xf] %vm2311, %v2232
      %2321 = vst.msk [vmem:[#allocation2 + $0x24] sm:$0xf] %vm2311, %v2234
      %2322 = vst.msk [vmem:[#allocation2 + $0x28] sm:$0xf] %vm2311, %v2236
      %2323 = vst.msk [vmem:[#allocation2 + $0x2c] sm:$0xf] %vm2311, %v2238
      %2324 = vst.msk [vmem:[#allocation2 + $0x30] sm:$0xf] %vm2311, %v2240
      %2325 = vst.msk [vmem:[#allocation2 + $0x34] sm:$0xf] %vm2311, %v2242
      %2326 = vst.msk [vmem:[#allocation2 + $0x38] sm:$0xf] %vm2311, %v2244
      %2327 = vst.msk [vmem:[#allocation2 + $0x3c] sm:$0xf] %vm2311, %v2246
      %2328 = vst.msk [vmem:[#allocation2 + $0x40] sm:$0xf] %vm2311, %v2248
      %2329 = vst.msk [vmem:[#allocation2 + $0x44] sm:$0xf] %vm2311, %v2250
      %2330 = vst.msk [vmem:[#allocation2 + $0x48] sm:$0xf] %vm2311, %v2252
      %2331 = vst.msk [vmem:[#allocation2 + $0x4c] sm:$0xf] %vm2311, %v2254
      %2332 = vst.msk [vmem:[#allocation2 + $0x50] sm:$0xf] %vm2311, %v2256
      %2333 = vst.msk [vmem:[#allocation2 + $0x54] sm:$0xf] %vm2311, %v2258
      %2334 = vst.msk [vmem:[#allocation2 + $0x58] sm:$0xf] %vm2311, %v2260
      %2335 = vst.msk [vmem:[#allocation2 + $0x5c] sm:$0xf] %vm2311, %v2262
      %2336 = vst.msk [vmem:[#allocation2 + $0x60] sm:$0xf] %vm2311, %v2264
      %2337 = vst.msk [vmem:[#allocation2 + $0x64] sm:$0xf] %vm2311, %v2266
      %2338 = vst.msk [vmem:[#allocation2 + $0x68] sm:$0xf] %vm2311, %v2268
      %2339 = vst.msk [vmem:[#allocation2 + $0x6c] sm:$0xf] %vm2311, %v2270
      %2340 = vst.msk [vmem:[#allocation2 + $0x70] sm:$0xf] %vm2311, %v2272
      %2341 = vst.msk [vmem:[#allocation2 + $0x74] sm:$0xf] %vm2311, %v2274
      %2342 = vst.msk [vmem:[#allocation2 + $0x78] sm:$0xf] %vm2311, %v2276
      %2343 = vst.msk [vmem:[#allocation2 + $0x7c] sm:$0xf] %vm2311, %v2278
      %s2344 = sadd.s32 %s243, 2
      %s2345 = smul.u32 %s2344, 3
      %s2346 = smul.addr %s2345, 4
      %s2347 = scalar_lea.vmem %s220, %s2346
      %v2348 = vld [vmem:[%s2347] sm:$0xf]
      %v2349 = vld [vmem:[%s2347 + $0x4] sm:$0xf]
      %v2350 = vld [vmem:[%s2347 + $0xc] sm:$0xf]
      %v2351 = vld [vmem:[%s2347 + $0x10] sm:$0xf]
      %v2352 = vld [vmem:[%s2347 + $0x18] sm:$0xf]
      %v2353 = vld [vmem:[%s2347 + $0x1c] sm:$0xf]
      %v2354 = vld [vmem:[%s2347 + $0x24] sm:$0xf]
      %v2355 = vld [vmem:[%s2347 + $0x28] sm:$0xf]
      %v2356 = vld [vmem:[%s2347 + $0x30] sm:$0xf]
      %v2357 = vld [vmem:[%s2347 + $0x34] sm:$0xf]
      %v2358 = vld [vmem:[%s2347 + $0x3c] sm:$0xf]
      %v2359 = vld [vmem:[%s2347 + $0x40] sm:$0xf]
      %v2360 = vld [vmem:[%s2347 + $0x48] sm:$0xf]
      %v2361 = vld [vmem:[%s2347 + $0x4c] sm:$0xf]
      %v2362 = vld [vmem:[%s2347 + $0x54] sm:$0xf]
      %v2363 = vld [vmem:[%s2347 + $0x58] sm:$0xf]
      %v2364 = vld [vmem:[%s2347 + $0x60] sm:$0xf]
      %v2365 = vld [vmem:[%s2347 + $0x64] sm:$0xf]
      %v2366 = vld [vmem:[%s2347 + $0x6c] sm:$0xf]
      %v2367 = vld [vmem:[%s2347 + $0x70] sm:$0xf]
      %v2368 = vld [vmem:[%s2347 + $0x78] sm:$0xf]
      %v2369 = vld [vmem:[%s2347 + $0x7c] sm:$0xf]
      %v2370 = vld [vmem:[%s2347 + $0x84] sm:$0xf]
      %v2371 = vld [vmem:[%s2347 + $0x88] sm:$0xf]
      %v2372 = vld [vmem:[%s2347 + $0x90] sm:$0xf]
      %v2373 = vld [vmem:[%s2347 + $0x94] sm:$0xf]
      %v2374 = vld [vmem:[%s2347 + $0x9c] sm:$0xf]
      %v2375 = vld [vmem:[%s2347 + $0xa0] sm:$0xf]
      %v2376 = vld [vmem:[%s2347 + $0xa8] sm:$0xf]
      %v2377 = vld [vmem:[%s2347 + $0xac] sm:$0xf]
      %v2378 = vld [vmem:[%s2347 + $0xb4] sm:$0xf]
      %v2379 = vld [vmem:[%s2347 + $0xb8] sm:$0xf]
      %2412 = vrot.lane.b32.xlu0 %v2348, 24
      %v2413 = vpop.permute.xlu0 %2412
      %2414 = vrot.lane.b32.xlu0 %v2349, 24
      %v2415 = vpop.permute.xlu0 %2414
      %2416 = vrot.lane.b32.xlu0 %v2350, 24
      %v2417 = vpop.permute.xlu0 %2416
      %2418 = vrot.lane.b32.xlu0 %v2351, 24
      %v2419 = vpop.permute.xlu0 %2418
      %2420 = vrot.lane.b32.xlu0 %v2352, 24
      %v2421 = vpop.permute.xlu0 %2420
      %2422 = vrot.lane.b32.xlu0 %v2353, 24
      %v2423 = vpop.permute.xlu0 %2422
      %2424 = vrot.lane.b32.xlu0 %v2354, 24
      %v2425 = vpop.permute.xlu0 %2424
      %2426 = vrot.lane.b32.xlu0 %v2355, 24
      %v2427 = vpop.permute.xlu0 %2426
      %2428 = vrot.lane.b32.xlu0 %v2356, 24
      %v2429 = vpop.permute.xlu0 %2428
      %2430 = vrot.lane.b32.xlu0 %v2357, 24
      %v2431 = vpop.permute.xlu0 %2430
      %2432 = vrot.lane.b32.xlu0 %v2358, 24
      %v2433 = vpop.permute.xlu0 %2432
      %2434 = vrot.lane.b32.xlu0 %v2359, 24
      %v2435 = vpop.permute.xlu0 %2434
      %2436 = vrot.lane.b32.xlu0 %v2360, 24
      %v2437 = vpop.permute.xlu0 %2436
      %2438 = vrot.lane.b32.xlu0 %v2361, 24
      %v2439 = vpop.permute.xlu0 %2438
      %2440 = vrot.lane.b32.xlu0 %v2362, 24
      %v2441 = vpop.permute.xlu0 %2440
      %2442 = vrot.lane.b32.xlu0 %v2363, 24
      %v2443 = vpop.permute.xlu0 %2442
      %2444 = vrot.lane.b32.xlu0 %v2364, 24
      %v2445 = vpop.permute.xlu0 %2444
      %2446 = vrot.lane.b32.xlu0 %v2365, 24
      %v2447 = vpop.permute.xlu0 %2446
      %2448 = vrot.lane.b32.xlu0 %v2366, 24
      %v2449 = vpop.permute.xlu0 %2448
      %2450 = vrot.lane.b32.xlu0 %v2367, 24
      %v2451 = vpop.permute.xlu0 %2450
      %2452 = vrot.lane.b32.xlu0 %v2368, 24
      %v2453 = vpop.permute.xlu0 %2452
      %2454 = vrot.lane.b32.xlu0 %v2369, 24
      %v2455 = vpop.permute.xlu0 %2454
      %2456 = vrot.lane.b32.xlu0 %v2370, 24
      %v2457 = vpop.permute.xlu0 %2456
      %2458 = vrot.lane.b32.xlu0 %v2371, 24
      %v2459 = vpop.permute.xlu0 %2458
      %2460 = vrot.lane.b32.xlu0 %v2372, 24
      %v2461 = vpop.permute.xlu0 %2460
      %2462 = vrot.lane.b32.xlu0 %v2373, 24
      %v2463 = vpop.permute.xlu0 %2462
      %2464 = vrot.lane.b32.xlu0 %v2374, 24
      %v2465 = vpop.permute.xlu0 %2464
      %2466 = vrot.lane.b32.xlu0 %v2375, 24
      %v2467 = vpop.permute.xlu0 %2466
      %2468 = vrot.lane.b32.xlu0 %v2376, 24
      %v2469 = vpop.permute.xlu0 %2468
      %2470 = vrot.lane.b32.xlu0 %v2377, 24
      %v2471 = vpop.permute.xlu0 %2470
      %2472 = vrot.lane.b32.xlu0 %v2378, 24
      %v2473 = vpop.permute.xlu0 %2472
      %2474 = vrot.lane.b32.xlu0 %v2379, 24
      %v2475 = vpop.permute.xlu0 %2474
      %vm2508 = vcmask 224448
      %2509 = vst.msk [vmem:[#allocation2] sm:$0xf] %vm2508, %v2413
      %2510 = vst.msk [vmem:[#allocation2 + $0x4] sm:$0xf] %vm2508, %v2415
      %2511 = vst.msk [vmem:[#allocation2 + $0x8] sm:$0xf] %vm2508, %v2417
      %2512 = vst.msk [vmem:[#allocation2 + $0xc] sm:$0xf] %vm2508, %v2419
      %2513 = vst.msk [vmem:[#allocation2 + $0x10] sm:$0xf] %vm2508, %v2421
      %2514 = vst.msk [vmem:[#allocation2 + $0x14] sm:$0xf] %vm2508, %v2423
      %2515 = vst.msk [vmem:[#allocation2 + $0x18] sm:$0xf] %vm2508, %v2425
      %2516 = vst.msk [vmem:[#allocation2 + $0x1c] sm:$0xf] %vm2508, %v2427
      %2517 = vst.msk [vmem:[#allocation2 + $0x20] sm:$0xf] %vm2508, %v2429
      %2518 = vst.msk [vmem:[#allocation2 + $0x24] sm:$0xf] %vm2508, %v2431
      %2519 = vst.msk [vmem:[#allocation2 + $0x28] sm:$0xf] %vm2508, %v2433
      %2520 = vst.msk [vmem:[#allocation2 + $0x2c] sm:$0xf] %vm2508, %v2435
      %2521 = vst.msk [vmem:[#allocation2 + $0x30] sm:$0xf] %vm2508, %v2437
      %2522 = vst.msk [vmem:[#allocation2 + $0x34] sm:$0xf] %vm2508, %v2439
      %2523 = vst.msk [vmem:[#allocation2 + $0x38] sm:$0xf] %vm2508, %v2441
      %2524 = vst.msk [vmem:[#allocation2 + $0x3c] sm:$0xf] %vm2508, %v2443
      %2525 = vst.msk [vmem:[#allocation2 + $0x40] sm:$0xf] %vm2508, %v2445
      %2526 = vst.msk [vmem:[#allocation2 + $0x44] sm:$0xf] %vm2508, %v2447
      %2527 = vst.msk [vmem:[#allocation2 + $0x48] sm:$0xf] %vm2508, %v2449
      %2528 = vst.msk [vmem:[#allocation2 + $0x4c] sm:$0xf] %vm2508, %v2451
      %2529 = vst.msk [vmem:[#allocation2 + $0x50] sm:$0xf] %vm2508, %v2453
      %2530 = vst.msk [vmem:[#allocation2 + $0x54] sm:$0xf] %vm2508, %v2455
      %2531 = vst.msk [vmem:[#allocation2 + $0x58] sm:$0xf] %vm2508, %v2457
      %2532 = vst.msk [vmem:[#allocation2 + $0x5c] sm:$0xf] %vm2508, %v2459
      %2533 = vst.msk [vmem:[#allocation2 + $0x60] sm:$0xf] %vm2508, %v2461
      %2534 = vst.msk [vmem:[#allocation2 + $0x64] sm:$0xf] %vm2508, %v2463
      %2535 = vst.msk [vmem:[#allocation2 + $0x68] sm:$0xf] %vm2508, %v2465
      %2536 = vst.msk [vmem:[#allocation2 + $0x6c] sm:$0xf] %vm2508, %v2467
      %2537 = vst.msk [vmem:[#allocation2 + $0x70] sm:$0xf] %vm2508, %v2469
      %2538 = vst.msk [vmem:[#allocation2 + $0x74] sm:$0xf] %vm2508, %v2471
      %2539 = vst.msk [vmem:[#allocation2 + $0x78] sm:$0xf] %vm2508, %v2473
      %2540 = vst.msk [vmem:[#allocation2 + $0x7c] sm:$0xf] %vm2508, %v2475
      %v2541 = vld [vmem:[%s2347] sm:$0xf]
      %v2542 = vld [vmem:[%s2347 + $0x4] sm:$0xf]
      %v2543 = vld [vmem:[%s2347 + $0x8] sm:$0x1]
      %v2544 = vld [vmem:[%s2347 + $0xc] sm:$0xf]
      %v2545 = vld [vmem:[%s2347 + $0x10] sm:$0xf]
      %v2546 = vld [vmem:[%s2347 + $0x14] sm:$0x1]
      %v2547 = vld [vmem:[%s2347 + $0x18] sm:$0xf]
      %v2548 = vld [vmem:[%s2347 + $0x1c] sm:$0xf]
      %v2549 = vld [vmem:[%s2347 + $0x20] sm:$0x1]
      %v2550 = vld [vmem:[%s2347 + $0x24] sm:$0xf]
      %v2551 = vld [vmem:[%s2347 + $0x28] sm:$0xf]
      %v2552 = vld [vmem:[%s2347 + $0x2c] sm:$0x1]
      %v2553 = vld [vmem:[%s2347 + $0x30] sm:$0xf]
      %v2554 = vld [vmem:[%s2347 + $0x34] sm:$0xf]
      %v2555 = vld [vmem:[%s2347 + $0x38] sm:$0x1]
      %v2556 = vld [vmem:[%s2347 + $0x3c] sm:$0xf]
      %v2557 = vld [vmem:[%s2347 + $0x40] sm:$0xf]
      %v2558 = vld [vmem:[%s2347 + $0x44] sm:$0x1]
      %v2559 = vld [vmem:[%s2347 + $0x48] sm:$0xf]
      %v2560 = vld [vmem:[%s2347 + $0x4c] sm:$0xf]
      %v2561 = vld [vmem:[%s2347 + $0x50] sm:$0x1]
      %v2562 = vld [vmem:[%s2347 + $0x54] sm:$0xf]
      %v2563 = vld [vmem:[%s2347 + $0x58] sm:$0xf]
      %v2564 = vld [vmem:[%s2347 + $0x5c] sm:$0x1]
      %v2565 = vld [vmem:[%s2347 + $0x60] sm:$0xf]
      %v2566 = vld [vmem:[%s2347 + $0x64] sm:$0xf]
      %v2567 = vld [vmem:[%s2347 + $0x68] sm:$0x1]
      %v2568 = vld [vmem:[%s2347 + $0x6c] sm:$0xf]
      %v2569 = vld [vmem:[%s2347 + $0x70] sm:$0xf]
      %v2570 = vld [vmem:[%s2347 + $0x74] sm:$0x1]
      %v2571 = vld [vmem:[%s2347 + $0x78] sm:$0xf]
      %v2572 = vld [vmem:[%s2347 + $0x7c] sm:$0xf]
      %v2573 = vld [vmem:[%s2347 + $0x80] sm:$0x1]
      %v2574 = vld [vmem:[%s2347 + $0x84] sm:$0xf]
      %v2575 = vld [vmem:[%s2347 + $0x88] sm:$0xf]
      %v2576 = vld [vmem:[%s2347 + $0x8c] sm:$0x1]
      %v2577 = vld [vmem:[%s2347 + $0x90] sm:$0xf]
      %v2578 = vld [vmem:[%s2347 + $0x94] sm:$0xf]
      %v2579 = vld [vmem:[%s2347 + $0x98] sm:$0x1]
      %v2580 = vld [vmem:[%s2347 + $0x9c] sm:$0xf]
      %v2581 = vld [vmem:[%s2347 + $0xa0] sm:$0xf]
      %v2582 = vld [vmem:[%s2347 + $0xa4] sm:$0x1]
      %v2583 = vld [vmem:[%s2347 + $0xa8] sm:$0xf]
      %v2584 = vld [vmem:[%s2347 + $0xac] sm:$0xf]
      %v2585 = vld [vmem:[%s2347 + $0xb0] sm:$0x1]
      %v2586 = vld [vmem:[%s2347 + $0xb4] sm:$0xf]
      %v2587 = vld [vmem:[%s2347 + $0xb8] sm:$0xf]
      %v2588 = vld [vmem:[%s2347 + $0xbc] sm:$0x1]
      %v2590 = vshrl.u32 %v2541, 16
      %v2592 = vrot.slane %v2590, 4
      %v2593 = vshll.u32 %v2541, 16
      %v2595 = vrot.slane %v2593, 5
      %v2596 = vor.u32 %v2592, %v2595
      %v2597 = vrot.slane %v2596, 4
      %v2599 = vshll.u32 %v2542, 16
      %v2601 = vrot.slane %v2599, 5
      %v2602 = vsel %vm395, %v2597, %v2601
      %v2603 = vshrl.u32 %v2542, 16
      %v2605 = vrot.slane %v2603, 4
      %v2606 = vor.u32 %v2605, %v2601
      %v2607 = vrot.slane %v2606, 4
      %v2609 = vshll.u32 %v2543, 16
      %v2611 = vrot.slane %v2609, 5
      %v2612 = vsel %vm395, %v2607, %v2611
      %v2614 = vshrl.u32 %v2544, 16
      %v2616 = vrot.slane %v2614, 4
      %v2617 = vshll.u32 %v2544, 16
      %v2619 = vrot.slane %v2617, 5
      %v2620 = vor.u32 %v2616, %v2619
      %v2621 = vrot.slane %v2620, 4
      %v2623 = vshll.u32 %v2545, 16
      %v2625 = vrot.slane %v2623, 5
      %v2626 = vsel %vm395, %v2621, %v2625
      %v2627 = vshrl.u32 %v2545, 16
      %v2629 = vrot.slane %v2627, 4
      %v2630 = vor.u32 %v2629, %v2625
      %v2631 = vrot.slane %v2630, 4
      %v2633 = vshll.u32 %v2546, 16
      %v2635 = vrot.slane %v2633, 5
      %v2636 = vsel %vm395, %v2631, %v2635
      %v2638 = vshrl.u32 %v2547, 16
      %v2640 = vrot.slane %v2638, 4
      %v2641 = vshll.u32 %v2547, 16
      %v2643 = vrot.slane %v2641, 5
      %v2644 = vor.u32 %v2640, %v2643
      %v2645 = vrot.slane %v2644, 4
      %v2647 = vshll.u32 %v2548, 16
      %v2649 = vrot.slane %v2647, 5
      %v2650 = vsel %vm395, %v2645, %v2649
      %v2651 = vshrl.u32 %v2548, 16
      %v2653 = vrot.slane %v2651, 4
      %v2654 = vor.u32 %v2653, %v2649
      %v2655 = vrot.slane %v2654, 4
      %v2657 = vshll.u32 %v2549, 16
      %v2659 = vrot.slane %v2657, 5
      %v2660 = vsel %vm395, %v2655, %v2659
      %v2662 = vshrl.u32 %v2550, 16
      %v2664 = vrot.slane %v2662, 4
      %v2665 = vshll.u32 %v2550, 16
      %v2667 = vrot.slane %v2665, 5
      %v2668 = vor.u32 %v2664, %v2667
      %v2669 = vrot.slane %v2668, 4
      %v2671 = vshll.u32 %v2551, 16
      %v2673 = vrot.slane %v2671, 5
      %v2674 = vsel %vm395, %v2669, %v2673
      %v2675 = vshrl.u32 %v2551, 16
      %v2677 = vrot.slane %v2675, 4
      %v2678 = vor.u32 %v2677, %v2673
      %v2679 = vrot.slane %v2678, 4
      %v2681 = vshll.u32 %v2552, 16
      %v2683 = vrot.slane %v2681, 5
      %v2684 = vsel %vm395, %v2679, %v2683
      %v2686 = vshrl.u32 %v2553, 16
      %v2688 = vrot.slane %v2686, 4
      %v2689 = vshll.u32 %v2553, 16
      %v2691 = vrot.slane %v2689, 5
      %v2692 = vor.u32 %v2688, %v2691
      %v2693 = vrot.slane %v2692, 4
      %v2695 = vshll.u32 %v2554, 16
      %v2697 = vrot.slane %v2695, 5
      %v2698 = vsel %vm395, %v2693, %v2697
      %v2699 = vshrl.u32 %v2554, 16
      %v2701 = vrot.slane %v2699, 4
      %v2702 = vor.u32 %v2701, %v2697
      %v2703 = vrot.slane %v2702, 4
      %v2705 = vshll.u32 %v2555, 16
      %v2707 = vrot.slane %v2705, 5
      %v2708 = vsel %vm395, %v2703, %v2707
      %v2710 = vshrl.u32 %v2556, 16
      %v2712 = vrot.slane %v2710, 4
      %v2713 = vshll.u32 %v2556, 16
      %v2715 = vrot.slane %v2713, 5
      %v2716 = vor.u32 %v2712, %v2715
      %v2717 = vrot.slane %v2716, 4
      %v2719 = vshll.u32 %v2557, 16
      %v2721 = vrot.slane %v2719, 5
      %v2722 = vsel %vm395, %v2717, %v2721
      %v2723 = vshrl.u32 %v2557, 16
      %v2725 = vrot.slane %v2723, 4
      %v2726 = vor.u32 %v2725, %v2721
      %v2727 = vrot.slane %v2726, 4
      %v2729 = vshll.u32 %v2558, 16
      %v2731 = vrot.slane %v2729, 5
      %v2732 = vsel %vm395, %v2727, %v2731
      %v2734 = vshrl.u32 %v2559, 16
      %v2736 = vrot.slane %v2734, 4
      %v2737 = vshll.u32 %v2559, 16
      %v2739 = vrot.slane %v2737, 5
      %v2740 = vor.u32 %v2736, %v2739
      %v2741 = vrot.slane %v2740, 4
      %v2743 = vshll.u32 %v2560, 16
      %v2745 = vrot.slane %v2743, 5
      %v2746 = vsel %vm395, %v2741, %v2745
      %v2747 = vshrl.u32 %v2560, 16
      %v2749 = vrot.slane %v2747, 4
      %v2750 = vor.u32 %v2749, %v2745
      %v2751 = vrot.slane %v2750, 4
      %v2753 = vshll.u32 %v2561, 16
      %v2755 = vrot.slane %v2753, 5
      %v2756 = vsel %vm395, %v2751, %v2755
      %v2758 = vshrl.u32 %v2562, 16
      %v2760 = vrot.slane %v2758, 4
      %v2761 = vshll.u32 %v2562, 16
      %v2763 = vrot.slane %v2761, 5
      %v2764 = vor.u32 %v2760, %v2763
      %v2765 = vrot.slane %v2764, 4
      %v2767 = vshll.u32 %v2563, 16
      %v2769 = vrot.slane %v2767, 5
      %v2770 = vsel %vm395, %v2765, %v2769
      %v2771 = vshrl.u32 %v2563, 16
      %v2773 = vrot.slane %v2771, 4
      %v2774 = vor.u32 %v2773, %v2769
      %v2775 = vrot.slane %v2774, 4
      %v2777 = vshll.u32 %v2564, 16
      %v2779 = vrot.slane %v2777, 5
      %v2780 = vsel %vm395, %v2775, %v2779
      %v2782 = vshrl.u32 %v2565, 16
      %v2784 = vrot.slane %v2782, 4
      %v2785 = vshll.u32 %v2565, 16
      %v2787 = vrot.slane %v2785, 5
      %v2788 = vor.u32 %v2784, %v2787
      %v2789 = vrot.slane %v2788, 4
      %v2791 = vshll.u32 %v2566, 16
      %v2793 = vrot.slane %v2791, 5
      %v2794 = vsel %vm395, %v2789, %v2793
      %v2795 = vshrl.u32 %v2566, 16
      %v2797 = vrot.slane %v2795, 4
      %v2798 = vor.u32 %v2797, %v2793
      %v2799 = vrot.slane %v2798, 4
      %v2801 = vshll.u32 %v2567, 16
      %v2803 = vrot.slane %v2801, 5
      %v2804 = vsel %vm395, %v2799, %v2803
      %v2806 = vshrl.u32 %v2568, 16
      %v2808 = vrot.slane %v2806, 4
      %v2809 = vshll.u32 %v2568, 16
      %v2811 = vrot.slane %v2809, 5
      %v2812 = vor.u32 %v2808, %v2811
      %v2813 = vrot.slane %v2812, 4
      %v2815 = vshll.u32 %v2569, 16
      %v2817 = vrot.slane %v2815, 5
      %v2818 = vsel %vm395, %v2813, %v2817
      %v2819 = vshrl.u32 %v2569, 16
      %v2821 = vrot.slane %v2819, 4
      %v2822 = vor.u32 %v2821, %v2817
      %v2823 = vrot.slane %v2822, 4
      %v2825 = vshll.u32 %v2570, 16
      %v2827 = vrot.slane %v2825, 5
      %v2828 = vsel %vm395, %v2823, %v2827
      %v2830 = vshrl.u32 %v2571, 16
      %v2832 = vrot.slane %v2830, 4
      %v2833 = vshll.u32 %v2571, 16
      %v2835 = vrot.slane %v2833, 5
      %v2836 = vor.u32 %v2832, %v2835
      %v2837 = vrot.slane %v2836, 4
      %v2839 = vshll.u32 %v2572, 16
      %v2841 = vrot.slane %v2839, 5
      %v2842 = vsel %vm395, %v2837, %v2841
      %v2843 = vshrl.u32 %v2572, 16
      %v2845 = vrot.slane %v2843, 4
      %v2846 = vor.u32 %v2845, %v2841
      %v2847 = vrot.slane %v2846, 4
      %v2849 = vshll.u32 %v2573, 16
      %v2851 = vrot.slane %v2849, 5
      %v2852 = vsel %vm395, %v2847, %v2851
      %v2854 = vshrl.u32 %v2574, 16
      %v2856 = vrot.slane %v2854, 4
      %v2857 = vshll.u32 %v2574, 16
      %v2859 = vrot.slane %v2857, 5
      %v2860 = vor.u32 %v2856, %v2859
      %v2861 = vrot.slane %v2860, 4
      %v2863 = vshll.u32 %v2575, 16
      %v2865 = vrot.slane %v2863, 5
      %v2866 = vsel %vm395, %v2861, %v2865
      %v2867 = vshrl.u32 %v2575, 16
      %v2869 = vrot.slane %v2867, 4
      %v2870 = vor.u32 %v2869, %v2865
      %v2871 = vrot.slane %v2870, 4
      %v2873 = vshll.u32 %v2576, 16
      %v2875 = vrot.slane %v2873, 5
      %v2876 = vsel %vm395, %v2871, %v2875
      %v2878 = vshrl.u32 %v2577, 16
      %v2880 = vrot.slane %v2878, 4
      %v2881 = vshll.u32 %v2577, 16
      %v2883 = vrot.slane %v2881, 5
      %v2884 = vor.u32 %v2880, %v2883
      %v2885 = vrot.slane %v2884, 4
      %v2887 = vshll.u32 %v2578, 16
      %v2889 = vrot.slane %v2887, 5
      %v2890 = vsel %vm395, %v2885, %v2889
      %v2891 = vshrl.u32 %v2578, 16
      %v2893 = vrot.slane %v2891, 4
      %v2894 = vor.u32 %v2893, %v2889
      %v2895 = vrot.slane %v2894, 4
      %v2897 = vshll.u32 %v2579, 16
      %v2899 = vrot.slane %v2897, 5
      %v2900 = vsel %vm395, %v2895, %v2899
      %v2902 = vshrl.u32 %v2580, 16
      %v2904 = vrot.slane %v2902, 4
      %v2905 = vshll.u32 %v2580, 16
      %v2907 = vrot.slane %v2905, 5
      %v2908 = vor.u32 %v2904, %v2907
      %v2909 = vrot.slane %v2908, 4
      %v2911 = vshll.u32 %v2581, 16
      %v2913 = vrot.slane %v2911, 5
      %v2914 = vsel %vm395, %v2909, %v2913
      %v2915 = vshrl.u32 %v2581, 16
      %v2917 = vrot.slane %v2915, 4
      %v2918 = vor.u32 %v2917, %v2913
      %v2919 = vrot.slane %v2918, 4
      %v2921 = vshll.u32 %v2582, 16
      %v2923 = vrot.slane %v2921, 5
      %v2924 = vsel %vm395, %v2919, %v2923
      %v2926 = vshrl.u32 %v2583, 16
      %v2928 = vrot.slane %v2926, 4
      %v2929 = vshll.u32 %v2583, 16
      %v2931 = vrot.slane %v2929, 5
      %v2932 = vor.u32 %v2928, %v2931
      %v2933 = vrot.slane %v2932, 4
      %v2935 = vshll.u32 %v2584, 16
      %v2937 = vrot.slane %v2935, 5
      %v2938 = vsel %vm395, %v2933, %v2937
      %v2939 = vshrl.u32 %v2584, 16
      %v2941 = vrot.slane %v2939, 4
      %v2942 = vor.u32 %v2941, %v2937
      %v2943 = vrot.slane %v2942, 4
      %v2945 = vshll.u32 %v2585, 16
      %v2947 = vrot.slane %v2945, 5
      %v2948 = vsel %vm395, %v2943, %v2947
      %v2950 = vshrl.u32 %v2586, 16
      %v2952 = vrot.slane %v2950, 4
      %v2953 = vshll.u32 %v2586, 16
      %v2955 = vrot.slane %v2953, 5
      %v2956 = vor.u32 %v2952, %v2955
      %v2957 = vrot.slane %v2956, 4
      %v2959 = vshll.u32 %v2587, 16
      %v2961 = vrot.slane %v2959, 5
      %v2962 = vsel %vm395, %v2957, %v2961
      %v2963 = vshrl.u32 %v2587, 16
      %v2965 = vrot.slane %v2963, 4
      %v2966 = vor.u32 %v2965, %v2961
      %v2967 = vrot.slane %v2966, 4
      %v2969 = vshll.u32 %v2588, 16
      %v2971 = vrot.slane %v2969, 5
      %v2972 = vsel %vm395, %v2967, %v2971
      %2973 = vrot.lane.b32.xlu0 %v2602, 28
      %v2974 = vpop.permute.xlu0 %2973
      %2975 = vrot.lane.b32.xlu0 %v2612, 28
      %v2976 = vpop.permute.xlu0 %2975
      %2977 = vrot.lane.b32.xlu0 %v2626, 28
      %v2978 = vpop.permute.xlu0 %2977
      %2979 = vrot.lane.b32.xlu0 %v2636, 28
      %v2980 = vpop.permute.xlu0 %2979
      %2981 = vrot.lane.b32.xlu0 %v2650, 28
      %v2982 = vpop.permute.xlu0 %2981
      %2983 = vrot.lane.b32.xlu0 %v2660, 28
      %v2984 = vpop.permute.xlu0 %2983
      %2985 = vrot.lane.b32.xlu0 %v2674, 28
      %v2986 = vpop.permute.xlu0 %2985
      %2987 = vrot.lane.b32.xlu0 %v2684, 28
      %v2988 = vpop.permute.xlu0 %2987
      %2989 = vrot.lane.b32.xlu0 %v2698, 28
      %v2990 = vpop.permute.xlu0 %2989
      %2991 = vrot.lane.b32.xlu0 %v2708, 28
      %v2992 = vpop.permute.xlu0 %2991
      %2993 = vrot.lane.b32.xlu0 %v2722, 28
      %v2994 = vpop.permute.xlu0 %2993
      %2995 = vrot.lane.b32.xlu0 %v2732, 28
      %v2996 = vpop.permute.xlu0 %2995
      %2997 = vrot.lane.b32.xlu0 %v2746, 28
      %v2998 = vpop.permute.xlu0 %2997
      %2999 = vrot.lane.b32.xlu0 %v2756, 28
      %v3000 = vpop.permute.xlu0 %2999
      %3001 = vrot.lane.b32.xlu0 %v2770, 28
      %v3002 = vpop.permute.xlu0 %3001
      %3003 = vrot.lane.b32.xlu0 %v2780, 28
      %v3004 = vpop.permute.xlu0 %3003
      %3005 = vrot.lane.b32.xlu0 %v2794, 28
      %v3006 = vpop.permute.xlu0 %3005
      %3007 = vrot.lane.b32.xlu0 %v2804, 28
      %v3008 = vpop.permute.xlu0 %3007
      %3009 = vrot.lane.b32.xlu0 %v2818, 28
      %v3010 = vpop.permute.xlu0 %3009
      %3011 = vrot.lane.b32.xlu0 %v2828, 28
      %v3012 = vpop.permute.xlu0 %3011
      %3013 = vrot.lane.b32.xlu0 %v2842, 28
      %v3014 = vpop.permute.xlu0 %3013
      %3015 = vrot.lane.b32.xlu0 %v2852, 28
      %v3016 = vpop.permute.xlu0 %3015
      %3017 = vrot.lane.b32.xlu0 %v2866, 28
      %v3018 = vpop.permute.xlu0 %3017
      %3019 = vrot.lane.b32.xlu0 %v2876, 28
      %v3020 = vpop.permute.xlu0 %3019
      %3021 = vrot.lane.b32.xlu0 %v2890, 28
      %v3022 = vpop.permute.xlu0 %3021
      %3023 = vrot.lane.b32.xlu0 %v2900, 28
      %v3024 = vpop.permute.xlu0 %3023
      %3025 = vrot.lane.b32.xlu0 %v2914, 28
      %v3026 = vpop.permute.xlu0 %3025
      %3027 = vrot.lane.b32.xlu0 %v2924, 28
      %v3028 = vpop.permute.xlu0 %3027
      %3029 = vrot.lane.b32.xlu0 %v2938, 28
      %v3030 = vpop.permute.xlu0 %3029
      %3031 = vrot.lane.b32.xlu0 %v2948, 28
      %v3032 = vpop.permute.xlu0 %3031
      %3033 = vrot.lane.b32.xlu0 %v2962, 28
      %v3034 = vpop.permute.xlu0 %3033
      %3035 = vrot.lane.b32.xlu0 %v2972, 28
      %v3036 = vpop.permute.xlu0 %3035
      %vm3069 = vcmask 257248
      %3070 = vst.msk [vmem:[#allocation2] sm:$0xf] %vm3069, %v2974
      %3071 = vst.msk [vmem:[#allocation2 + $0x4] sm:$0xf] %vm3069, %v2976
      %3072 = vst.msk [vmem:[#allocation2 + $0x8] sm:$0xf] %vm3069, %v2978
      %3073 = vst.msk [vmem:[#allocation2 + $0xc] sm:$0xf] %vm3069, %v2980
      %3074 = vst.msk [vmem:[#allocation2 + $0x10] sm:$0xf] %vm3069, %v2982
      %3075 = vst.msk [vmem:[#allocation2 + $0x14] sm:$0xf] %vm3069, %v2984
      %3076 = vst.msk [vmem:[#allocation2 + $0x18] sm:$0xf] %vm3069, %v2986
      %3077 = vst.msk [vmem:[#allocation2 + $0x1c] sm:$0xf] %vm3069, %v2988
      %3078 = vst.msk [vmem:[#allocation2 + $0x20] sm:$0xf] %vm3069, %v2990
      %3079 = vst.msk [vmem:[#allocation2 + $0x24] sm:$0xf] %vm3069, %v2992
      %3080 = vst.msk [vmem:[#allocation2 + $0x28] sm:$0xf] %vm3069, %v2994
      %3081 = vst.msk [vmem:[#allocation2 + $0x2c] sm:$0xf] %vm3069, %v2996
      %3082 = vst.msk [vmem:[#allocation2 + $0x30] sm:$0xf] %vm3069, %v2998
      %3083 = vst.msk [vmem:[#allocation2 + $0x34] sm:$0xf] %vm3069, %v3000
      %3084 = vst.msk [vmem:[#allocation2 + $0x38] sm:$0xf] %vm3069, %v3002
      %3085 = vst.msk [vmem:[#allocation2 + $0x3c] sm:$0xf] %vm3069, %v3004
      %3086 = vst.msk [vmem:[#allocation2 + $0x40] sm:$0xf] %vm3069, %v3006
      %3087 = vst.msk [vmem:[#allocation2 + $0x44] sm:$0xf] %vm3069, %v3008
      %3088 = vst.msk [vmem:[#allocation2 + $0x48] sm:$0xf] %vm3069, %v3010
      %3089 = vst.msk [vmem:[#allocation2 + $0x4c] sm:$0xf] %vm3069, %v3012
      %3090 = vst.msk [vmem:[#allocation2 + $0x50] sm:$0xf] %vm3069, %v3014
      %3091 = vst.msk [vmem:[#allocation2 + $0x54] sm:$0xf] %vm3069, %v3016
      %3092 = vst.msk [vmem:[#allocation2 + $0x58] sm:$0xf] %vm3069, %v3018
      %3093 = vst.msk [vmem:[#allocation2 + $0x5c] sm:$0xf] %vm3069, %v3020
      %3094 = vst.msk [vmem:[#allocation2 + $0x60] sm:$0xf] %vm3069, %v3022
      %3095 = vst.msk [vmem:[#allocation2 + $0x64] sm:$0xf] %vm3069, %v3024
      %3096 = vst.msk [vmem:[#allocation2 + $0x68] sm:$0xf] %vm3069, %v3026
      %3097 = vst.msk [vmem:[#allocation2 + $0x6c] sm:$0xf] %vm3069, %v3028
      %3098 = vst.msk [vmem:[#allocation2 + $0x70] sm:$0xf] %vm3069, %v3030
      %3099 = vst.msk [vmem:[#allocation2 + $0x74] sm:$0xf] %vm3069, %v3032
      %3100 = vst.msk [vmem:[#allocation2 + $0x78] sm:$0xf] %vm3069, %v3034
      %3101 = vst.msk [vmem:[#allocation2 + $0x7c] sm:$0xf] %vm3069, %v3036
      %v3102 = vld [vmem:[%s2347] sm:$0xe]
      %v3103 = vld [vmem:[%s2347 + $0x4] sm:$0xf]
      %v3104 = vld [vmem:[%s2347 + $0x8] sm:$0x1]
      %v3105 = vld [vmem:[%s2347 + $0xc] sm:$0xe]
      %v3106 = vld [vmem:[%s2347 + $0x10] sm:$0xf]
      %v3107 = vld [vmem:[%s2347 + $0x14] sm:$0x1]
      %v3108 = vld [vmem:[%s2347 + $0x18] sm:$0xe]
      %v3109 = vld [vmem:[%s2347 + $0x1c] sm:$0xf]
      %v3110 = vld [vmem:[%s2347 + $0x20] sm:$0x1]
      %v3111 = vld [vmem:[%s2347 + $0x24] sm:$0xe]
      %v3112 = vld [vmem:[%s2347 + $0x28] sm:$0xf]
      %v3113 = vld [vmem:[%s2347 + $0x2c] sm:$0x1]
      %v3114 = vld [vmem:[%s2347 + $0x30] sm:$0xe]
      %v3115 = vld [vmem:[%s2347 + $0x34] sm:$0xf]
      %v3116 = vld [vmem:[%s2347 + $0x38] sm:$0x1]
      %v3117 = vld [vmem:[%s2347 + $0x3c] sm:$0xe]
      %v3118 = vld [vmem:[%s2347 + $0x40] sm:$0xf]
      %v3119 = vld [vmem:[%s2347 + $0x44] sm:$0x1]
      %v3120 = vld [vmem:[%s2347 + $0x48] sm:$0xe]
      %v3121 = vld [vmem:[%s2347 + $0x4c] sm:$0xf]
      %v3122 = vld [vmem:[%s2347 + $0x50] sm:$0x1]
      %v3123 = vld [vmem:[%s2347 + $0x54] sm:$0xe]
      %v3124 = vld [vmem:[%s2347 + $0x58] sm:$0xf]
      %v3125 = vld [vmem:[%s2347 + $0x5c] sm:$0x1]
      %v3126 = vld [vmem:[%s2347 + $0x60] sm:$0xe]
      %v3127 = vld [vmem:[%s2347 + $0x64] sm:$0xf]
      %v3128 = vld [vmem:[%s2347 + $0x68] sm:$0x1]
      %v3129 = vld [vmem:[%s2347 + $0x6c] sm:$0xe]
      %v3130 = vld [vmem:[%s2347 + $0x70] sm:$0xf]
      %v3131 = vld [vmem:[%s2347 + $0x74] sm:$0x1]
      %v3132 = vld [vmem:[%s2347 + $0x78] sm:$0xe]
      %v3133 = vld [vmem:[%s2347 + $0x7c] sm:$0xf]
      %v3134 = vld [vmem:[%s2347 + $0x80] sm:$0x1]
      %v3135 = vld [vmem:[%s2347 + $0x84] sm:$0xe]
      %v3136 = vld [vmem:[%s2347 + $0x88] sm:$0xf]
      %v3137 = vld [vmem:[%s2347 + $0x8c] sm:$0x1]
      %v3138 = vld [vmem:[%s2347 + $0x90] sm:$0xe]
      %v3139 = vld [vmem:[%s2347 + $0x94] sm:$0xf]
      %v3140 = vld [vmem:[%s2347 + $0x98] sm:$0x1]
      %v3141 = vld [vmem:[%s2347 + $0x9c] sm:$0xe]
      %v3142 = vld [vmem:[%s2347 + $0xa0] sm:$0xf]
      %v3143 = vld [vmem:[%s2347 + $0xa4] sm:$0x1]
      %v3144 = vld [vmem:[%s2347 + $0xa8] sm:$0xe]
      %v3145 = vld [vmem:[%s2347 + $0xac] sm:$0xf]
      %v3146 = vld [vmem:[%s2347 + $0xb0] sm:$0x1]
      %v3147 = vld [vmem:[%s2347 + $0xb4] sm:$0xe]
      %v3148 = vld [vmem:[%s2347 + $0xb8] sm:$0xf]
      %v3149 = vld [vmem:[%s2347 + $0xbc] sm:$0x1]
      %v3198 = vrot.slane %v3102, 5
      %v3199 = vrot.slane %v3198, 4
      %v3200 = vrot.slane %v3103, 5
      %v3201 = vsel %vm1007, %v3199, %v3200
      %v3202 = vrot.slane %v3200, 4
      %v3203 = vrot.slane %v3104, 5
      %v3204 = vsel %vm1007, %v3202, %v3203
      %v3205 = vrot.slane %v3105, 5
      %v3206 = vrot.slane %v3205, 4
      %v3207 = vrot.slane %v3106, 5
      %v3208 = vsel %vm1007, %v3206, %v3207
      %v3209 = vrot.slane %v3207, 4
      %v3210 = vrot.slane %v3107, 5
      %v3211 = vsel %vm1007, %v3209, %v3210
      %v3212 = vrot.slane %v3108, 5
      %v3213 = vrot.slane %v3212, 4
      %v3214 = vrot.slane %v3109, 5
      %v3215 = vsel %vm1007, %v3213, %v3214
      %v3216 = vrot.slane %v3214, 4
      %v3217 = vrot.slane %v3110, 5
      %v3218 = vsel %vm1007, %v3216, %v3217
      %v3219 = vrot.slane %v3111, 5
      %v3220 = vrot.slane %v3219, 4
      %v3221 = vrot.slane %v3112, 5
      %v3222 = vsel %vm1007, %v3220, %v3221
      %v3223 = vrot.slane %v3221, 4
      %v3224 = vrot.slane %v3113, 5
      %v3225 = vsel %vm1007, %v3223, %v3224
      %v3226 = vrot.slane %v3114, 5
      %v3227 = vrot.slane %v3226, 4
      %v3228 = vrot.slane %v3115, 5
      %v3229 = vsel %vm1007, %v3227, %v3228
      %v3230 = vrot.slane %v3228, 4
      %v3231 = vrot.slane %v3116, 5
      %v3232 = vsel %vm1007, %v3230, %v3231
      %v3233 = vrot.slane %v3117, 5
      %v3234 = vrot.slane %v3233, 4
      %v3235 = vrot.slane %v3118, 5
      %v3236 = vsel %vm1007, %v3234, %v3235
      %v3237 = vrot.slane %v3235, 4
      %v3238 = vrot.slane %v3119, 5
      %v3239 = vsel %vm1007, %v3237, %v3238
      %v3240 = vrot.slane %v3120, 5
      %v3241 = vrot.slane %v3240, 4
      %v3242 = vrot.slane %v3121, 5
      %v3243 = vsel %vm1007, %v3241, %v3242
      %v3244 = vrot.slane %v3242, 4
      %v3245 = vrot.slane %v3122, 5
      %v3246 = vsel %vm1007, %v3244, %v3245
      %v3247 = vrot.slane %v3123, 5
      %v3248 = vrot.slane %v3247, 4
      %v3249 = vrot.slane %v3124, 5
      %v3250 = vsel %vm1007, %v3248, %v3249
      %v3251 = vrot.slane %v3249, 4
      %v3252 = vrot.slane %v3125, 5
      %v3253 = vsel %vm1007, %v3251, %v3252
      %v3254 = vrot.slane %v3126, 5
      %v3255 = vrot.slane %v3254, 4
      %v3256 = vrot.slane %v3127, 5
      %v3257 = vsel %vm1007, %v3255, %v3256
      %v3258 = vrot.slane %v3256, 4
      %v3259 = vrot.slane %v3128, 5
      %v3260 = vsel %vm1007, %v3258, %v3259
      %v3261 = vrot.slane %v3129, 5
      %v3262 = vrot.slane %v3261, 4
      %v3263 = vrot.slane %v3130, 5
      %v3264 = vsel %vm1007, %v3262, %v3263
      %v3265 = vrot.slane %v3263, 4
      %v3266 = vrot.slane %v3131, 5
      %v3267 = vsel %vm1007, %v3265, %v3266
      %v3268 = vrot.slane %v3132, 5
      %v3269 = vrot.slane %v3268, 4
      %v3270 = vrot.slane %v3133, 5
      %v3271 = vsel %vm1007, %v3269, %v3270
      %v3272 = vrot.slane %v3270, 4
      %v3273 = vrot.slane %v3134, 5
      %v3274 = vsel %vm1007, %v3272, %v3273
      %v3275 = vrot.slane %v3135, 5
      %v3276 = vrot.slane %v3275, 4
      %v3277 = vrot.slane %v3136, 5
      %v3278 = vsel %vm1007, %v3276, %v3277
      %v3279 = vrot.slane %v3277, 4
      %v3280 = vrot.slane %v3137, 5
      %v3281 = vsel %vm1007, %v3279, %v3280
      %v3282 = vrot.slane %v3138, 5
      %v3283 = vrot.slane %v3282, 4
      %v3284 = vrot.slane %v3139, 5
      %v3285 = vsel %vm1007, %v3283, %v3284
      %v3286 = vrot.slane %v3284, 4
      %v3287 = vrot.slane %v3140, 5
      %v3288 = vsel %vm1007, %v3286, %v3287
      %v3289 = vrot.slane %v3141, 5
      %v3290 = vrot.slane %v3289, 4
      %v3291 = vrot.slane %v3142, 5
      %v3292 = vsel %vm1007, %v3290, %v3291
      %v3293 = vrot.slane %v3291, 4
      %v3294 = vrot.slane %v3143, 5
      %v3295 = vsel %vm1007, %v3293, %v3294
      %v3296 = vrot.slane %v3144, 5
      %v3297 = vrot.slane %v3296, 4
      %v3298 = vrot.slane %v3145, 5
      %v3299 = vsel %vm1007, %v3297, %v3298
      %v3300 = vrot.slane %v3298, 4
      %v3301 = vrot.slane %v3146, 5
      %v3302 = vsel %vm1007, %v3300, %v3301
      %v3303 = vrot.slane %v3147, 5
      %v3304 = vrot.slane %v3303, 4
      %v3305 = vrot.slane %v3148, 5
      %v3306 = vsel %vm1007, %v3304, %v3305
      %v3307 = vrot.slane %v3305, 4
      %v3308 = vrot.slane %v3149, 5
      %v3309 = vsel %vm1007, %v3307, %v3308
      %3310 = vrot.lane.b32.xlu0 %v3201, 32
      %v3311 = vpop.permute.xlu0 %3310
      %3312 = vrot.lane.b32.xlu0 %v3204, 32
      %v3313 = vpop.permute.xlu0 %3312
      %3314 = vrot.lane.b32.xlu0 %v3208, 32
      %v3315 = vpop.permute.xlu0 %3314
      %3316 = vrot.lane.b32.xlu0 %v3211, 32
      %v3317 = vpop.permute.xlu0 %3316
      %3318 = vrot.lane.b32.xlu0 %v3215, 32
      %v3319 = vpop.permute.xlu0 %3318
      %3320 = vrot.lane.b32.xlu0 %v3218, 32
      %v3321 = vpop.permute.xlu0 %3320
      %3322 = vrot.lane.b32.xlu0 %v3222, 32
      %v3323 = vpop.permute.xlu0 %3322
      %3324 = vrot.lane.b32.xlu0 %v3225, 32
      %v3325 = vpop.permute.xlu0 %3324
      %3326 = vrot.lane.b32.xlu0 %v3229, 32
      %v3327 = vpop.permute.xlu0 %3326
      %3328 = vrot.lane.b32.xlu0 %v3232, 32
      %v3329 = vpop.permute.xlu0 %3328
      %3330 = vrot.lane.b32.xlu0 %v3236, 32
      %v3331 = vpop.permute.xlu0 %3330
      %3332 = vrot.lane.b32.xlu0 %v3239, 32
      %v3333 = vpop.permute.xlu0 %3332
      %3334 = vrot.lane.b32.xlu0 %v3243, 32
      %v3335 = vpop.permute.xlu0 %3334
      %3336 = vrot.lane.b32.xlu0 %v3246, 32
      %v3337 = vpop.permute.xlu0 %3336
      %3338 = vrot.lane.b32.xlu0 %v3250, 32
      %v3339 = vpop.permute.xlu0 %3338
      %3340 = vrot.lane.b32.xlu0 %v3253, 32
      %v3341 = vpop.permute.xlu0 %3340
      %3342 = vrot.lane.b32.xlu0 %v3257, 32
      %v3343 = vpop.permute.xlu0 %3342
      %3344 = vrot.lane.b32.xlu0 %v3260, 32
      %v3345 = vpop.permute.xlu0 %3344
      %3346 = vrot.lane.b32.xlu0 %v3264, 32
      %v3347 = vpop.permute.xlu0 %3346
      %3348 = vrot.lane.b32.xlu0 %v3267, 32
      %v3349 = vpop.permute.xlu0 %3348
      %3350 = vrot.lane.b32.xlu0 %v3271, 32
      %v3351 = vpop.permute.xlu0 %3350
      %3352 = vrot.lane.b32.xlu0 %v3274, 32
      %v3353 = vpop.permute.xlu0 %3352
      %3354 = vrot.lane.b32.xlu0 %v3278, 32
      %v3355 = vpop.permute.xlu0 %3354
      %3356 = vrot.lane.b32.xlu0 %v3281, 32
      %v3357 = vpop.permute.xlu0 %3356
      %3358 = vrot.lane.b32.xlu0 %v3285, 32
      %v3359 = vpop.permute.xlu0 %3358
      %3360 = vrot.lane.b32.xlu0 %v3288, 32
      %v3361 = vpop.permute.xlu0 %3360
      %3362 = vrot.lane.b32.xlu0 %v3292, 32
      %v3363 = vpop.permute.xlu0 %3362
      %3364 = vrot.lane.b32.xlu0 %v3295, 32
      %v3365 = vpop.permute.xlu0 %3364
      %3366 = vrot.lane.b32.xlu0 %v3299, 32
      %v3367 = vpop.permute.xlu0 %3366
      %3368 = vrot.lane.b32.xlu0 %v3302, 32
      %v3369 = vpop.permute.xlu0 %3368
      %3370 = vrot.lane.b32.xlu0 %v3306, 32
      %v3371 = vpop.permute.xlu0 %3370
      %3372 = vrot.lane.b32.xlu0 %v3309, 32
      %v3373 = vpop.permute.xlu0 %3372
      %vm3406 = vcmask 290048
      %3407 = vst.msk [vmem:[#allocation2] sm:$0xf] %vm3406, %v3311
      %3408 = vst.msk [vmem:[#allocation2 + $0x4] sm:$0xf] %vm3406, %v3313
      %3409 = vst.msk [vmem:[#allocation2 + $0x8] sm:$0xf] %vm3406, %v3315
      %3410 = vst.msk [vmem:[#allocation2 + $0xc] sm:$0xf] %vm3406, %v3317
      %3411 = vst.msk [vmem:[#allocation2 + $0x10] sm:$0xf] %vm3406, %v3319
      %3412 = vst.msk [vmem:[#allocation2 + $0x14] sm:$0xf] %vm3406, %v3321
      %3413 = vst.msk [vmem:[#allocation2 + $0x18] sm:$0xf] %vm3406, %v3323
      %3414 = vst.msk [vmem:[#allocation2 + $0x1c] sm:$0xf] %vm3406, %v3325
      %3415 = vst.msk [vmem:[#allocation2 + $0x20] sm:$0xf] %vm3406, %v3327
      %3416 = vst.msk [vmem:[#allocation2 + $0x24] sm:$0xf] %vm3406, %v3329
      %3417 = vst.msk [vmem:[#allocation2 + $0x28] sm:$0xf] %vm3406, %v3331
      %3418 = vst.msk [vmem:[#allocation2 + $0x2c] sm:$0xf] %vm3406, %v3333
      %3419 = vst.msk [vmem:[#allocation2 + $0x30] sm:$0xf] %vm3406, %v3335
      %3420 = vst.msk [vmem:[#allocation2 + $0x34] sm:$0xf] %vm3406, %v3337
      %3421 = vst.msk [vmem:[#allocation2 + $0x38] sm:$0xf] %vm3406, %v3339
      %3422 = vst.msk [vmem:[#allocation2 + $0x3c] sm:$0xf] %vm3406, %v3341
      %3423 = vst.msk [vmem:[#allocation2 + $0x40] sm:$0xf] %vm3406, %v3343
      %3424 = vst.msk [vmem:[#allocation2 + $0x44] sm:$0xf] %vm3406, %v3345
      %3425 = vst.msk [vmem:[#allocation2 + $0x48] sm:$0xf] %vm3406, %v3347
      %3426 = vst.msk [vmem:[#allocation2 + $0x4c] sm:$0xf] %vm3406, %v3349
      %3427 = vst.msk [vmem:[#allocation2 + $0x50] sm:$0xf] %vm3406, %v3351
      %3428 = vst.msk [vmem:[#allocation2 + $0x54] sm:$0xf] %vm3406, %v3353
      %3429 = vst.msk [vmem:[#allocation2 + $0x58] sm:$0xf] %vm3406, %v3355
      %3430 = vst.msk [vmem:[#allocation2 + $0x5c] sm:$0xf] %vm3406, %v3357
      %3431 = vst.msk [vmem:[#allocation2 + $0x60] sm:$0xf] %vm3406, %v3359
      %3432 = vst.msk [vmem:[#allocation2 + $0x64] sm:$0xf] %vm3406, %v3361
      %3433 = vst.msk [vmem:[#allocation2 + $0x68] sm:$0xf] %vm3406, %v3363
      %3434 = vst.msk [vmem:[#allocation2 + $0x6c] sm:$0xf] %vm3406, %v3365
      %3435 = vst.msk [vmem:[#allocation2 + $0x70] sm:$0xf] %vm3406, %v3367
      %3436 = vst.msk [vmem:[#allocation2 + $0x74] sm:$0xf] %vm3406, %v3369
      %3437 = vst.msk [vmem:[#allocation2 + $0x78] sm:$0xf] %vm3406, %v3371
      %3438 = vst.msk [vmem:[#allocation2 + $0x7c] sm:$0xf] %vm3406, %v3373
      %v3439 = vld [vmem:[#allocation2] sm:$0xf]
      %v3440 = vld [vmem:[#allocation2 + $0x4] sm:$0xf]
      %v3441 = vld [vmem:[#allocation2 + $0x8] sm:$0xf]
      %v3442 = vld [vmem:[#allocation2 + $0xc] sm:$0xf]
      %v3443 = vld [vmem:[#allocation2 + $0x10] sm:$0xf]
      %v3444 = vld [vmem:[#allocation2 + $0x14] sm:$0xf]
      %v3445 = vld [vmem:[#allocation2 + $0x18] sm:$0xf]
      %v3446 = vld [vmem:[#allocation2 + $0x1c] sm:$0xf]
      %v3447 = vld [vmem:[#allocation2 + $0x20] sm:$0xf]
      %v3448 = vld [vmem:[#allocation2 + $0x24] sm:$0xf]
      %v3449 = vld [vmem:[#allocation2 + $0x28] sm:$0xf]
      %v3450 = vld [vmem:[#allocation2 + $0x2c] sm:$0xf]
      %v3451 = vld [vmem:[#allocation2 + $0x30] sm:$0xf]
      %v3452 = vld [vmem:[#allocation2 + $0x34] sm:$0xf]
      %v3453 = vld [vmem:[#allocation2 + $0x38] sm:$0xf]
      %v3454 = vld [vmem:[#allocation2 + $0x3c] sm:$0xf]
      %v3455 = vld [vmem:[#allocation2 + $0x40] sm:$0xf]
      %v3456 = vld [vmem:[#allocation2 + $0x44] sm:$0xf]
      %v3457 = vld [vmem:[#allocation2 + $0x48] sm:$0xf]
      %v3458 = vld [vmem:[#allocation2 + $0x4c] sm:$0xf]
      %v3459 = vld [vmem:[#allocation2 + $0x50] sm:$0xf]
      %v3460 = vld [vmem:[#allocation2 + $0x54] sm:$0xf]
      %v3461 = vld [vmem:[#allocation2 + $0x58] sm:$0xf]
      %v3462 = vld [vmem:[#allocation2 + $0x5c] sm:$0xf]
      %v3463 = vld [vmem:[#allocation2 + $0x60] sm:$0xf]
      %v3464 = vld [vmem:[#allocation2 + $0x64] sm:$0xf]
      %v3465 = vld [vmem:[#allocation2 + $0x68] sm:$0xf]
      %v3466 = vld [vmem:[#allocation2 + $0x6c] sm:$0xf]
      %v3467 = vld [vmem:[#allocation2 + $0x70] sm:$0xf]
      %v3468 = vld [vmem:[#allocation2 + $0x74] sm:$0xf]
      %v3469 = vld [vmem:[#allocation2 + $0x78] sm:$0xf]
      %v3470 = vld [vmem:[#allocation2 + $0x7c] sm:$0xf]
      %v3471 = vld [vmem:[%s224] sm:$0xf]
      %v3472 = vld [vmem:[%s224 + $0x4] sm:$0xf]
      %v3473 = vld [vmem:[%s224 + $0x8] sm:$0xf]
      %v3474 = vld [vmem:[%s224 + $0xc] sm:$0xf]
      %v3475 = vld [vmem:[%s224 + $0x10] sm:$0xf]
      %v3476 = vld [vmem:[%s224 + $0x14] sm:$0xf]
      %v3477 = vld [vmem:[%s224 + $0x18] sm:$0xf]
      %v3478 = vld [vmem:[%s224 + $0x1c] sm:$0xf]
      %v3479 = vld [vmem:[%s224 + $0x20] sm:$0xf]
      %v3480 = vld [vmem:[%s224 + $0x24] sm:$0xf]
      %v3481 = vld [vmem:[%s224 + $0x28] sm:$0xf]
      %v3482 = vld [vmem:[%s224 + $0x2c] sm:$0xf]
      %v3483 = vld [vmem:[%s224 + $0x30] sm:$0xf]
      %v3484 = vld [vmem:[%s224 + $0x34] sm:$0xf]
      %v3485 = vld [vmem:[%s224 + $0x38] sm:$0xf]
      %v3486 = vld [vmem:[%s224 + $0x3c] sm:$0xf]
      %v3487 = vld [vmem:[%s227] sm:$0x1]
      %v3489 = vperm.slane %v3487, 0
      %v3523 = vunpack.c.l.b16 %v3439
      %v3524 = vunpack.c.l.b16 %v3440
      %v3525 = vunpack.c.l.b16 %v3441
      %v3526 = vunpack.c.l.b16 %v3442
      %v3527 = vunpack.c.l.b16 %v3443
      %v3528 = vunpack.c.l.b16 %v3444
      %v3529 = vunpack.c.l.b16 %v3445
      %v3530 = vunpack.c.l.b16 %v3446
      %v3531 = vunpack.c.l.b16 %v3447
      %v3532 = vunpack.c.l.b16 %v3448
      %v3533 = vunpack.c.l.b16 %v3449
      %v3534 = vunpack.c.l.b16 %v3450
      %v3535 = vunpack.c.l.b16 %v3451
      %v3536 = vunpack.c.l.b16 %v3452
      %v3537 = vunpack.c.l.b16 %v3453
      %v3538 = vunpack.c.l.b16 %v3454
      %v3539 = vunpack.c.l.b16 %v3455
      %v3540 = vunpack.c.l.b16 %v3456
      %v3541 = vunpack.c.l.b16 %v3457
      %v3542 = vunpack.c.l.b16 %v3458
      %v3543 = vunpack.c.l.b16 %v3459
      %v3544 = vunpack.c.l.b16 %v3460
      %v3545 = vunpack.c.l.b16 %v3461
      %v3546 = vunpack.c.l.b16 %v3462
      %v3547 = vunpack.c.l.b16 %v3463
      %v3548 = vunpack.c.l.b16 %v3464
      %v3549 = vunpack.c.l.b16 %v3465
      %v3550 = vunpack.c.l.b16 %v3466
      %v3551 = vunpack.c.l.b16 %v3467
      %v3552 = vunpack.c.l.b16 %v3468
      %v3553 = vunpack.c.l.b16 %v3469
      %v3554 = vunpack.c.l.b16 %v3470
      %v3555 = vpack.c.b16 %v3524, %v3523
      %v3556 = vpack.c.b16 %v3526, %v3525
      %v3557 = vpack.c.b16 %v3528, %v3527
      %v3558 = vpack.c.b16 %v3530, %v3529
      %v3559 = vpack.c.b16 %v3532, %v3531
      %v3560 = vpack.c.b16 %v3534, %v3533
      %v3561 = vpack.c.b16 %v3536, %v3535
      %v3562 = vpack.c.b16 %v3538, %v3537
      %v3563 = vpack.c.b16 %v3540, %v3539
      %v3564 = vpack.c.b16 %v3542, %v3541
      %v3565 = vpack.c.b16 %v3544, %v3543
      %v3566 = vpack.c.b16 %v3546, %v3545
      %v3567 = vpack.c.b16 %v3548, %v3547
      %v3568 = vpack.c.b16 %v3550, %v3549
      %v3569 = vpack.c.b16 %v3552, %v3551
      %v3570 = vpack.c.b16 %v3554, %v3553
      %v3603 = vunpack.c.l.b16 %v3471
      %v3604 = vunpack.c.l.b16 %v3472
      %v3605 = vunpack.c.l.b16 %v3473
      %v3606 = vunpack.c.l.b16 %v3474
      %v3607 = vunpack.c.l.b16 %v3475
      %v3608 = vunpack.c.l.b16 %v3476
      %v3609 = vunpack.c.l.b16 %v3477
      %v3610 = vunpack.c.l.b16 %v3478
      %v3611 = vunpack.c.l.b16 %v3479
      %v3612 = vunpack.c.l.b16 %v3480
      %v3613 = vunpack.c.l.b16 %v3481
      %v3614 = vunpack.c.l.b16 %v3482
      %v3615 = vunpack.c.l.b16 %v3483
      %v3616 = vunpack.c.l.b16 %v3484
      %v3617 = vunpack.c.l.b16 %v3485
      %v3618 = vunpack.c.l.b16 %v3486
      %v3619 = vpack.c.b16 %v3604, %v3603
      %v3620 = vpack.c.b16 %v3606, %v3605
      %v3621 = vpack.c.b16 %v3608, %v3607
      %v3622 = vpack.c.b16 %v3610, %v3609
      %v3623 = vpack.c.b16 %v3612, %v3611
      %v3624 = vpack.c.b16 %v3614, %v3613
      %v3625 = vpack.c.b16 %v3616, %v3615
      %v3626 = vpack.c.b16 %v3618, %v3617
      %3635 = vmatpush.bf16.msra.mxu0 %v3626
      %3636 = vmatpush.bf16.msra.mxu0 %v3625
      %3637 = vmatpush.bf16.msra.mxu0 %v3624
      %3638 = vmatpush.bf16.msra.mxu0 %v3623
      %3639 = vmatpush.bf16.msra.mxu0 %v3622
      %3640 = vmatpush.bf16.msra.mxu0 %v3621
      %3641 = vmatpush.bf16.msra.mxu0 %v3620
      %3642 = vmatpush.bf16.msra.mxu0 %v3619
      %3643 = vmatmul.bf16.gmra.mxu0 %v3555
      %v3644 = vpop.f32.mrf.mxu0
      %v3645 = vadd.f32 %v3489, %v3644
      %v3646 = vpop.f32.mrf.mxu0
      %v3647 = vadd.f32 %v3489, %v3646
      %3648 = vmatmul.bf16.gmra.mxu0 %v3556
      %v3649 = vpop.f32.mrf.mxu0
      %v3650 = vadd.f32 %v3489, %v3649
      %v3651 = vpop.f32.mrf.mxu0
      %v3652 = vadd.f32 %v3489, %v3651
      %3653 = vmatmul.bf16.gmra.mxu0 %v3557
      %v3654 = vpop.f32.mrf.mxu0
      %v3655 = vadd.f32 %v3489, %v3654
      %v3656 = vpop.f32.mrf.mxu0
      %v3657 = vadd.f32 %v3489, %v3656
      %3658 = vmatmul.bf16.gmra.mxu0 %v3558
      %v3659 = vpop.f32.mrf.mxu0
      %v3660 = vadd.f32 %v3489, %v3659
      %v3661 = vpop.f32.mrf.mxu0
      %v3662 = vadd.f32 %v3489, %v3661
      %3663 = vmatmul.bf16.gmra.mxu0 %v3559
      %v3664 = vpop.f32.mrf.mxu0
      %v3665 = vadd.f32 %v3489, %v3664
      %v3666 = vpop.f32.mrf.mxu0
      %v3667 = vadd.f32 %v3489, %v3666
      %3668 = vmatmul.bf16.gmra.mxu0 %v3560
      %v3669 = vpop.f32.mrf.mxu0
      %v3670 = vadd.f32 %v3489, %v3669
      %v3671 = vpop.f32.mrf.mxu0
      %v3672 = vadd.f32 %v3489, %v3671
      %3673 = vmatmul.bf16.gmra.mxu0 %v3561
      %v3674 = vpop.f32.mrf.mxu0
      %v3675 = vadd.f32 %v3489, %v3674
      %v3676 = vpop.f32.mrf.mxu0
      %v3677 = vadd.f32 %v3489, %v3676
      %3678 = vmatmul.bf16.gmra.mxu0 %v3562
      %v3679 = vpop.f32.mrf.mxu0
      %v3680 = vadd.f32 %v3489, %v3679
      %v3681 = vpop.f32.mrf.mxu0
      %v3682 = vadd.f32 %v3489, %v3681
      %3683 = vmatmul.bf16.gmra.mxu0 %v3563
      %v3684 = vpop.f32.mrf.mxu0
      %v3685 = vadd.f32 %v3489, %v3684
      %v3686 = vpop.f32.mrf.mxu0
      %v3687 = vadd.f32 %v3489, %v3686
      %3688 = vmatmul.bf16.gmra.mxu0 %v3564
      %v3689 = vpop.f32.mrf.mxu0
      %v3690 = vadd.f32 %v3489, %v3689
      %v3691 = vpop.f32.mrf.mxu0
      %v3692 = vadd.f32 %v3489, %v3691
      %3693 = vmatmul.bf16.gmra.mxu0 %v3565
      %v3694 = vpop.f32.mrf.mxu0
      %v3695 = vadd.f32 %v3489, %v3694
      %v3696 = vpop.f32.mrf.mxu0
      %v3697 = vadd.f32 %v3489, %v3696
      %3698 = vmatmul.bf16.gmra.mxu0 %v3566
      %v3699 = vpop.f32.mrf.mxu0
      %v3700 = vadd.f32 %v3489, %v3699
      %v3701 = vpop.f32.mrf.mxu0
      %v3702 = vadd.f32 %v3489, %v3701
      %3703 = vmatmul.bf16.gmra.mxu0 %v3567
      %v3704 = vpop.f32.mrf.mxu0
      %v3705 = vadd.f32 %v3489, %v3704
      %v3706 = vpop.f32.mrf.mxu0
      %v3707 = vadd.f32 %v3489, %v3706
      %3708 = vmatmul.bf16.gmra.mxu0 %v3568
      %v3709 = vpop.f32.mrf.mxu0
      %v3710 = vadd.f32 %v3489, %v3709
      %v3711 = vpop.f32.mrf.mxu0
      %v3712 = vadd.f32 %v3489, %v3711
      %3713 = vmatmul.bf16.gmra.mxu0 %v3569
      %v3714 = vpop.f32.mrf.mxu0
      %v3715 = vadd.f32 %v3489, %v3714
      %v3716 = vpop.f32.mrf.mxu0
      %v3717 = vadd.f32 %v3489, %v3716
      %3718 = vmatmul.bf16.gmra.mxu0 %v3570
      %v3719 = vpop.f32.mrf.mxu0
      %v3720 = vadd.f32 %v3489, %v3719
      %v3721 = vpop.f32.mrf.mxu0
      %v3722 = vadd.f32 %v3489, %v3721
      %3723 = vdwg.mxu0
      %v3724 = vmax.f32 %v3645, 0.0
      %v3725 = vmax.f32 %v3647, 0.0
      %v3726 = vmax.f32 %v3650, 0.0
      %v3727 = vmax.f32 %v3652, 0.0
      %v3728 = vmax.f32 %v3655, 0.0
      %v3729 = vmax.f32 %v3657, 0.0
      %v3730 = vmax.f32 %v3660, 0.0
      %v3731 = vmax.f32 %v3662, 0.0
      %v3732 = vmax.f32 %v3665, 0.0
      %v3733 = vmax.f32 %v3667, 0.0
      %v3734 = vmax.f32 %v3670, 0.0
      %v3735 = vmax.f32 %v3672, 0.0
      %v3736 = vmax.f32 %v3675, 0.0
      %v3737 = vmax.f32 %v3677, 0.0
      %v3738 = vmax.f32 %v3680, 0.0
      %v3739 = vmax.f32 %v3682, 0.0
      %v3740 = vmax.f32 %v3685, 0.0
      %v3741 = vmax.f32 %v3687, 0.0
      %v3742 = vmax.f32 %v3690, 0.0
      %v3743 = vmax.f32 %v3692, 0.0
      %v3744 = vmax.f32 %v3695, 0.0
      %v3745 = vmax.f32 %v3697, 0.0
      %v3746 = vmax.f32 %v3700, 0.0
      %v3747 = vmax.f32 %v3702, 0.0
      %v3748 = vmax.f32 %v3705, 0.0
      %v3749 = vmax.f32 %v3707, 0.0
      %v3750 = vmax.f32 %v3710, 0.0
      %v3751 = vmax.f32 %v3712, 0.0
      %v3752 = vmax.f32 %v3715, 0.0
      %v3753 = vmax.f32 %v3717, 0.0
      %v3754 = vmax.f32 %v3720, 0.0
      %v3755 = vmax.f32 %v3722, 0.0
      %v3756 = vpack.c.bf16 %v3724, %v3724
      %v3757 = vpack.c.bf16 %v3725, %v3725
      %v3758 = vpack.c.bf16 %v3726, %v3726
      %v3759 = vpack.c.bf16 %v3727, %v3727
      %v3760 = vpack.c.bf16 %v3728, %v3728
      %v3761 = vpack.c.bf16 %v3729, %v3729
      %v3762 = vpack.c.bf16 %v3730, %v3730
      %v3763 = vpack.c.bf16 %v3731, %v3731
      %v3764 = vpack.c.bf16 %v3732, %v3732
      %v3765 = vpack.c.bf16 %v3733, %v3733
      %v3766 = vpack.c.bf16 %v3734, %v3734
      %v3767 = vpack.c.bf16 %v3735, %v3735
      %v3768 = vpack.c.bf16 %v3736, %v3736
      %v3769 = vpack.c.bf16 %v3737, %v3737
      %v3770 = vpack.c.bf16 %v3738, %v3738
      %v3771 = vpack.c.bf16 %v3739, %v3739
      %v3772 = vpack.c.bf16 %v3740, %v3740
      %v3773 = vpack.c.bf16 %v3741, %v3741
      %v3774 = vpack.c.bf16 %v3742, %v3742
      %v3775 = vpack.c.bf16 %v3743, %v3743
      %v3776 = vpack.c.bf16 %v3744, %v3744
      %v3777 = vpack.c.bf16 %v3745, %v3745
      %v3778 = vpack.c.bf16 %v3746, %v3746
      %v3779 = vpack.c.bf16 %v3747, %v3747
      %v3780 = vpack.c.bf16 %v3748, %v3748
      %v3781 = vpack.c.bf16 %v3749, %v3749
      %v3782 = vpack.c.bf16 %v3750, %v3750
      %v3783 = vpack.c.bf16 %v3751, %v3751
      %v3784 = vpack.c.bf16 %v3752, %v3752
      %v3785 = vpack.c.bf16 %v3753, %v3753
      %v3786 = vpack.c.bf16 %v3754, %v3754
      %v3787 = vpack.c.bf16 %v3755, %v3755
      %3788 = vst [vmem:[%s240] sm:$0xf] %v3756
      %3789 = vst [vmem:[%s240 + $0x4] sm:$0xf] %v3757
      %3790 = vst [vmem:[%s240 + $0x8] sm:$0xf] %v3758
      %3791 = vst [vmem:[%s240 + $0xc] sm:$0xf] %v3759
      %3792 = vst [vmem:[%s240 + $0x10] sm:$0xf] %v3760
      %3793 = vst [vmem:[%s240 + $0x14] sm:$0xf] %v3761
      %3794 = vst [vmem:[%s240 + $0x18] sm:$0xf] %v3762
      %3795 = vst [vmem:[%s240 + $0x1c] sm:$0xf] %v3763
      %3796 = vst [vmem:[%s240 + $0x20] sm:$0xf] %v3764
      %3797 = vst [vmem:[%s240 + $0x24] sm:$0xf] %v3765
      %3798 = vst [vmem:[%s240 + $0x28] sm:$0xf] %v3766
      %3799 = vst [vmem:[%s240 + $0x2c] sm:$0xf] %v3767
      %3800 = vst [vmem:[%s240 + $0x30] sm:$0xf] %v3768
      %3801 = vst [vmem:[%s240 + $0x34] sm:$0xf] %v3769
      %3802 = vst [vmem:[%s240 + $0x38] sm:$0xf] %v3770
      %3803 = vst [vmem:[%s240 + $0x3c] sm:$0xf] %v3771
      %3804 = vst [vmem:[%s240 + $0x40] sm:$0xf] %v3772
      %3805 = vst [vmem:[%s240 + $0x44] sm:$0xf] %v3773
      %3806 = vst [vmem:[%s240 + $0x48] sm:$0xf] %v3774
      %3807 = vst [vmem:[%s240 + $0x4c] sm:$0xf] %v3775
      %3808 = vst [vmem:[%s240 + $0x50] sm:$0xf] %v3776
      %3809 = vst [vmem:[%s240 + $0x54] sm:$0xf] %v3777
      %3810 = vst [vmem:[%s240 + $0x58] sm:$0xf] %v3778
      %3811 = vst [vmem:[%s240 + $0x5c] sm:$0xf] %v3779
      %3812 = vst [vmem:[%s240 + $0x60] sm:$0xf] %v3780
      %3813 = vst [vmem:[%s240 + $0x64] sm:$0xf] %v3781
      %3814 = vst [vmem:[%s240 + $0x68] sm:$0xf] %v3782
      %3815 = vst [vmem:[%s240 + $0x6c] sm:$0xf] %v3783
      %3816 = vst [vmem:[%s240 + $0x70] sm:$0xf] %v3784
      %3817 = vst [vmem:[%s240 + $0x74] sm:$0xf] %v3785
      %3818 = vst [vmem:[%s240 + $0x78] sm:$0xf] %v3786
      %3819 = vst [vmem:[%s240 + $0x7c] sm:$0xf] %v3787
      %s3820 = smul.u32 16, %s20
      %p3821 = scmp.lt.s32.totalorder %s19, 1
      %s3822 = scalar_select %p3821, %s19, 1
      %p3823 = scmp.lt.s32.totalorder %s3820, 15
      %s3824 = scalar_select %p3823, %s3820, 15
      %p3825 = scmp.lt.s32.totalorder %s21, 0
      %s3826 = scalar_select %p3825, %s21, 0
      %s3827 = smul.addr %s3824, 2
      %s3828 = sadd.s32 %s3826, %s3827
      %s3829 = smul.addr %s3822, 32
      %s3830 = sadd.s32 %s3828, %s3829
      %s3831 = smul.addr %s3830, 4
      %s3832 = scalar_lea.vmem %s3, %s3831
      // Predicated region
      $region33: #{basic_conv2d.1} parent=31 // pred_check
        %p3833 = pneg %p133
      $region34: #{basic_conv2d.1} parent=31 // pred_check_branch
        %3835 = sbr.rel (%p3833) target = $region36
      $region35: #{basic_conv2d.1} parent=31 // pred_region
        %s3836 = smul.u32 16, %s20
      $region36: #{basic_conv2d.1} parent=31 // pred_fallthru
        _
    $region32: #{basic_conv2d.1} parent=5 // pred_fallthru
      _
    %p3837 = scmp.le.s32.totalorder 2, %s9
    // Predicated region
    $region37: #{basic_conv2d.1} parent=5 // pred_check
      %p3838 = pneg %p3837
    $region38: #{basic_conv2d.1} parent=5 // pred_check_branch
      %3840 = sbr.rel (%p3838) target = $region40
    $region39: #{basic_conv2d.1} parent=5 // pred_region
      %s3841 = ssub.s32 %s9, 2
      // Predicated region
      $region41: #{basic_conv2d.1} parent=39 // pred_check
        %p3842 = pneg %p139
      $region42: #{basic_conv2d.1} parent=39 // pred_check_branch
        %3844 = sbr.rel (%p3842) target = $region44
      $region43: #{basic_conv2d.1} parent=39 // pred_region
        %s3845 = smul.u32 16, %s23
        %p3846 = scmp.lt.s32.totalorder %s22, 1
        %s3847 = scalar_select %p3846, %s22, 1
        %p3848 = scmp.lt.s32.totalorder %s3845, 15
        %s3849 = scalar_select %p3848, %s3845, 15
        %p3850 = scmp.lt.s32.totalorder %s24, 0
        %s3851 = scalar_select %p3850, %s24, 0
        %s3852 = smul.addr %s3849, 2
        %s3853 = sadd.s32 %s3851, %s3852
        %s3854 = smul.addr %s3847, 32
        %s3855 = sadd.s32 %s3853, %s3854
        %s3856 = smul.addr %s3855, 4
        %s3857 = scalar_lea.vmem %s3, %s3856
      $region44: #{basic_conv2d.1} parent=39 // pred_fallthru
        _
    $region40: #{basic_conv2d.1} parent=5 // pred_fallthru
      _
  $region6: #{basic_conv2d.1} parent=0 // loop_footer
    %s13 = sadd.s32 1, %s9
  $region7: #{basic_conv2d.1} parent=0 // loop_footer_branch
    %8 = sbr.rel target = $region3
  $region8: #{basic_conv2d.1} parent=0 // loop_exit
    _

</llo_original>
